<compile_context>
chip_gen: v5e
topology: v5e:2x2
jax: 0.10.0
libtpu: 0.0.40
codegen_flags: <defaults>
</compile_context>

<pallas_src>
import jax
import jax.numpy as jnp
from jax.experimental import pallas as pl
from jax.experimental.pallas import tpu as pltpu


# (Cin, Cout, K, stride) for the four Conv1d layers -- fixed by the module.
_CONV_CFG = (
    (2, 64, 9, 4),
    (64, 32, 5, 2),
    (32, 16, 3, 1),
    (16, 8, 3, 1),
)
FC1_OUT = 2040
FC2_OUT = 9


def conv_out_len(L, K, s):
    return (L - K) // s + 1


def conv_lens(L):
    lens = []
    for (_, _, K, s) in _CONV_CFG:
        L = conv_out_len(L, K, s)
        lens.append(L)
    return lens


# ----------------------------------------------------------------------------
# Fused kernel: one grid step == one batch tile of TB samples.
# Six dense 2-D matmuls; all operands are full VMEM-resident tiles.
# ----------------------------------------------------------------------------
def _net_fused_kernel(x_ref,
                      w1_ref, b1_ref, w2_ref, b2_ref,
                      w3_ref, b3_ref, w4_ref, b4_ref,
                      fc1w_ref, fc1b_ref, fc2w_ref, fc2b_ref,
                      o_ref):
    def dense(h, w_ref, b_ref, relu=True):
        y = jnp.dot(h, w_ref[...], preferred_element_type=jnp.float32) + b_ref[...]
        return jnp.maximum(y, 0.0) if relu else y

    h = x_ref[...]                        # (TB, Cin*L) NCW-flattened input
    h = dense(h, w1_ref, b1_ref)          # conv1 + ReLU   (banded matmul)
    h = dense(h, w2_ref, b2_ref)          # conv2 + ReLU
    h = dense(h, w3_ref, b3_ref)          # conv3 + ReLU
    h = dense(h, w4_ref, b4_ref)          # conv4 + ReLU -> (TB, 72) flat feats
    h = dense(h, fc1w_ref, fc1b_ref)      # fc1 + ReLU     (single matmul, K=72)
    # TODO(synk): nn.Dropout applied as identity (eval/inference semantics);
    # training-mode dropout with PyTorch-matching RNG is not reproduced.
    o_ref[...] = dense(h, fc2w_ref, fc2b_ref, relu=False).astype(o_ref.dtype)


# ----------------------------------------------------------------------------
# One-time parameter re-layout (PyTorch layouts -> kernel layouts).
# ----------------------------------------------------------------------------
def _conv_to_banded(w, b, l_in, stride):
    """Lower a torch Conv1d (weight (Cout,Cin,K), bias (Cout,)) to a dense
    banded matrix acting on NCW-flattened activations (feature = c*L + t)."""
    c_out, c_in, kw = w.shape
    l_out = conv_out_len(l_in, kw, stride)
    ci, co, kk, tt = jnp.meshgrid(jnp.arange(c_in), jnp.arange(c_out),
                                  jnp.arange(kw), jnp.arange(l_out),
                                  indexing="ij")
    rows = ci * l_in + stride * tt + kk          # input flat index
    cols = co * l_out + tt                       # output flat index
    vals = w[co, ci, kk]
    wb = jnp.zeros((c_in * l_in, c_out * l_out), jnp.float32)
    wb = wb.at[rows.reshape(-1), cols.reshape(-1)].set(vals.reshape(-1))
    bb = jnp.repeat(b, l_out).reshape(1, c_out * l_out)
    return wb, bb, l_out


def prepare_kernel_params(params, L):
    """Conv layers -> banded matrices over NCW-flat activations; fc weights
    transposed to (in, out). Every kernel layer becomes a 2-D matmul."""
    kp = {}
    l_in = L
    for i, (_, _, K, s) in enumerate(_CONV_CFG, start=1):
        wb, bb, l_in = _conv_to_banded(params[f"w{i}"], params[f"b{i}"], l_in, s)
        kp[f"w{i}"], kp[f"b{i}"] = wb, bb
    # conv4's flat output (index c*L4 + t) IS PyTorch's .view(B,-1) order,
    # so fc1 needs no permutation -- just a transpose to (in, out).
    kp["fc1_w"] = params["fc1_w"].T                       # (72, 2040)
    kp["fc1_b"] = params["fc1_b"].reshape(1, FC1_OUT)
    kp["fc2_w"] = params["fc2_w"].T                       # (2040, 9)
    kp["fc2_b"] = params["fc2_b"].reshape(1, FC2_OUT)
    return kp


# ----------------------------------------------------------------------------
# Forward pass: a single fused, batch-tiled pallas_call.
# ----------------------------------------------------------------------------
def net_forward(x, kp, tb=8):
    """x: (B, 2, L) float32 (PyTorch NCW); kp: kernel-layout params."""
    B, c_in, L = x.shape
    n_in = c_in * L

    # NCW flatten (matches the banded weights' input layout); pad batch to tile.
    x_flat = x.reshape(B, n_in)
    b_pad = ((B + tb - 1) // tb) * tb
    if b_pad != B:
        x_flat = jnp.pad(x_flat, ((0, b_pad - B), (0, 0)))

    weight_args = (kp["w1"], kp["b1"], kp["w2"], kp["b2"],
                   kp["w3"], kp["b3"], kp["w4"], kp["b4"],
                   kp["fc1_w"], kp["fc1_b"], kp["fc2_w"], kp["fc2_b"])

    def full_spec(a):
        nd = a.ndim
        return pl.BlockSpec(a.shape, lambda *_: (0,) * nd)

    # Advisory cost estimate (what the kernel actually executes).
    kn = sum(int(w.shape[0]) * int(w.shape[1])
             for w in (kp["w1"], kp["w2"], kp["w3"], kp["w4"],
                       kp["fc1_w"], kp["fc2_w"]))
    flops = 2 * b_pad * kn
    param_bytes = sum(int(v.size) * v.dtype.itemsize for v in weight_args)
    bytes_accessed = int(param_bytes + x_flat.size * 4 + b_pad * FC2_OUT * 4)

    out = pl.pallas_call(
        _net_fused_kernel,
        out_shape=jax.ShapeDtypeStruct((b_pad, FC2_OUT), jnp.float32),
        grid_spec=pltpu.PrefetchScalarGridSpec(
            num_scalar_prefetch=0,
            grid=(b_pad // tb,),
            in_specs=[pl.BlockSpec((tb, n_in), lambda i: (i, 0))]
                     + [full_spec(w) for w in weight_args],
            out_specs=pl.BlockSpec((tb, FC2_OUT), lambda i: (i, 0)),
        ),
        compiler_params=pltpu.CompilerParams(
            dimension_semantics=("parallel",),
            vmem_limit_bytes=32 * 1024 * 1024,
        ),
        cost_estimate=pl.CostEstimate(flops=int(flops), transcendentals=0,
                                      bytes_accessed=bytes_accessed),
    )(x_flat, *weight_args)
    return out[:B]


# ----------------------------------------------------------------------------
# Synthetic init (PyTorch layouts) + pure-JAX reference for correctness check.
# ----------------------------------------------------------------------------
def init_params(key, L):
    def nrm(k, shape, scale=0.1):
        return scale * jax.random.normal(k, shape, dtype=jnp.float32)

    lens = conv_lens(L)
    n_size = _CONV_CFG[-1][1] * lens[-1]
    ks = jax.random.split(key, 12)
    params = {
        "w1": nrm(ks[0], (64, 2, 9)),   "b1": nrm(ks[1], (64,)),
        "w2": nrm(ks[2], (32, 64, 5)),  "b2": nrm(ks[3], (32,)),
        "w3": nrm(ks[4], (16, 32, 3)),  "b3": nrm(ks[5], (16,)),
        "w4": nrm(ks[6], (8, 16, 3)),   "b4": nrm(ks[7], (8,)),
        "fc1_w": nrm(ks[8], (FC1_OUT, n_size), scale=0.05),
        "fc1_b": nrm(ks[9], (FC1_OUT,)),
        "fc2_w": nrm(ks[10], (FC2_OUT, FC1_OUT), scale=0.05),
        "fc2_b": nrm(ks[11], (FC2_OUT,)),
    }
    return params, n_size


def net_forward_reference(x, params):
    """Pure-JAX reference mirroring the PyTorch module (dropout = identity)."""
    hi = jax.lax.Precision.HIGHEST

    def conv1d_relu(h, w, b, stride):
        y = jax.lax.conv_general_dilated(
            h, w, window_strides=(stride,), padding="VALID",
            dimension_numbers=("NCH", "OIH", "NCH"), precision=hi)
        return jax.nn.relu(y + b[None, :, None])

    h = conv1d_relu(x, params["w1"], params["b1"], 4)
    h = conv1d_relu(h, params["w2"], params["b2"], 2)
    h = conv1d_relu(h, params["w3"], params["b3"], 1)
    h = conv1d_relu(h, params["w4"], params["b4"], 1)
    h = h.reshape(h.shape[0], -1)
    h = jax.nn.relu(jnp.dot(h, params["fc1_w"].T, precision=hi) + params["fc1_b"])
    return jnp.dot(h, params["fc2_w"].T, precision=hi) + params["fc2_b"]


if __name__ == "__main__":
    key = jax.random.PRNGKey(0)
    k_x, k_p = jax.random.split(key)

    B, C_IN, L = 2, 2, 128    # input_shape = (2, 128) -> conv feature size 8*9 = 72
    x = jax.random.normal(k_x, (B, C_IN, L), dtype=jnp.float32)

    params, n_size = init_params(k_p, L)
    assert n_size == 72, n_size
    kparams = prepare_kernel_params(params, L)   # one-time layout / banding work

    out = jax.jit(net_forward)(x, kparams)
    out = jax.block_until_ready(out)

    assert out.shape == (B, FC2_OUT), out.shape
    assert bool(jnp.all(jnp.isfinite(out)))

    ref = net_forward_reference(x, params)
    max_err = float(jnp.max(jnp.abs(out - ref)))
    assert jnp.allclose(out, ref, rtol=2e-3, atol=2e-3), f"max |err| = {max_err}"

    print("KERNEL_OK")
</pallas_src>

<mosaic_0001>
module attributes {stable_mosaic.version = 11 : i64} {
  func.func @_net_fused_kernel(%arg0: i32, %arg1: memref<8x256xf32, #tpu.memory_space<vmem>>, %arg2: memref<256x1920xf32, #tpu.memory_space<vmem>>, %arg3: memref<1x1920xf32, #tpu.memory_space<vmem>>, %arg4: memref<1920x416xf32, #tpu.memory_space<vmem>>, %arg5: memref<1x416xf32, #tpu.memory_space<vmem>>, %arg6: memref<416x176xf32, #tpu.memory_space<vmem>>, %arg7: memref<1x176xf32, #tpu.memory_space<vmem>>, %arg8: memref<176x72xf32, #tpu.memory_space<vmem>>, %arg9: memref<1x72xf32, #tpu.memory_space<vmem>>, %arg10: memref<72x2040xf32, #tpu.memory_space<vmem>>, %arg11: memref<1x2040xf32, #tpu.memory_space<vmem>>, %arg12: memref<2040x9xf32, #tpu.memory_space<vmem>>, %arg13: memref<1x9xf32, #tpu.memory_space<vmem>>, %arg14: memref<8x9xf32, #tpu.memory_space<vmem>>) attributes {dimension_semantics = [#tpu.dimension_semantics<parallel>], iteration_bounds = array<i64: 1>, scalar_prefetch = 0 : i64, scratch_operands = 0 : i64, tpu.core_type = #tpu.core_type<tc>, window_params = [{transform_indices = @transform_0, window_bounds = array<i64: 8, 256>}, {pipeline_mode = #tpu.pipeline_mode<synchronous>, transform_indices = @transform_1, window_bounds = array<i64: 256, 1920>}, {pipeline_mode = #tpu.pipeline_mode<synchronous>, transform_indices = @transform_2, window_bounds = array<i64: 1, 1920>}, {pipeline_mode = #tpu.pipeline_mode<synchronous>, transform_indices = @transform_3, window_bounds = array<i64: 1920, 416>}, {pipeline_mode = #tpu.pipeline_mode<synchronous>, transform_indices = @transform_4, window_bounds = array<i64: 1, 416>}, {pipeline_mode = #tpu.pipeline_mode<synchronous>, transform_indices = @transform_5, window_bounds = array<i64: 416, 176>}, {pipeline_mode = #tpu.pipeline_mode<synchronous>, transform_indices = @transform_6, window_bounds = array<i64: 1, 176>}, {pipeline_mode = #tpu.pipeline_mode<synchronous>, transform_indices = @transform_7, window_bounds = array<i64: 176, 72>}, {pipeline_mode = #tpu.pipeline_mode<synchronous>, transform_indices = @transform_8, window_bounds = array<i64: 1, 72>}, {pipeline_mode = #tpu.pipeline_mode<synchronous>, transform_indices = @transform_9, window_bounds = array<i64: 72, 2040>}, {pipeline_mode = #tpu.pipeline_mode<synchronous>, transform_indices = @transform_10, window_bounds = array<i64: 1, 2040>}, {pipeline_mode = #tpu.pipeline_mode<synchronous>, transform_indices = @transform_11, window_bounds = array<i64: 2040, 9>}, {pipeline_mode = #tpu.pipeline_mode<synchronous>, transform_indices = @transform_12, window_bounds = array<i64: 1, 9>}, {transform_indices = @transform_13, window_bounds = array<i64: 8, 9>}]} {
    %c0 = arith.constant 0 : index
    %c0_0 = arith.constant 0 : index
    %0 = vector.load %arg1[%c0, %c0_0] : memref<8x256xf32, #tpu.memory_space<vmem>>, vector<8x256xf32>
    %c0_1 = arith.constant 0 : index
    %c0_2 = arith.constant 0 : index
    %1 = vector.load %arg2[%c0_1, %c0_2] : memref<256x1920xf32, #tpu.memory_space<vmem>>, vector<256x1920xf32>
    %cst = arith.constant dense<0.000000e+00> : vector<8x1920xf32>
    %2 = tpu.matmul %0, %1, %cst {dimension_numbers = #tpu.dot_dimension_numbers<[1], [0], [0], [1], [0, 0, 1, 1], [], []>} : vector<8x256xf32>, vector<256x1920xf32>, vector<8x1920xf32> -> vector<8x1920xf32>
    %c0_3 = arith.constant 0 : index
    %c0_4 = arith.constant 0 : index
    %3 = vector.load %arg3[%c0_3, %c0_4] : memref<1x1920xf32, #tpu.memory_space<vmem>>, vector<1x1920xf32>
    %4 = vector.broadcast %3 : vector<1x1920xf32> to vector<8x1920xf32>
    %5 = arith.addf %2, %4 : vector<8x1920xf32>
    %cst_5 = arith.constant 0.000000e+00 : f32
    %6 = vector.broadcast %cst_5 : f32 to vector<8x1920xf32>
    %7 = arith.maximumf %5, %6 : vector<8x1920xf32>
    %c0_6 = arith.constant 0 : index
    %c0_7 = arith.constant 0 : index
    %8 = vector.load %arg4[%c0_6, %c0_7] : memref<1920x416xf32, #tpu.memory_space<vmem>>, vector<1920x416xf32>
    %cst_8 = arith.constant dense<0.000000e+00> : vector<8x416xf32>
    %9 = tpu.matmul %7, %8, %cst_8 {dimension_numbers = #tpu.dot_dimension_numbers<[1], [0], [0], [1], [0, 0, 1, 1], [], []>} : vector<8x1920xf32>, vector<1920x416xf32>, vector<8x416xf32> -> vector<8x416xf32>
    %c0_9 = arith.constant 0 : index
    %c0_10 = arith.constant 0 : index
    %10 = vector.load %arg5[%c0_9, %c0_10] : memref<1x416xf32, #tpu.memory_space<vmem>>, vector<1x416xf32>
    %11 = vector.broadcast %10 : vector<1x416xf32> to vector<8x416xf32>
    %12 = arith.addf %9, %11 : vector<8x416xf32>
    %cst_11 = arith.constant 0.000000e+00 : f32
    %13 = vector.broadcast %cst_11 : f32 to vector<8x416xf32>
    %14 = arith.maximumf %12, %13 : vector<8x416xf32>
    %c0_12 = arith.constant 0 : index
    %c0_13 = arith.constant 0 : index
    %15 = vector.load %arg6[%c0_12, %c0_13] : memref<416x176xf32, #tpu.memory_space<vmem>>, vector<416x176xf32>
    %cst_14 = arith.constant dense<0.000000e+00> : vector<8x176xf32>
    %16 = tpu.matmul %14, %15, %cst_14 {dimension_numbers = #tpu.dot_dimension_numbers<[1], [0], [0], [1], [0, 0, 1, 1], [], []>} : vector<8x416xf32>, vector<416x176xf32>, vector<8x176xf32> -> vector<8x176xf32>
    %c0_15 = arith.constant 0 : index
    %c0_16 = arith.constant 0 : index
    %17 = vector.load %arg7[%c0_15, %c0_16] : memref<1x176xf32, #tpu.memory_space<vmem>>, vector<1x176xf32>
    %18 = vector.broadcast %17 : vector<1x176xf32> to vector<8x176xf32>
    %19 = arith.addf %16, %18 : vector<8x176xf32>
    %cst_17 = arith.constant 0.000000e+00 : f32
    %20 = vector.broadcast %cst_17 : f32 to vector<8x176xf32>
    %21 = arith.maximumf %19, %20 : vector<8x176xf32>
    %c0_18 = arith.constant 0 : index
    %c0_19 = arith.constant 0 : index
    %22 = vector.load %arg8[%c0_18, %c0_19] : memref<176x72xf32, #tpu.memory_space<vmem>>, vector<176x72xf32>
    %cst_20 = arith.constant dense<0.000000e+00> : vector<8x72xf32>
    %23 = tpu.matmul %21, %22, %cst_20 {dimension_numbers = #tpu.dot_dimension_numbers<[1], [0], [0], [1], [0, 0, 1, 1], [], []>} : vector<8x176xf32>, vector<176x72xf32>, vector<8x72xf32> -> vector<8x72xf32>
    %c0_21 = arith.constant 0 : index
    %c0_22 = arith.constant 0 : index
    %24 = vector.load %arg9[%c0_21, %c0_22] : memref<1x72xf32, #tpu.memory_space<vmem>>, vector<1x72xf32>
    %25 = vector.broadcast %24 : vector<1x72xf32> to vector<8x72xf32>
    %26 = arith.addf %23, %25 : vector<8x72xf32>
    %cst_23 = arith.constant 0.000000e+00 : f32
    %27 = vector.broadcast %cst_23 : f32 to vector<8x72xf32>
    %28 = arith.maximumf %26, %27 : vector<8x72xf32>
    %c0_24 = arith.constant 0 : index
    %c0_25 = arith.constant 0 : index
    %29 = vector.load %arg10[%c0_24, %c0_25] : memref<72x2040xf32, #tpu.memory_space<vmem>>, vector<72x2040xf32>
    %cst_26 = arith.constant dense<0.000000e+00> : vector<8x2040xf32>
    %30 = tpu.matmul %28, %29, %cst_26 {dimension_numbers = #tpu.dot_dimension_numbers<[1], [0], [0], [1], [0, 0, 1, 1], [], []>} : vector<8x72xf32>, vector<72x2040xf32>, vector<8x2040xf32> -> vector<8x2040xf32>
    %c0_27 = arith.constant 0 : index
    %c0_28 = arith.constant 0 : index
    %31 = vector.load %arg11[%c0_27, %c0_28] : memref<1x2040xf32, #tpu.memory_space<vmem>>, vector<1x2040xf32>
    %32 = vector.broadcast %31 : vector<1x2040xf32> to vector<8x2040xf32>
    %33 = arith.addf %30, %32 : vector<8x2040xf32>
    %cst_29 = arith.constant 0.000000e+00 : f32
    %34 = vector.broadcast %cst_29 : f32 to vector<8x2040xf32>
    %35 = arith.maximumf %33, %34 : vector<8x2040xf32>
    %c0_30 = arith.constant 0 : index
    %c0_31 = arith.constant 0 : index
    %36 = vector.load %arg12[%c0_30, %c0_31] : memref<2040x9xf32, #tpu.memory_space<vmem>>, vector<2040x9xf32>
    %cst_32 = arith.constant dense<0.000000e+00> : vector<8x9xf32>
    %37 = tpu.matmul %35, %36, %cst_32 {dimension_numbers = #tpu.dot_dimension_numbers<[1], [0], [0], [1], [0, 0, 1, 1], [], []>} : vector<8x2040xf32>, vector<2040x9xf32>, vector<8x9xf32> -> vector<8x9xf32>
    %c0_33 = arith.constant 0 : index
    %c0_34 = arith.constant 0 : index
    %38 = vector.load %arg13[%c0_33, %c0_34] : memref<1x9xf32, #tpu.memory_space<vmem>>, vector<1x9xf32>
    %39 = vector.broadcast %38 : vector<1x9xf32> to vector<8x9xf32>
    %40 = arith.addf %37, %39 : vector<8x9xf32>
    %c0_35 = arith.constant 0 : index
    %c0_36 = arith.constant 0 : index
    %41 = vector.load %arg14[%c0_35, %c0_36] : memref<8x9xf32, #tpu.memory_space<vmem>>, vector<8x9xf32>
    tpu.vector_store %arg14[%c0_35, %c0_36], %40 {strides = array<i32>} : memref<8x9xf32, #tpu.memory_space<vmem>>, vector<8x9xf32>,
    return
  }
  func.func @transform_0(%arg0: i32) -> (i32, i32) {
    %c0_i32 = arith.constant 0 : i32
    %c0_i32_0 = arith.constant 0 : i32
    return %arg0, %c0_i32 : i32, i32
  }
  func.func @transform_1(%arg0: i32) -> (i32, i32) {
    %c0_i32 = arith.constant 0 : i32
    %c0_i32_0 = arith.constant 0 : i32
    %c0_i32_1 = arith.constant 0 : i32
    return %c0_i32, %c0_i32_0 : i32, i32
  }
  func.func @transform_2(%arg0: i32) -> (i32, i32) {
    %c0_i32 = arith.constant 0 : i32
    %c0_i32_0 = arith.constant 0 : i32
    %c0_i32_1 = arith.constant 0 : i32
    return %c0_i32, %c0_i32_0 : i32, i32
  }
  func.func @transform_3(%arg0: i32) -> (i32, i32) {
    %c0_i32 = arith.constant 0 : i32
    %c0_i32_0 = arith.constant 0 : i32
    %c0_i32_1 = arith.constant 0 : i32
    return %c0_i32, %c0_i32_0 : i32, i32
  }
  func.func @transform_4(%arg0: i32) -> (i32, i32) {
    %c0_i32 = arith.constant 0 : i32
    %c0_i32_0 = arith.constant 0 : i32
    %c0_i32_1 = arith.constant 0 : i32
    return %c0_i32, %c0_i32_0 : i32, i32
  }
  func.func @transform_5(%arg0: i32) -> (i32, i32) {
    %c0_i32 = arith.constant 0 : i32
    %c0_i32_0 = arith.constant 0 : i32
    %c0_i32_1 = arith.constant 0 : i32
    return %c0_i32, %c0_i32_0 : i32, i32
  }
  func.func @transform_6(%arg0: i32) -> (i32, i32) {
    %c0_i32 = arith.constant 0 : i32
    %c0_i32_0 = arith.constant 0 : i32
    %c0_i32_1 = arith.constant 0 : i32
    return %c0_i32, %c0_i32_0 : i32, i32
  }
  func.func @transform_7(%arg0: i32) -> (i32, i32) {
    %c0_i32 = arith.constant 0 : i32
    %c0_i32_0 = arith.constant 0 : i32
    %c0_i32_1 = arith.constant 0 : i32
    return %c0_i32, %c0_i32_0 : i32, i32
  }
  func.func @transform_8(%arg0: i32) -> (i32, i32) {
    %c0_i32 = arith.constant 0 : i32
    %c0_i32_0 = arith.constant 0 : i32
    %c0_i32_1 = arith.constant 0 : i32
    return %c0_i32, %c0_i32_0 : i32, i32
  }
  func.func @transform_9(%arg0: i32) -> (i32, i32) {
    %c0_i32 = arith.constant 0 : i32
    %c0_i32_0 = arith.constant 0 : i32
    %c0_i32_1 = arith.constant 0 : i32
    return %c0_i32, %c0_i32_0 : i32, i32
  }
  func.func @transform_10(%arg0: i32) -> (i32, i32) {
    %c0_i32 = arith.constant 0 : i32
    %c0_i32_0 = arith.constant 0 : i32
    %c0_i32_1 = arith.constant 0 : i32
    return %c0_i32, %c0_i32_0 : i32, i32
  }
  func.func @transform_11(%arg0: i32) -> (i32, i32) {
    %c0_i32 = arith.constant 0 : i32
    %c0_i32_0 = arith.constant 0 : i32
    %c0_i32_1 = arith.constant 0 : i32
    return %c0_i32, %c0_i32_0 : i32, i32
  }
  func.func @transform_12(%arg0: i32) -> (i32, i32) {
    %c0_i32 = arith.constant 0 : i32
    %c0_i32_0 = arith.constant 0 : i32
    %c0_i32_1 = arith.constant 0 : i32
    return %c0_i32, %c0_i32_0 : i32, i32
  }
  func.func @transform_13(%arg0: i32) -> (i32, i32) {
    %c0_i32 = arith.constant 0 : i32
    %c0_i32_0 = arith.constant 0 : i32
    return %arg0, %c0_i32 : i32, i32
  }
}

</mosaic_0001>

<llo_original>
// kernel: net_forward.1
$region0: #{net_forward.1}
  #allocation0 [shape = 'u32[]', space=smem, size = 0x4, offset = 0x4, fixed_abs, tag = 'smem constant byte address 0x4 - core index']
  #allocation1 [shape = 'u32[72,128]{1,0:T(1,128)}', space=vmem, size = 0x9000, scoped, tag = 'internal scratch']
  %s0 = inlined_call_operand.vmem [shape: f32[8,256], index: 0, kind: input, shape index: {}]
  %s1 = inlined_call_operand.vmem [shape: f32[256,1920], index: 1, kind: input, shape index: {}]
  %s2 = inlined_call_operand.vmem [shape: f32[1,1920], index: 2, kind: input, shape index: {}]
  %s3 = inlined_call_operand.vmem [shape: f32[1920,416], index: 3, kind: input, shape index: {}]
  %s4 = inlined_call_operand.vmem [shape: f32[1,416], index: 4, kind: input, shape index: {}]
  %s5 = inlined_call_operand.vmem [shape: f32[416,176], index: 5, kind: input, shape index: {}]
  %s6 = inlined_call_operand.vmem [shape: f32[1,176], index: 6, kind: input, shape index: {}]
  %s7 = inlined_call_operand.vmem [shape: f32[176,72], index: 7, kind: input, shape index: {}]
  %s8 = inlined_call_operand.vmem [shape: f32[1,72], index: 8, kind: input, shape index: {}]
  %s9 = inlined_call_operand.vmem [shape: f32[72,2040], index: 9, kind: input, shape index: {}]
  %s10 = inlined_call_operand.vmem [shape: f32[1,2040], index: 10, kind: input, shape index: {}]
  %s11 = inlined_call_operand.vmem [shape: f32[2040,9], index: 11, kind: input, shape index: {}]
  %s12 = inlined_call_operand.vmem [shape: f32[1,9], index: 12, kind: input, shape index: {}]
  %s13 = inlined_call_operand.vmem [shape: f32[8,9], index: 13, kind: output, shape index: {}]
  %s14 = sld [smem:[#allocation0]]
  $region62: #{net_forward.1} parent=0
    _
  %s16 = ssub.s32 1, %s14
  %s17 = scalar_select 0, %s16, %s14
  // Predicated region
  $region2: #{net_forward.1} parent=0 // pred_check
    _
  $region3: #{net_forward.1} parent=0 // pred_check_branch
    %19 = sbr.rel (0) target = $region5
  $region4: #{net_forward.1} parent=0 // pred_region
    _
  $region5: #{net_forward.1} parent=0 // pred_fallthru
    _
  // Predicated region
  $region6: #{net_forward.1} parent=0 // pred_check
    _
  $region7: #{net_forward.1} parent=0 // pred_check_branch
    %21 = sbr.rel (0) target = $region9
  $region8: #{net_forward.1} parent=0 // pred_region
    _
  $region9: #{net_forward.1} parent=0 // pred_fallthru
    _
  // Predicated region
  $region10: #{net_forward.1} parent=0 // pred_check
    _
  $region11: #{net_forward.1} parent=0 // pred_check_branch
    %23 = sbr.rel (0) target = $region13
  $region12: #{net_forward.1} parent=0 // pred_region
    _
  $region13: #{net_forward.1} parent=0 // pred_fallthru
    _
  // Predicated region
  $region14: #{net_forward.1} parent=0 // pred_check
    _
  $region15: #{net_forward.1} parent=0 // pred_check_branch
    %25 = sbr.rel (0) target = $region17
  $region16: #{net_forward.1} parent=0 // pred_region
    _
  $region17: #{net_forward.1} parent=0 // pred_fallthru
    _
  // Predicated region
  $region18: #{net_forward.1} parent=0 // pred_check
    _
  $region19: #{net_forward.1} parent=0 // pred_check_branch
    %27 = sbr.rel (0) target = $region21
  $region20: #{net_forward.1} parent=0 // pred_region
    _
  $region21: #{net_forward.1} parent=0 // pred_fallthru
    _
  // Predicated region
  $region22: #{net_forward.1} parent=0 // pred_check
    _
  $region23: #{net_forward.1} parent=0 // pred_check_branch
    %29 = sbr.rel (0) target = $region25
  $region24: #{net_forward.1} parent=0 // pred_region
    _
  $region25: #{net_forward.1} parent=0 // pred_fallthru
    _
  // Predicated region
  $region26: #{net_forward.1} parent=0 // pred_check
    _
  $region27: #{net_forward.1} parent=0 // pred_check_branch
    %31 = sbr.rel (0) target = $region29
  $region28: #{net_forward.1} parent=0 // pred_region
    _
  $region29: #{net_forward.1} parent=0 // pred_fallthru
    _
  // Predicated region
  $region30: #{net_forward.1} parent=0 // pred_check
    _
  $region31: #{net_forward.1} parent=0 // pred_check_branch
    %33 = sbr.rel (0) target = $region33
  $region32: #{net_forward.1} parent=0 // pred_region
    _
  $region33: #{net_forward.1} parent=0 // pred_fallthru
    _
  // Predicated region
  $region34: #{net_forward.1} parent=0 // pred_check
    _
  $region35: #{net_forward.1} parent=0 // pred_check_branch
    %35 = sbr.rel (0) target = $region37
  $region36: #{net_forward.1} parent=0 // pred_region
    _
  $region37: #{net_forward.1} parent=0 // pred_fallthru
    _
  // Predicated region
  $region38: #{net_forward.1} parent=0 // pred_check
    _
  $region39: #{net_forward.1} parent=0 // pred_check_branch
    %37 = sbr.rel (0) target = $region41
  $region40: #{net_forward.1} parent=0 // pred_region
    _
  $region41: #{net_forward.1} parent=0 // pred_fallthru
    _
  // Predicated region
  $region42: #{net_forward.1} parent=0 // pred_check
    _
  $region43: #{net_forward.1} parent=0 // pred_check_branch
    %39 = sbr.rel (0) target = $region45
  $region44: #{net_forward.1} parent=0 // pred_region
    _
  $region45: #{net_forward.1} parent=0 // pred_fallthru
    _
  // Predicated region
  $region46: #{net_forward.1} parent=0 // pred_check
    _
  $region47: #{net_forward.1} parent=0 // pred_check_branch
    %41 = sbr.rel (0) target = $region49
  $region48: #{net_forward.1} parent=0 // pred_region
    _
  $region49: #{net_forward.1} parent=0 // pred_fallthru
    _
  // Predicated region
  $region50: #{net_forward.1} parent=0 // pred_check
    _
  $region51: #{net_forward.1} parent=0 // pred_check_branch
    %43 = sbr.rel (0) target = $region53
  $region52: #{net_forward.1} parent=0 // pred_region
    _
  $region53: #{net_forward.1} parent=0 // pred_fallthru
    _
  %v44 = vld [vmem:[%s0] sm:$0xff]
  %v45 = vld [vmem:[%s0 + $0x8] sm:$0xff]
  %v46 = vld [vmem:[%s1] sm:$0xff]
  %v47 = vld [vmem:[%s1 + $0x8] sm:$0xff]
  %v48 = vld [vmem:[%s1 + $0x10] sm:$0xff]
  %v49 = vld [vmem:[%s1 + $0x18] sm:$0xff]
  %v50 = vld [vmem:[%s1 + $0x20] sm:$0xff]
  %v51 = vld [vmem:[%s1 + $0x28] sm:$0xff]
  %v52 = vld [vmem:[%s1 + $0x30] sm:$0xff]
  %v53 = vld [vmem:[%s1 + $0x38] sm:$0xff]
  %v54 = vld [vmem:[%s1 + $0x40] sm:$0xff]
  %v55 = vld [vmem:[%s1 + $0x48] sm:$0xff]
  %v56 = vld [vmem:[%s1 + $0x50] sm:$0xff]
  %v57 = vld [vmem:[%s1 + $0x58] sm:$0xff]
  %v58 = vld [vmem:[%s1 + $0x60] sm:$0xff]
  %v59 = vld [vmem:[%s1 + $0x68] sm:$0xff]
  %v60 = vld [vmem:[%s1 + $0x70] sm:$0xff]
  %v61 = vld [vmem:[%s1 + $0x78] sm:$0xff]
  %v62 = vld [vmem:[%s1 + $0x80] sm:$0xff]
  %v63 = vld [vmem:[%s1 + $0x88] sm:$0xff]
  %v64 = vld [vmem:[%s1 + $0x90] sm:$0xff]
  %v65 = vld [vmem:[%s1 + $0x98] sm:$0xff]
  %v66 = vld [vmem:[%s1 + $0xa0] sm:$0xff]
  %v67 = vld [vmem:[%s1 + $0xa8] sm:$0xff]
  %v68 = vld [vmem:[%s1 + $0xb0] sm:$0xff]
  %v69 = vld [vmem:[%s1 + $0xb8] sm:$0xff]
  %v70 = vld [vmem:[%s1 + $0xc0] sm:$0xff]
  %v71 = vld [vmem:[%s1 + $0xc8] sm:$0xff]
  %v72 = vld [vmem:[%s1 + $0xd0] sm:$0xff]
  %v73 = vld [vmem:[%s1 + $0xd8] sm:$0xff]
  %v74 = vld [vmem:[%s1 + $0xe0] sm:$0xff]
  %v75 = vld [vmem:[%s1 + $0xe8] sm:$0xff]
  %v76 = vld [vmem:[%s1 + $0xf0] sm:$0xff]
  %v77 = vld [vmem:[%s1 + $0xf8] sm:$0xff]
  %v78 = vld [vmem:[%s1 + $0x100] sm:$0xff]
  %v79 = vld [vmem:[%s1 + $0x108] sm:$0xff]
  %v80 = vld [vmem:[%s1 + $0x110] sm:$0xff]
  %v81 = vld [vmem:[%s1 + $0x118] sm:$0xff]
  %v82 = vld [vmem:[%s1 + $0x120] sm:$0xff]
  %v83 = vld [vmem:[%s1 + $0x128] sm:$0xff]
  %v84 = vld [vmem:[%s1 + $0x130] sm:$0xff]
  %v85 = vld [vmem:[%s1 + $0x138] sm:$0xff]
  %v86 = vld [vmem:[%s1 + $0x140] sm:$0xff]
  %v87 = vld [vmem:[%s1 + $0x148] sm:$0xff]
  %v88 = vld [vmem:[%s1 + $0x150] sm:$0xff]
  %v89 = vld [vmem:[%s1 + $0x158] sm:$0xff]
  %v90 = vld [vmem:[%s1 + $0x160] sm:$0xff]
  %v91 = vld [vmem:[%s1 + $0x168] sm:$0xff]
  %v92 = vld [vmem:[%s1 + $0x170] sm:$0xff]
  %v93 = vld [vmem:[%s1 + $0x178] sm:$0xff]
  %v94 = vld [vmem:[%s1 + $0x180] sm:$0xff]
  %v95 = vld [vmem:[%s1 + $0x188] sm:$0xff]
  %v96 = vld [vmem:[%s1 + $0x190] sm:$0xff]
  %v97 = vld [vmem:[%s1 + $0x198] sm:$0xff]
  %v98 = vld [vmem:[%s1 + $0x1a0] sm:$0xff]
  %v99 = vld [vmem:[%s1 + $0x1a8] sm:$0xff]
  %v100 = vld [vmem:[%s1 + $0x1b0] sm:$0xff]
  %v101 = vld [vmem:[%s1 + $0x1b8] sm:$0xff]
  %v102 = vld [vmem:[%s1 + $0x1c0] sm:$0xff]
  %v103 = vld [vmem:[%s1 + $0x1c8] sm:$0xff]
  %v104 = vld [vmem:[%s1 + $0x1d0] sm:$0xff]
  %v105 = vld [vmem:[%s1 + $0x1d8] sm:$0xff]
  %v106 = vld [vmem:[%s1 + $0x1e0] sm:$0xff]
  %v107 = vld [vmem:[%s1 + $0x1e8] sm:$0xff]
  %v108 = vld [vmem:[%s1 + $0x1f0] sm:$0xff]
  %v109 = vld [vmem:[%s1 + $0x1f8] sm:$0xff]
  %v110 = vld [vmem:[%s1 + $0x200] sm:$0xff]
  %v111 = vld [vmem:[%s1 + $0x208] sm:$0xff]
  %v112 = vld [vmem:[%s1 + $0x210] sm:$0xff]
  %v113 = vld [vmem:[%s1 + $0x218] sm:$0xff]
  %v114 = vld [vmem:[%s1 + $0x220] sm:$0xff]
  %v115 = vld [vmem:[%s1 + $0x228] sm:$0xff]
  %v116 = vld [vmem:[%s1 + $0x230] sm:$0xff]
  %v117 = vld [vmem:[%s1 + $0x238] sm:$0xff]
  %v118 = vld [vmem:[%s1 + $0x240] sm:$0xff]
  %v119 = vld [vmem:[%s1 + $0x248] sm:$0xff]
  %v120 = vld [vmem:[%s1 + $0x250] sm:$0xff]
  %v121 = vld [vmem:[%s1 + $0x258] sm:$0xff]
  %v122 = vld [vmem:[%s1 + $0x260] sm:$0xff]
  %v123 = vld [vmem:[%s1 + $0x268] sm:$0xff]
  %v124 = vld [vmem:[%s1 + $0x270] sm:$0xff]
  %v125 = vld [vmem:[%s1 + $0x278] sm:$0xff]
  %v126 = vld [vmem:[%s1 + $0x280] sm:$0xff]
  %v127 = vld [vmem:[%s1 + $0x288] sm:$0xff]
  %v128 = vld [vmem:[%s1 + $0x290] sm:$0xff]
  %v129 = vld [vmem:[%s1 + $0x298] sm:$0xff]
  %v130 = vld [vmem:[%s1 + $0x2a0] sm:$0xff]
  %v131 = vld [vmem:[%s1 + $0x2a8] sm:$0xff]
  %v132 = vld [vmem:[%s1 + $0x2b0] sm:$0xff]
  %v133 = vld [vmem:[%s1 + $0x2b8] sm:$0xff]
  %v134 = vld [vmem:[%s1 + $0x2c0] sm:$0xff]
  %v135 = vld [vmem:[%s1 + $0x2c8] sm:$0xff]
  %v136 = vld [vmem:[%s1 + $0x2d0] sm:$0xff]
  %v137 = vld [vmem:[%s1 + $0x2d8] sm:$0xff]
  %v138 = vld [vmem:[%s1 + $0x2e0] sm:$0xff]
  %v139 = vld [vmem:[%s1 + $0x2e8] sm:$0xff]
  %v140 = vld [vmem:[%s1 + $0x2f0] sm:$0xff]
  %v141 = vld [vmem:[%s1 + $0x2f8] sm:$0xff]
  %v142 = vld [vmem:[%s1 + $0x300] sm:$0xff]
  %v143 = vld [vmem:[%s1 + $0x308] sm:$0xff]
  %v144 = vld [vmem:[%s1 + $0x310] sm:$0xff]
  %v145 = vld [vmem:[%s1 + $0x318] sm:$0xff]
  %v146 = vld [vmem:[%s1 + $0x320] sm:$0xff]
  %v147 = vld [vmem:[%s1 + $0x328] sm:$0xff]
  %v148 = vld [vmem:[%s1 + $0x330] sm:$0xff]
  %v149 = vld [vmem:[%s1 + $0x338] sm:$0xff]
  %v150 = vld [vmem:[%s1 + $0x340] sm:$0xff]
  %v151 = vld [vmem:[%s1 + $0x348] sm:$0xff]
  %v152 = vld [vmem:[%s1 + $0x350] sm:$0xff]
  %v153 = vld [vmem:[%s1 + $0x358] sm:$0xff]
  %v154 = vld [vmem:[%s1 + $0x360] sm:$0xff]
  %v155 = vld [vmem:[%s1 + $0x368] sm:$0xff]
  %v156 = vld [vmem:[%s1 + $0x370] sm:$0xff]
  %v157 = vld [vmem:[%s1 + $0x378] sm:$0xff]
  %v158 = vld [vmem:[%s1 + $0x380] sm:$0xff]
  %v159 = vld [vmem:[%s1 + $0x388] sm:$0xff]
  %v160 = vld [vmem:[%s1 + $0x390] sm:$0xff]
  %v161 = vld [vmem:[%s1 + $0x398] sm:$0xff]
  %v162 = vld [vmem:[%s1 + $0x3a0] sm:$0xff]
  %v163 = vld [vmem:[%s1 + $0x3a8] sm:$0xff]
  %v164 = vld [vmem:[%s1 + $0x3b0] sm:$0xff]
  %v165 = vld [vmem:[%s1 + $0x3b8] sm:$0xff]
  %v166 = vld [vmem:[%s1 + $0x3c0] sm:$0xff]
  %v167 = vld [vmem:[%s1 + $0x3c8] sm:$0xff]
  %v168 = vld [vmem:[%s1 + $0x3d0] sm:$0xff]
  %v169 = vld [vmem:[%s1 + $0x3d8] sm:$0xff]
  %v170 = vld [vmem:[%s1 + $0x3e0] sm:$0xff]
  %v171 = vld [vmem:[%s1 + $0x3e8] sm:$0xff]
  %v172 = vld [vmem:[%s1 + $0x3f0] sm:$0xff]
  %v173 = vld [vmem:[%s1 + $0x3f8] sm:$0xff]
  %v174 = vld [vmem:[%s1 + $0x400] sm:$0xff]
  %v175 = vld [vmem:[%s1 + $0x408] sm:$0xff]
  %v176 = vld [vmem:[%s1 + $0x410] sm:$0xff]
  %v177 = vld [vmem:[%s1 + $0x418] sm:$0xff]
  %v178 = vld [vmem:[%s1 + $0x420] sm:$0xff]
  %v179 = vld [vmem:[%s1 + $0x428] sm:$0xff]
  %v180 = vld [vmem:[%s1 + $0x430] sm:$0xff]
  %v181 = vld [vmem:[%s1 + $0x438] sm:$0xff]
  %v182 = vld [vmem:[%s1 + $0x440] sm:$0xff]
  %v183 = vld [vmem:[%s1 + $0x448] sm:$0xff]
  %v184 = vld [vmem:[%s1 + $0x450] sm:$0xff]
  %v185 = vld [vmem:[%s1 + $0x458] sm:$0xff]
  %v186 = vld [vmem:[%s1 + $0x460] sm:$0xff]
  %v187 = vld [vmem:[%s1 + $0x468] sm:$0xff]
  %v188 = vld [vmem:[%s1 + $0x470] sm:$0xff]
  %v189 = vld [vmem:[%s1 + $0x478] sm:$0xff]
  %v190 = vld [vmem:[%s1 + $0x480] sm:$0xff]
  %v191 = vld [vmem:[%s1 + $0x488] sm:$0xff]
  %v192 = vld [vmem:[%s1 + $0x490] sm:$0xff]
  %v193 = vld [vmem:[%s1 + $0x498] sm:$0xff]
  %v194 = vld [vmem:[%s1 + $0x4a0] sm:$0xff]
  %v195 = vld [vmem:[%s1 + $0x4a8] sm:$0xff]
  %v196 = vld [vmem:[%s1 + $0x4b0] sm:$0xff]
  %v197 = vld [vmem:[%s1 + $0x4b8] sm:$0xff]
  %v198 = vld [vmem:[%s1 + $0x4c0] sm:$0xff]
  %v199 = vld [vmem:[%s1 + $0x4c8] sm:$0xff]
  %v200 = vld [vmem:[%s1 + $0x4d0] sm:$0xff]
  %v201 = vld [vmem:[%s1 + $0x4d8] sm:$0xff]
  %v202 = vld [vmem:[%s1 + $0x4e0] sm:$0xff]
  %v203 = vld [vmem:[%s1 + $0x4e8] sm:$0xff]
  %v204 = vld [vmem:[%s1 + $0x4f0] sm:$0xff]
  %v205 = vld [vmem:[%s1 + $0x4f8] sm:$0xff]
  %v206 = vld [vmem:[%s1 + $0x500] sm:$0xff]
  %v207 = vld [vmem:[%s1 + $0x508] sm:$0xff]
  %v208 = vld [vmem:[%s1 + $0x510] sm:$0xff]
  %v209 = vld [vmem:[%s1 + $0x518] sm:$0xff]
  %v210 = vld [vmem:[%s1 + $0x520] sm:$0xff]
  %v211 = vld [vmem:[%s1 + $0x528] sm:$0xff]
  %v212 = vld [vmem:[%s1 + $0x530] sm:$0xff]
  %v213 = vld [vmem:[%s1 + $0x538] sm:$0xff]
  %v214 = vld [vmem:[%s1 + $0x540] sm:$0xff]
  %v215 = vld [vmem:[%s1 + $0x548] sm:$0xff]
  %v216 = vld [vmem:[%s1 + $0x550] sm:$0xff]
  %v217 = vld [vmem:[%s1 + $0x558] sm:$0xff]
  %v218 = vld [vmem:[%s1 + $0x560] sm:$0xff]
  %v219 = vld [vmem:[%s1 + $0x568] sm:$0xff]
  %v220 = vld [vmem:[%s1 + $0x570] sm:$0xff]
  %v221 = vld [vmem:[%s1 + $0x578] sm:$0xff]
  %v222 = vld [vmem:[%s1 + $0x580] sm:$0xff]
  %v223 = vld [vmem:[%s1 + $0x588] sm:$0xff]
  %v224 = vld [vmem:[%s1 + $0x590] sm:$0xff]
  %v225 = vld [vmem:[%s1 + $0x598] sm:$0xff]
  %v226 = vld [vmem:[%s1 + $0x5a0] sm:$0xff]
  %v227 = vld [vmem:[%s1 + $0x5a8] sm:$0xff]
  %v228 = vld [vmem:[%s1 + $0x5b0] sm:$0xff]
  %v229 = vld [vmem:[%s1 + $0x5b8] sm:$0xff]
  %v230 = vld [vmem:[%s1 + $0x5c0] sm:$0xff]
  %v231 = vld [vmem:[%s1 + $0x5c8] sm:$0xff]
  %v232 = vld [vmem:[%s1 + $0x5d0] sm:$0xff]
  %v233 = vld [vmem:[%s1 + $0x5d8] sm:$0xff]
  %v234 = vld [vmem:[%s1 + $0x5e0] sm:$0xff]
  %v235 = vld [vmem:[%s1 + $0x5e8] sm:$0xff]
  %v236 = vld [vmem:[%s1 + $0x5f0] sm:$0xff]
  %v237 = vld [vmem:[%s1 + $0x5f8] sm:$0xff]
  %v238 = vld [vmem:[%s1 + $0x600] sm:$0xff]
  %v239 = vld [vmem:[%s1 + $0x608] sm:$0xff]
  %v240 = vld [vmem:[%s1 + $0x610] sm:$0xff]
  %v241 = vld [vmem:[%s1 + $0x618] sm:$0xff]
  %v242 = vld [vmem:[%s1 + $0x620] sm:$0xff]
  %v243 = vld [vmem:[%s1 + $0x628] sm:$0xff]
  %v244 = vld [vmem:[%s1 + $0x630] sm:$0xff]
  %v245 = vld [vmem:[%s1 + $0x638] sm:$0xff]
  %v246 = vld [vmem:[%s1 + $0x640] sm:$0xff]
  %v247 = vld [vmem:[%s1 + $0x648] sm:$0xff]
  %v248 = vld [vmem:[%s1 + $0x650] sm:$0xff]
  %v249 = vld [vmem:[%s1 + $0x658] sm:$0xff]
  %v250 = vld [vmem:[%s1 + $0x660] sm:$0xff]
  %v251 = vld [vmem:[%s1 + $0x668] sm:$0xff]
  %v252 = vld [vmem:[%s1 + $0x670] sm:$0xff]
  %v253 = vld [vmem:[%s1 + $0x678] sm:$0xff]
  %v254 = vld [vmem:[%s1 + $0x680] sm:$0xff]
  %v255 = vld [vmem:[%s1 + $0x688] sm:$0xff]
  %v256 = vld [vmem:[%s1 + $0x690] sm:$0xff]
  %v257 = vld [vmem:[%s1 + $0x698] sm:$0xff]
  %v258 = vld [vmem:[%s1 + $0x6a0] sm:$0xff]
  %v259 = vld [vmem:[%s1 + $0x6a8] sm:$0xff]
  %v260 = vld [vmem:[%s1 + $0x6b0] sm:$0xff]
  %v261 = vld [vmem:[%s1 + $0x6b8] sm:$0xff]
  %v262 = vld [vmem:[%s1 + $0x6c0] sm:$0xff]
  %v263 = vld [vmem:[%s1 + $0x6c8] sm:$0xff]
  %v264 = vld [vmem:[%s1 + $0x6d0] sm:$0xff]
  %v265 = vld [vmem:[%s1 + $0x6d8] sm:$0xff]
  %v266 = vld [vmem:[%s1 + $0x6e0] sm:$0xff]
  %v267 = vld [vmem:[%s1 + $0x6e8] sm:$0xff]
  %v268 = vld [vmem:[%s1 + $0x6f0] sm:$0xff]
  %v269 = vld [vmem:[%s1 + $0x6f8] sm:$0xff]
  %v270 = vld [vmem:[%s1 + $0x700] sm:$0xff]
  %v271 = vld [vmem:[%s1 + $0x708] sm:$0xff]
  %v272 = vld [vmem:[%s1 + $0x710] sm:$0xff]
  %v273 = vld [vmem:[%s1 + $0x718] sm:$0xff]
  %v274 = vld [vmem:[%s1 + $0x720] sm:$0xff]
  %v275 = vld [vmem:[%s1 + $0x728] sm:$0xff]
  %v276 = vld [vmem:[%s1 + $0x730] sm:$0xff]
  %v277 = vld [vmem:[%s1 + $0x738] sm:$0xff]
  %v278 = vld [vmem:[%s1 + $0x740] sm:$0xff]
  %v279 = vld [vmem:[%s1 + $0x748] sm:$0xff]
  %v280 = vld [vmem:[%s1 + $0x750] sm:$0xff]
  %v281 = vld [vmem:[%s1 + $0x758] sm:$0xff]
  %v282 = vld [vmem:[%s1 + $0x760] sm:$0xff]
  %v283 = vld [vmem:[%s1 + $0x768] sm:$0xff]
  %v284 = vld [vmem:[%s1 + $0x770] sm:$0xff]
  %v285 = vld [vmem:[%s1 + $0x778] sm:$0xff]
  %v286 = vld [vmem:[%s1 + $0x780] sm:$0xff]
  %v287 = vld [vmem:[%s1 + $0x788] sm:$0xff]
  %v288 = vld [vmem:[%s1 + $0x790] sm:$0xff]
  %v289 = vld [vmem:[%s1 + $0x798] sm:$0xff]
  %v290 = vld [vmem:[%s1 + $0x7a0] sm:$0xff]
  %v291 = vld [vmem:[%s1 + $0x7a8] sm:$0xff]
  %v292 = vld [vmem:[%s1 + $0x7b0] sm:$0xff]
  %v293 = vld [vmem:[%s1 + $0x7b8] sm:$0xff]
  %v294 = vld [vmem:[%s1 + $0x7c0] sm:$0xff]
  %v295 = vld [vmem:[%s1 + $0x7c8] sm:$0xff]
  %v296 = vld [vmem:[%s1 + $0x7d0] sm:$0xff]
  %v297 = vld [vmem:[%s1 + $0x7d8] sm:$0xff]
  %v298 = vld [vmem:[%s1 + $0x7e0] sm:$0xff]
  %v299 = vld [vmem:[%s1 + $0x7e8] sm:$0xff]
  %v300 = vld [vmem:[%s1 + $0x7f0] sm:$0xff]
  %v301 = vld [vmem:[%s1 + $0x7f8] sm:$0xff]
  %v302 = vld [vmem:[%s1 + $0x800] sm:$0xff]
  %v303 = vld [vmem:[%s1 + $0x808] sm:$0xff]
  %v304 = vld [vmem:[%s1 + $0x810] sm:$0xff]
  %v305 = vld [vmem:[%s1 + $0x818] sm:$0xff]
  %v306 = vld [vmem:[%s1 + $0x820] sm:$0xff]
  %v307 = vld [vmem:[%s1 + $0x828] sm:$0xff]
  %v308 = vld [vmem:[%s1 + $0x830] sm:$0xff]
  %v309 = vld [vmem:[%s1 + $0x838] sm:$0xff]
  %v310 = vld [vmem:[%s1 + $0x840] sm:$0xff]
  %v311 = vld [vmem:[%s1 + $0x848] sm:$0xff]
  %v312 = vld [vmem:[%s1 + $0x850] sm:$0xff]
  %v313 = vld [vmem:[%s1 + $0x858] sm:$0xff]
  %v314 = vld [vmem:[%s1 + $0x860] sm:$0xff]
  %v315 = vld [vmem:[%s1 + $0x868] sm:$0xff]
  %v316 = vld [vmem:[%s1 + $0x870] sm:$0xff]
  %v317 = vld [vmem:[%s1 + $0x878] sm:$0xff]
  %v318 = vld [vmem:[%s1 + $0x880] sm:$0xff]
  %v319 = vld [vmem:[%s1 + $0x888] sm:$0xff]
  %v320 = vld [vmem:[%s1 + $0x890] sm:$0xff]
  %v321 = vld [vmem:[%s1 + $0x898] sm:$0xff]
  %v322 = vld [vmem:[%s1 + $0x8a0] sm:$0xff]
  %v323 = vld [vmem:[%s1 + $0x8a8] sm:$0xff]
  %v324 = vld [vmem:[%s1 + $0x8b0] sm:$0xff]
  %v325 = vld [vmem:[%s1 + $0x8b8] sm:$0xff]
  %v326 = vld [vmem:[%s1 + $0x8c0] sm:$0xff]
  %v327 = vld [vmem:[%s1 + $0x8c8] sm:$0xff]
  %v328 = vld [vmem:[%s1 + $0x8d0] sm:$0xff]
  %v329 = vld [vmem:[%s1 + $0x8d8] sm:$0xff]
  %v330 = vld [vmem:[%s1 + $0x8e0] sm:$0xff]
  %v331 = vld [vmem:[%s1 + $0x8e8] sm:$0xff]
  %v332 = vld [vmem:[%s1 + $0x8f0] sm:$0xff]
  %v333 = vld [vmem:[%s1 + $0x8f8] sm:$0xff]
  %v334 = vld [vmem:[%s1 + $0x900] sm:$0xff]
  %v335 = vld [vmem:[%s1 + $0x908] sm:$0xff]
  %v336 = vld [vmem:[%s1 + $0x910] sm:$0xff]
  %v337 = vld [vmem:[%s1 + $0x918] sm:$0xff]
  %v338 = vld [vmem:[%s1 + $0x920] sm:$0xff]
  %v339 = vld [vmem:[%s1 + $0x928] sm:$0xff]
  %v340 = vld [vmem:[%s1 + $0x930] sm:$0xff]
  %v341 = vld [vmem:[%s1 + $0x938] sm:$0xff]
  %v342 = vld [vmem:[%s1 + $0x940] sm:$0xff]
  %v343 = vld [vmem:[%s1 + $0x948] sm:$0xff]
  %v344 = vld [vmem:[%s1 + $0x950] sm:$0xff]
  %v345 = vld [vmem:[%s1 + $0x958] sm:$0xff]
  %v346 = vld [vmem:[%s1 + $0x960] sm:$0xff]
  %v347 = vld [vmem:[%s1 + $0x968] sm:$0xff]
  %v348 = vld [vmem:[%s1 + $0x970] sm:$0xff]
  %v349 = vld [vmem:[%s1 + $0x978] sm:$0xff]
  %v350 = vld [vmem:[%s1 + $0x980] sm:$0xff]
  %v351 = vld [vmem:[%s1 + $0x988] sm:$0xff]
  %v352 = vld [vmem:[%s1 + $0x990] sm:$0xff]
  %v353 = vld [vmem:[%s1 + $0x998] sm:$0xff]
  %v354 = vld [vmem:[%s1 + $0x9a0] sm:$0xff]
  %v355 = vld [vmem:[%s1 + $0x9a8] sm:$0xff]
  %v356 = vld [vmem:[%s1 + $0x9b0] sm:$0xff]
  %v357 = vld [vmem:[%s1 + $0x9b8] sm:$0xff]
  %v358 = vld [vmem:[%s1 + $0x9c0] sm:$0xff]
  %v359 = vld [vmem:[%s1 + $0x9c8] sm:$0xff]
  %v360 = vld [vmem:[%s1 + $0x9d0] sm:$0xff]
  %v361 = vld [vmem:[%s1 + $0x9d8] sm:$0xff]
  %v362 = vld [vmem:[%s1 + $0x9e0] sm:$0xff]
  %v363 = vld [vmem:[%s1 + $0x9e8] sm:$0xff]
  %v364 = vld [vmem:[%s1 + $0x9f0] sm:$0xff]
  %v365 = vld [vmem:[%s1 + $0x9f8] sm:$0xff]
  %v366 = vld [vmem:[%s1 + $0xa00] sm:$0xff]
  %v367 = vld [vmem:[%s1 + $0xa08] sm:$0xff]
  %v368 = vld [vmem:[%s1 + $0xa10] sm:$0xff]
  %v369 = vld [vmem:[%s1 + $0xa18] sm:$0xff]
  %v370 = vld [vmem:[%s1 + $0xa20] sm:$0xff]
  %v371 = vld [vmem:[%s1 + $0xa28] sm:$0xff]
  %v372 = vld [vmem:[%s1 + $0xa30] sm:$0xff]
  %v373 = vld [vmem:[%s1 + $0xa38] sm:$0xff]
  %v374 = vld [vmem:[%s1 + $0xa40] sm:$0xff]
  %v375 = vld [vmem:[%s1 + $0xa48] sm:$0xff]
  %v376 = vld [vmem:[%s1 + $0xa50] sm:$0xff]
  %v377 = vld [vmem:[%s1 + $0xa58] sm:$0xff]
  %v378 = vld [vmem:[%s1 + $0xa60] sm:$0xff]
  %v379 = vld [vmem:[%s1 + $0xa68] sm:$0xff]
  %v380 = vld [vmem:[%s1 + $0xa70] sm:$0xff]
  %v381 = vld [vmem:[%s1 + $0xa78] sm:$0xff]
  %v382 = vld [vmem:[%s1 + $0xa80] sm:$0xff]
  %v383 = vld [vmem:[%s1 + $0xa88] sm:$0xff]
  %v384 = vld [vmem:[%s1 + $0xa90] sm:$0xff]
  %v385 = vld [vmem:[%s1 + $0xa98] sm:$0xff]
  %v386 = vld [vmem:[%s1 + $0xaa0] sm:$0xff]
  %v387 = vld [vmem:[%s1 + $0xaa8] sm:$0xff]
  %v388 = vld [vmem:[%s1 + $0xab0] sm:$0xff]
  %v389 = vld [vmem:[%s1 + $0xab8] sm:$0xff]
  %v390 = vld [vmem:[%s1 + $0xac0] sm:$0xff]
  %v391 = vld [vmem:[%s1 + $0xac8] sm:$0xff]
  %v392 = vld [vmem:[%s1 + $0xad0] sm:$0xff]
  %v393 = vld [vmem:[%s1 + $0xad8] sm:$0xff]
  %v394 = vld [vmem:[%s1 + $0xae0] sm:$0xff]
  %v395 = vld [vmem:[%s1 + $0xae8] sm:$0xff]
  %v396 = vld [vmem:[%s1 + $0xaf0] sm:$0xff]
  %v397 = vld [vmem:[%s1 + $0xaf8] sm:$0xff]
  %v398 = vld [vmem:[%s1 + $0xb00] sm:$0xff]
  %v399 = vld [vmem:[%s1 + $0xb08] sm:$0xff]
  %v400 = vld [vmem:[%s1 + $0xb10] sm:$0xff]
  %v401 = vld [vmem:[%s1 + $0xb18] sm:$0xff]
  %v402 = vld [vmem:[%s1 + $0xb20] sm:$0xff]
  %v403 = vld [vmem:[%s1 + $0xb28] sm:$0xff]
  %v404 = vld [vmem:[%s1 + $0xb30] sm:$0xff]
  %v405 = vld [vmem:[%s1 + $0xb38] sm:$0xff]
  %v406 = vld [vmem:[%s1 + $0xb40] sm:$0xff]
  %v407 = vld [vmem:[%s1 + $0xb48] sm:$0xff]
  %v408 = vld [vmem:[%s1 + $0xb50] sm:$0xff]
  %v409 = vld [vmem:[%s1 + $0xb58] sm:$0xff]
  %v410 = vld [vmem:[%s1 + $0xb60] sm:$0xff]
  %v411 = vld [vmem:[%s1 + $0xb68] sm:$0xff]
  %v412 = vld [vmem:[%s1 + $0xb70] sm:$0xff]
  %v413 = vld [vmem:[%s1 + $0xb78] sm:$0xff]
  %v414 = vld [vmem:[%s1 + $0xb80] sm:$0xff]
  %v415 = vld [vmem:[%s1 + $0xb88] sm:$0xff]
  %v416 = vld [vmem:[%s1 + $0xb90] sm:$0xff]
  %v417 = vld [vmem:[%s1 + $0xb98] sm:$0xff]
  %v418 = vld [vmem:[%s1 + $0xba0] sm:$0xff]
  %v419 = vld [vmem:[%s1 + $0xba8] sm:$0xff]
  %v420 = vld [vmem:[%s1 + $0xbb0] sm:$0xff]
  %v421 = vld [vmem:[%s1 + $0xbb8] sm:$0xff]
  %v422 = vld [vmem:[%s1 + $0xbc0] sm:$0xff]
  %v423 = vld [vmem:[%s1 + $0xbc8] sm:$0xff]
  %v424 = vld [vmem:[%s1 + $0xbd0] sm:$0xff]
  %v425 = vld [vmem:[%s1 + $0xbd8] sm:$0xff]
  %v426 = vld [vmem:[%s1 + $0xbe0] sm:$0xff]
  %v427 = vld [vmem:[%s1 + $0xbe8] sm:$0xff]
  %v428 = vld [vmem:[%s1 + $0xbf0] sm:$0xff]
  %v429 = vld [vmem:[%s1 + $0xbf8] sm:$0xff]
  %v430 = vld [vmem:[%s1 + $0xc00] sm:$0xff]
  %v431 = vld [vmem:[%s1 + $0xc08] sm:$0xff]
  %v432 = vld [vmem:[%s1 + $0xc10] sm:$0xff]
  %v433 = vld [vmem:[%s1 + $0xc18] sm:$0xff]
  %v434 = vld [vmem:[%s1 + $0xc20] sm:$0xff]
  %v435 = vld [vmem:[%s1 + $0xc28] sm:$0xff]
  %v436 = vld [vmem:[%s1 + $0xc30] sm:$0xff]
  %v437 = vld [vmem:[%s1 + $0xc38] sm:$0xff]
  %v438 = vld [vmem:[%s1 + $0xc40] sm:$0xff]
  %v439 = vld [vmem:[%s1 + $0xc48] sm:$0xff]
  %v440 = vld [vmem:[%s1 + $0xc50] sm:$0xff]
  %v441 = vld [vmem:[%s1 + $0xc58] sm:$0xff]
  %v442 = vld [vmem:[%s1 + $0xc60] sm:$0xff]
  %v443 = vld [vmem:[%s1 + $0xc68] sm:$0xff]
  %v444 = vld [vmem:[%s1 + $0xc70] sm:$0xff]
  %v445 = vld [vmem:[%s1 + $0xc78] sm:$0xff]
  %v446 = vld [vmem:[%s1 + $0xc80] sm:$0xff]
  %v447 = vld [vmem:[%s1 + $0xc88] sm:$0xff]
  %v448 = vld [vmem:[%s1 + $0xc90] sm:$0xff]
  %v449 = vld [vmem:[%s1 + $0xc98] sm:$0xff]
  %v450 = vld [vmem:[%s1 + $0xca0] sm:$0xff]
  %v451 = vld [vmem:[%s1 + $0xca8] sm:$0xff]
  %v452 = vld [vmem:[%s1 + $0xcb0] sm:$0xff]
  %v453 = vld [vmem:[%s1 + $0xcb8] sm:$0xff]
  %v454 = vld [vmem:[%s1 + $0xcc0] sm:$0xff]
  %v455 = vld [vmem:[%s1 + $0xcc8] sm:$0xff]
  %v456 = vld [vmem:[%s1 + $0xcd0] sm:$0xff]
  %v457 = vld [vmem:[%s1 + $0xcd8] sm:$0xff]
  %v458 = vld [vmem:[%s1 + $0xce0] sm:$0xff]
  %v459 = vld [vmem:[%s1 + $0xce8] sm:$0xff]
  %v460 = vld [vmem:[%s1 + $0xcf0] sm:$0xff]
  %v461 = vld [vmem:[%s1 + $0xcf8] sm:$0xff]
  %v462 = vld [vmem:[%s1 + $0xd00] sm:$0xff]
  %v463 = vld [vmem:[%s1 + $0xd08] sm:$0xff]
  %v464 = vld [vmem:[%s1 + $0xd10] sm:$0xff]
  %v465 = vld [vmem:[%s1 + $0xd18] sm:$0xff]
  %v466 = vld [vmem:[%s1 + $0xd20] sm:$0xff]
  %v467 = vld [vmem:[%s1 + $0xd28] sm:$0xff]
  %v468 = vld [vmem:[%s1 + $0xd30] sm:$0xff]
  %v469 = vld [vmem:[%s1 + $0xd38] sm:$0xff]
  %v470 = vld [vmem:[%s1 + $0xd40] sm:$0xff]
  %v471 = vld [vmem:[%s1 + $0xd48] sm:$0xff]
  %v472 = vld [vmem:[%s1 + $0xd50] sm:$0xff]
  %v473 = vld [vmem:[%s1 + $0xd58] sm:$0xff]
  %v474 = vld [vmem:[%s1 + $0xd60] sm:$0xff]
  %v475 = vld [vmem:[%s1 + $0xd68] sm:$0xff]
  %v476 = vld [vmem:[%s1 + $0xd70] sm:$0xff]
  %v477 = vld [vmem:[%s1 + $0xd78] sm:$0xff]
  %v478 = vld [vmem:[%s1 + $0xd80] sm:$0xff]
  %v479 = vld [vmem:[%s1 + $0xd88] sm:$0xff]
  %v480 = vld [vmem:[%s1 + $0xd90] sm:$0xff]
  %v481 = vld [vmem:[%s1 + $0xd98] sm:$0xff]
  %v482 = vld [vmem:[%s1 + $0xda0] sm:$0xff]
  %v483 = vld [vmem:[%s1 + $0xda8] sm:$0xff]
  %v484 = vld [vmem:[%s1 + $0xdb0] sm:$0xff]
  %v485 = vld [vmem:[%s1 + $0xdb8] sm:$0xff]
  %v486 = vld [vmem:[%s1 + $0xdc0] sm:$0xff]
  %v487 = vld [vmem:[%s1 + $0xdc8] sm:$0xff]
  %v488 = vld [vmem:[%s1 + $0xdd0] sm:$0xff]
  %v489 = vld [vmem:[%s1 + $0xdd8] sm:$0xff]
  %v490 = vld [vmem:[%s1 + $0xde0] sm:$0xff]
  %v491 = vld [vmem:[%s1 + $0xde8] sm:$0xff]
  %v492 = vld [vmem:[%s1 + $0xdf0] sm:$0xff]
  %v493 = vld [vmem:[%s1 + $0xdf8] sm:$0xff]
  %v494 = vld [vmem:[%s1 + $0xe00] sm:$0xff]
  %v495 = vld [vmem:[%s1 + $0xe08] sm:$0xff]
  %v496 = vld [vmem:[%s1 + $0xe10] sm:$0xff]
  %v497 = vld [vmem:[%s1 + $0xe18] sm:$0xff]
  %v498 = vld [vmem:[%s1 + $0xe20] sm:$0xff]
  %v499 = vld [vmem:[%s1 + $0xe28] sm:$0xff]
  %v500 = vld [vmem:[%s1 + $0xe30] sm:$0xff]
  %v501 = vld [vmem:[%s1 + $0xe38] sm:$0xff]
  %v502 = vld [vmem:[%s1 + $0xe40] sm:$0xff]
  %v503 = vld [vmem:[%s1 + $0xe48] sm:$0xff]
  %v504 = vld [vmem:[%s1 + $0xe50] sm:$0xff]
  %v505 = vld [vmem:[%s1 + $0xe58] sm:$0xff]
  %v506 = vld [vmem:[%s1 + $0xe60] sm:$0xff]
  %v507 = vld [vmem:[%s1 + $0xe68] sm:$0xff]
  %v508 = vld [vmem:[%s1 + $0xe70] sm:$0xff]
  %v509 = vld [vmem:[%s1 + $0xe78] sm:$0xff]
  %v510 = vld [vmem:[%s1 + $0xe80] sm:$0xff]
  %v511 = vld [vmem:[%s1 + $0xe88] sm:$0xff]
  %v512 = vld [vmem:[%s1 + $0xe90] sm:$0xff]
  %v513 = vld [vmem:[%s1 + $0xe98] sm:$0xff]
  %v514 = vld [vmem:[%s1 + $0xea0] sm:$0xff]
  %v515 = vld [vmem:[%s1 + $0xea8] sm:$0xff]
  %v516 = vld [vmem:[%s1 + $0xeb0] sm:$0xff]
  %v517 = vld [vmem:[%s1 + $0xeb8] sm:$0xff]
  %v518 = vld [vmem:[%s1 + $0xec0] sm:$0xff]
  %v519 = vld [vmem:[%s1 + $0xec8] sm:$0xff]
  %v520 = vld [vmem:[%s1 + $0xed0] sm:$0xff]
  %v521 = vld [vmem:[%s1 + $0xed8] sm:$0xff]
  %v522 = vld [vmem:[%s1 + $0xee0] sm:$0xff]
  %v523 = vld [vmem:[%s1 + $0xee8] sm:$0xff]
  %v524 = vld [vmem:[%s1 + $0xef0] sm:$0xff]
  %v525 = vld [vmem:[%s1 + $0xef8] sm:$0xff]
  %v526 = vld [vmem:[%s2] sm:$0xff]
  %v527 = vld [vmem:[%s2 + $0x8] sm:$0xff]
  %v530 = vperm.slane %v526, 0
  %v531 = vperm.slane %v526, 1
  %v532 = vperm.slane %v526, 2
  %v533 = vperm.slane %v526, 3
  %v534 = vperm.slane %v526, 4
  %v535 = vperm.slane %v526, 5
  %v536 = vperm.slane %v526, 6
  %v537 = vperm.slane %v526, 7
  %v538 = vperm.slane %v527, 0
  %v539 = vperm.slane %v527, 1
  %v540 = vperm.slane %v527, 2
  %v541 = vperm.slane %v527, 3
  %v542 = vperm.slane %v527, 4
  %v543 = vperm.slane %v527, 5
  %v544 = vperm.slane %v527, 6
  %560 = vmatpush.msra.mxu0 %v271
  %561 = vmatpush.msra.mxu0 %v256
  %562 = vmatpush.msra.mxu0 %v241
  %563 = vmatpush.msra.mxu0 %v226
  %564 = vmatpush.msra.mxu0 %v211
  %565 = vmatpush.msra.mxu0 %v196
  %566 = vmatpush.msra.mxu0 %v181
  %567 = vmatpush.msra.mxu0 %v166
  %568 = vmatpush.msra.mxu0 %v151
  %569 = vmatpush.msra.mxu0 %v136
  %570 = vmatpush.msra.mxu0 %v121
  %571 = vmatpush.msra.mxu0 %v106
  %572 = vmatpush.msra.mxu0 %v91
  %573 = vmatpush.msra.mxu0 %v76
  %574 = vmatpush.msra.mxu0 %v61
  %575 = vmatpush.msra.mxu0 %v46
  %576 = vmatmul.f32.gmra.mxu0 %v44
  %v577 = vpop.f32.mrf.mxu0
  %v578 = vadd.f32 %v530, %v577
  %579 = vdwg.mxu0
  %580 = vmatpush.msra.mxu0 %v511
  %581 = vmatpush.msra.mxu0 %v496
  %582 = vmatpush.msra.mxu0 %v481
  %583 = vmatpush.msra.mxu0 %v466
  %584 = vmatpush.msra.mxu0 %v451
  %585 = vmatpush.msra.mxu0 %v436
  %586 = vmatpush.msra.mxu0 %v421
  %587 = vmatpush.msra.mxu0 %v406
  %588 = vmatpush.msra.mxu0 %v391
  %589 = vmatpush.msra.mxu0 %v376
  %590 = vmatpush.msra.mxu0 %v361
  %591 = vmatpush.msra.mxu0 %v346
  %592 = vmatpush.msra.mxu0 %v331
  %593 = vmatpush.msra.mxu0 %v316
  %594 = vmatpush.msra.mxu0 %v301
  %595 = vmatpush.msra.mxu0 %v286
  %596 = vmatmul.f32.gmra.mxu0 %v45
  %v597 = vpop.f32.mrf.mxu0
  %v598 = vadd.f32 %v578, %v597
  %599 = vdwg.mxu0
  %600 = vmatpush.msra.mxu0 %v272
  %601 = vmatpush.msra.mxu0 %v257
  %602 = vmatpush.msra.mxu0 %v242
  %603 = vmatpush.msra.mxu0 %v227
  %604 = vmatpush.msra.mxu0 %v212
  %605 = vmatpush.msra.mxu0 %v197
  %606 = vmatpush.msra.mxu0 %v182
  %607 = vmatpush.msra.mxu0 %v167
  %608 = vmatpush.msra.mxu0 %v152
  %609 = vmatpush.msra.mxu0 %v137
  %610 = vmatpush.msra.mxu0 %v122
  %611 = vmatpush.msra.mxu0 %v107
  %612 = vmatpush.msra.mxu0 %v92
  %613 = vmatpush.msra.mxu0 %v77
  %614 = vmatpush.msra.mxu0 %v62
  %615 = vmatpush.msra.mxu0 %v47
  %616 = vmatmul.f32.gmra.mxu0 %v44
  %v617 = vpop.f32.mrf.mxu0
  %v618 = vadd.f32 %v531, %v617
  %619 = vdwg.mxu0
  %620 = vmatpush.msra.mxu0 %v512
  %621 = vmatpush.msra.mxu0 %v497
  %622 = vmatpush.msra.mxu0 %v482
  %623 = vmatpush.msra.mxu0 %v467
  %624 = vmatpush.msra.mxu0 %v452
  %625 = vmatpush.msra.mxu0 %v437
  %626 = vmatpush.msra.mxu0 %v422
  %627 = vmatpush.msra.mxu0 %v407
  %628 = vmatpush.msra.mxu0 %v392
  %629 = vmatpush.msra.mxu0 %v377
  %630 = vmatpush.msra.mxu0 %v362
  %631 = vmatpush.msra.mxu0 %v347
  %632 = vmatpush.msra.mxu0 %v332
  %633 = vmatpush.msra.mxu0 %v317
  %634 = vmatpush.msra.mxu0 %v302
  %635 = vmatpush.msra.mxu0 %v287
  %636 = vmatmul.f32.gmra.mxu0 %v45
  %v637 = vpop.f32.mrf.mxu0
  %v638 = vadd.f32 %v618, %v637
  %639 = vdwg.mxu0
  %640 = vmatpush.msra.mxu0 %v273
  %641 = vmatpush.msra.mxu0 %v258
  %642 = vmatpush.msra.mxu0 %v243
  %643 = vmatpush.msra.mxu0 %v228
  %644 = vmatpush.msra.mxu0 %v213
  %645 = vmatpush.msra.mxu0 %v198
  %646 = vmatpush.msra.mxu0 %v183
  %647 = vmatpush.msra.mxu0 %v168
  %648 = vmatpush.msra.mxu0 %v153
  %649 = vmatpush.msra.mxu0 %v138
  %650 = vmatpush.msra.mxu0 %v123
  %651 = vmatpush.msra.mxu0 %v108
  %652 = vmatpush.msra.mxu0 %v93
  %653 = vmatpush.msra.mxu0 %v78
  %654 = vmatpush.msra.mxu0 %v63
  %655 = vmatpush.msra.mxu0 %v48
  %656 = vmatmul.f32.gmra.mxu0 %v44
  %v657 = vpop.f32.mrf.mxu0
  %v658 = vadd.f32 %v532, %v657
  %659 = vdwg.mxu0
  %660 = vmatpush.msra.mxu0 %v513
  %661 = vmatpush.msra.mxu0 %v498
  %662 = vmatpush.msra.mxu0 %v483
  %663 = vmatpush.msra.mxu0 %v468
  %664 = vmatpush.msra.mxu0 %v453
  %665 = vmatpush.msra.mxu0 %v438
  %666 = vmatpush.msra.mxu0 %v423
  %667 = vmatpush.msra.mxu0 %v408
  %668 = vmatpush.msra.mxu0 %v393
  %669 = vmatpush.msra.mxu0 %v378
  %670 = vmatpush.msra.mxu0 %v363
  %671 = vmatpush.msra.mxu0 %v348
  %672 = vmatpush.msra.mxu0 %v333
  %673 = vmatpush.msra.mxu0 %v318
  %674 = vmatpush.msra.mxu0 %v303
  %675 = vmatpush.msra.mxu0 %v288
  %676 = vmatmul.f32.gmra.mxu0 %v45
  %v677 = vpop.f32.mrf.mxu0
  %v678 = vadd.f32 %v658, %v677
  %679 = vdwg.mxu0
  %680 = vmatpush.msra.mxu0 %v274
  %681 = vmatpush.msra.mxu0 %v259
  %682 = vmatpush.msra.mxu0 %v244
  %683 = vmatpush.msra.mxu0 %v229
  %684 = vmatpush.msra.mxu0 %v214
  %685 = vmatpush.msra.mxu0 %v199
  %686 = vmatpush.msra.mxu0 %v184
  %687 = vmatpush.msra.mxu0 %v169
  %688 = vmatpush.msra.mxu0 %v154
  %689 = vmatpush.msra.mxu0 %v139
  %690 = vmatpush.msra.mxu0 %v124
  %691 = vmatpush.msra.mxu0 %v109
  %692 = vmatpush.msra.mxu0 %v94
  %693 = vmatpush.msra.mxu0 %v79
  %694 = vmatpush.msra.mxu0 %v64
  %695 = vmatpush.msra.mxu0 %v49
  %696 = vmatmul.f32.gmra.mxu0 %v44
  %v697 = vpop.f32.mrf.mxu0
  %v698 = vadd.f32 %v533, %v697
  %699 = vdwg.mxu0
  %700 = vmatpush.msra.mxu0 %v514
  %701 = vmatpush.msra.mxu0 %v499
  %702 = vmatpush.msra.mxu0 %v484
  %703 = vmatpush.msra.mxu0 %v469
  %704 = vmatpush.msra.mxu0 %v454
  %705 = vmatpush.msra.mxu0 %v439
  %706 = vmatpush.msra.mxu0 %v424
  %707 = vmatpush.msra.mxu0 %v409
  %708 = vmatpush.msra.mxu0 %v394
  %709 = vmatpush.msra.mxu0 %v379
  %710 = vmatpush.msra.mxu0 %v364
  %711 = vmatpush.msra.mxu0 %v349
  %712 = vmatpush.msra.mxu0 %v334
  %713 = vmatpush.msra.mxu0 %v319
  %714 = vmatpush.msra.mxu0 %v304
  %715 = vmatpush.msra.mxu0 %v289
  %716 = vmatmul.f32.gmra.mxu0 %v45
  %v717 = vpop.f32.mrf.mxu0
  %v718 = vadd.f32 %v698, %v717
  %719 = vdwg.mxu0
  %720 = vmatpush.msra.mxu0 %v275
  %721 = vmatpush.msra.mxu0 %v260
  %722 = vmatpush.msra.mxu0 %v245
  %723 = vmatpush.msra.mxu0 %v230
  %724 = vmatpush.msra.mxu0 %v215
  %725 = vmatpush.msra.mxu0 %v200
  %726 = vmatpush.msra.mxu0 %v185
  %727 = vmatpush.msra.mxu0 %v170
  %728 = vmatpush.msra.mxu0 %v155
  %729 = vmatpush.msra.mxu0 %v140
  %730 = vmatpush.msra.mxu0 %v125
  %731 = vmatpush.msra.mxu0 %v110
  %732 = vmatpush.msra.mxu0 %v95
  %733 = vmatpush.msra.mxu0 %v80
  %734 = vmatpush.msra.mxu0 %v65
  %735 = vmatpush.msra.mxu0 %v50
  %736 = vmatmul.f32.gmra.mxu0 %v44
  %v737 = vpop.f32.mrf.mxu0
  %v738 = vadd.f32 %v534, %v737
  %739 = vdwg.mxu0
  %740 = vmatpush.msra.mxu0 %v515
  %741 = vmatpush.msra.mxu0 %v500
  %742 = vmatpush.msra.mxu0 %v485
  %743 = vmatpush.msra.mxu0 %v470
  %744 = vmatpush.msra.mxu0 %v455
  %745 = vmatpush.msra.mxu0 %v440
  %746 = vmatpush.msra.mxu0 %v425
  %747 = vmatpush.msra.mxu0 %v410
  %748 = vmatpush.msra.mxu0 %v395
  %749 = vmatpush.msra.mxu0 %v380
  %750 = vmatpush.msra.mxu0 %v365
  %751 = vmatpush.msra.mxu0 %v350
  %752 = vmatpush.msra.mxu0 %v335
  %753 = vmatpush.msra.mxu0 %v320
  %754 = vmatpush.msra.mxu0 %v305
  %755 = vmatpush.msra.mxu0 %v290
  %756 = vmatmul.f32.gmra.mxu0 %v45
  %v757 = vpop.f32.mrf.mxu0
  %v758 = vadd.f32 %v738, %v757
  %759 = vdwg.mxu0
  %760 = vmatpush.msra.mxu0 %v276
  %761 = vmatpush.msra.mxu0 %v261
  %762 = vmatpush.msra.mxu0 %v246
  %763 = vmatpush.msra.mxu0 %v231
  %764 = vmatpush.msra.mxu0 %v216
  %765 = vmatpush.msra.mxu0 %v201
  %766 = vmatpush.msra.mxu0 %v186
  %767 = vmatpush.msra.mxu0 %v171
  %768 = vmatpush.msra.mxu0 %v156
  %769 = vmatpush.msra.mxu0 %v141
  %770 = vmatpush.msra.mxu0 %v126
  %771 = vmatpush.msra.mxu0 %v111
  %772 = vmatpush.msra.mxu0 %v96
  %773 = vmatpush.msra.mxu0 %v81
  %774 = vmatpush.msra.mxu0 %v66
  %775 = vmatpush.msra.mxu0 %v51
  %776 = vmatmul.f32.gmra.mxu0 %v44
  %v777 = vpop.f32.mrf.mxu0
  %v778 = vadd.f32 %v535, %v777
  %779 = vdwg.mxu0
  %780 = vmatpush.msra.mxu0 %v516
  %781 = vmatpush.msra.mxu0 %v501
  %782 = vmatpush.msra.mxu0 %v486
  %783 = vmatpush.msra.mxu0 %v471
  %784 = vmatpush.msra.mxu0 %v456
  %785 = vmatpush.msra.mxu0 %v441
  %786 = vmatpush.msra.mxu0 %v426
  %787 = vmatpush.msra.mxu0 %v411
  %788 = vmatpush.msra.mxu0 %v396
  %789 = vmatpush.msra.mxu0 %v381
  %790 = vmatpush.msra.mxu0 %v366
  %791 = vmatpush.msra.mxu0 %v351
  %792 = vmatpush.msra.mxu0 %v336
  %793 = vmatpush.msra.mxu0 %v321
  %794 = vmatpush.msra.mxu0 %v306
  %795 = vmatpush.msra.mxu0 %v291
  %796 = vmatmul.f32.gmra.mxu0 %v45
  %v797 = vpop.f32.mrf.mxu0
  %v798 = vadd.f32 %v778, %v797
  %799 = vdwg.mxu0
  %800 = vmatpush.msra.mxu0 %v277
  %801 = vmatpush.msra.mxu0 %v262
  %802 = vmatpush.msra.mxu0 %v247
  %803 = vmatpush.msra.mxu0 %v232
  %804 = vmatpush.msra.mxu0 %v217
  %805 = vmatpush.msra.mxu0 %v202
  %806 = vmatpush.msra.mxu0 %v187
  %807 = vmatpush.msra.mxu0 %v172
  %808 = vmatpush.msra.mxu0 %v157
  %809 = vmatpush.msra.mxu0 %v142
  %810 = vmatpush.msra.mxu0 %v127
  %811 = vmatpush.msra.mxu0 %v112
  %812 = vmatpush.msra.mxu0 %v97
  %813 = vmatpush.msra.mxu0 %v82
  %814 = vmatpush.msra.mxu0 %v67
  %815 = vmatpush.msra.mxu0 %v52
  %816 = vmatmul.f32.gmra.mxu0 %v44
  %v817 = vpop.f32.mrf.mxu0
  %v818 = vadd.f32 %v536, %v817
  %819 = vdwg.mxu0
  %820 = vmatpush.msra.mxu0 %v517
  %821 = vmatpush.msra.mxu0 %v502
  %822 = vmatpush.msra.mxu0 %v487
  %823 = vmatpush.msra.mxu0 %v472
  %824 = vmatpush.msra.mxu0 %v457
  %825 = vmatpush.msra.mxu0 %v442
  %826 = vmatpush.msra.mxu0 %v427
  %827 = vmatpush.msra.mxu0 %v412
  %828 = vmatpush.msra.mxu0 %v397
  %829 = vmatpush.msra.mxu0 %v382
  %830 = vmatpush.msra.mxu0 %v367
  %831 = vmatpush.msra.mxu0 %v352
  %832 = vmatpush.msra.mxu0 %v337
  %833 = vmatpush.msra.mxu0 %v322
  %834 = vmatpush.msra.mxu0 %v307
  %835 = vmatpush.msra.mxu0 %v292
  %836 = vmatmul.f32.gmra.mxu0 %v45
  %v837 = vpop.f32.mrf.mxu0
  %v838 = vadd.f32 %v818, %v837
  %839 = vdwg.mxu0
  %840 = vmatpush.msra.mxu0 %v278
  %841 = vmatpush.msra.mxu0 %v263
  %842 = vmatpush.msra.mxu0 %v248
  %843 = vmatpush.msra.mxu0 %v233
  %844 = vmatpush.msra.mxu0 %v218
  %845 = vmatpush.msra.mxu0 %v203
  %846 = vmatpush.msra.mxu0 %v188
  %847 = vmatpush.msra.mxu0 %v173
  %848 = vmatpush.msra.mxu0 %v158
  %849 = vmatpush.msra.mxu0 %v143
  %850 = vmatpush.msra.mxu0 %v128
  %851 = vmatpush.msra.mxu0 %v113
  %852 = vmatpush.msra.mxu0 %v98
  %853 = vmatpush.msra.mxu0 %v83
  %854 = vmatpush.msra.mxu0 %v68
  %855 = vmatpush.msra.mxu0 %v53
  %856 = vmatmul.f32.gmra.mxu0 %v44
  %v857 = vpop.f32.mrf.mxu0
  %v858 = vadd.f32 %v537, %v857
  %859 = vdwg.mxu0
  %860 = vmatpush.msra.mxu0 %v518
  %861 = vmatpush.msra.mxu0 %v503
  %862 = vmatpush.msra.mxu0 %v488
  %863 = vmatpush.msra.mxu0 %v473
  %864 = vmatpush.msra.mxu0 %v458
  %865 = vmatpush.msra.mxu0 %v443
  %866 = vmatpush.msra.mxu0 %v428
  %867 = vmatpush.msra.mxu0 %v413
  %868 = vmatpush.msra.mxu0 %v398
  %869 = vmatpush.msra.mxu0 %v383
  %870 = vmatpush.msra.mxu0 %v368
  %871 = vmatpush.msra.mxu0 %v353
  %872 = vmatpush.msra.mxu0 %v338
  %873 = vmatpush.msra.mxu0 %v323
  %874 = vmatpush.msra.mxu0 %v308
  %875 = vmatpush.msra.mxu0 %v293
  %876 = vmatmul.f32.gmra.mxu0 %v45
  %v877 = vpop.f32.mrf.mxu0
  %v878 = vadd.f32 %v858, %v877
  %879 = vdwg.mxu0
  %880 = vmatpush.msra.mxu0 %v279
  %881 = vmatpush.msra.mxu0 %v264
  %882 = vmatpush.msra.mxu0 %v249
  %883 = vmatpush.msra.mxu0 %v234
  %884 = vmatpush.msra.mxu0 %v219
  %885 = vmatpush.msra.mxu0 %v204
  %886 = vmatpush.msra.mxu0 %v189
  %887 = vmatpush.msra.mxu0 %v174
  %888 = vmatpush.msra.mxu0 %v159
  %889 = vmatpush.msra.mxu0 %v144
  %890 = vmatpush.msra.mxu0 %v129
  %891 = vmatpush.msra.mxu0 %v114
  %892 = vmatpush.msra.mxu0 %v99
  %893 = vmatpush.msra.mxu0 %v84
  %894 = vmatpush.msra.mxu0 %v69
  %895 = vmatpush.msra.mxu0 %v54
  %896 = vmatmul.f32.gmra.mxu0 %v44
  %v897 = vpop.f32.mrf.mxu0
  %v898 = vadd.f32 %v538, %v897
  %899 = vdwg.mxu0
  %900 = vmatpush.msra.mxu0 %v519
  %901 = vmatpush.msra.mxu0 %v504
  %902 = vmatpush.msra.mxu0 %v489
  %903 = vmatpush.msra.mxu0 %v474
  %904 = vmatpush.msra.mxu0 %v459
  %905 = vmatpush.msra.mxu0 %v444
  %906 = vmatpush.msra.mxu0 %v429
  %907 = vmatpush.msra.mxu0 %v414
  %908 = vmatpush.msra.mxu0 %v399
  %909 = vmatpush.msra.mxu0 %v384
  %910 = vmatpush.msra.mxu0 %v369
  %911 = vmatpush.msra.mxu0 %v354
  %912 = vmatpush.msra.mxu0 %v339
  %913 = vmatpush.msra.mxu0 %v324
  %914 = vmatpush.msra.mxu0 %v309
  %915 = vmatpush.msra.mxu0 %v294
  %916 = vmatmul.f32.gmra.mxu0 %v45
  %v917 = vpop.f32.mrf.mxu0
  %v918 = vadd.f32 %v898, %v917
  %919 = vdwg.mxu0
  %920 = vmatpush.msra.mxu0 %v280
  %921 = vmatpush.msra.mxu0 %v265
  %922 = vmatpush.msra.mxu0 %v250
  %923 = vmatpush.msra.mxu0 %v235
  %924 = vmatpush.msra.mxu0 %v220
  %925 = vmatpush.msra.mxu0 %v205
  %926 = vmatpush.msra.mxu0 %v190
  %927 = vmatpush.msra.mxu0 %v175
  %928 = vmatpush.msra.mxu0 %v160
  %929 = vmatpush.msra.mxu0 %v145
  %930 = vmatpush.msra.mxu0 %v130
  %931 = vmatpush.msra.mxu0 %v115
  %932 = vmatpush.msra.mxu0 %v100
  %933 = vmatpush.msra.mxu0 %v85
  %934 = vmatpush.msra.mxu0 %v70
  %935 = vmatpush.msra.mxu0 %v55
  %936 = vmatmul.f32.gmra.mxu0 %v44
  %v937 = vpop.f32.mrf.mxu0
  %v938 = vadd.f32 %v539, %v937
  %939 = vdwg.mxu0
  %940 = vmatpush.msra.mxu0 %v520
  %941 = vmatpush.msra.mxu0 %v505
  %942 = vmatpush.msra.mxu0 %v490
  %943 = vmatpush.msra.mxu0 %v475
  %944 = vmatpush.msra.mxu0 %v460
  %945 = vmatpush.msra.mxu0 %v445
  %946 = vmatpush.msra.mxu0 %v430
  %947 = vmatpush.msra.mxu0 %v415
  %948 = vmatpush.msra.mxu0 %v400
  %949 = vmatpush.msra.mxu0 %v385
  %950 = vmatpush.msra.mxu0 %v370
  %951 = vmatpush.msra.mxu0 %v355
  %952 = vmatpush.msra.mxu0 %v340
  %953 = vmatpush.msra.mxu0 %v325
  %954 = vmatpush.msra.mxu0 %v310
  %955 = vmatpush.msra.mxu0 %v295
  %956 = vmatmul.f32.gmra.mxu0 %v45
  %v957 = vpop.f32.mrf.mxu0
  %v958 = vadd.f32 %v938, %v957
  %959 = vdwg.mxu0
  %960 = vmatpush.msra.mxu0 %v281
  %961 = vmatpush.msra.mxu0 %v266
  %962 = vmatpush.msra.mxu0 %v251
  %963 = vmatpush.msra.mxu0 %v236
  %964 = vmatpush.msra.mxu0 %v221
  %965 = vmatpush.msra.mxu0 %v206
  %966 = vmatpush.msra.mxu0 %v191
  %967 = vmatpush.msra.mxu0 %v176
  %968 = vmatpush.msra.mxu0 %v161
  %969 = vmatpush.msra.mxu0 %v146
  %970 = vmatpush.msra.mxu0 %v131
  %971 = vmatpush.msra.mxu0 %v116
  %972 = vmatpush.msra.mxu0 %v101
  %973 = vmatpush.msra.mxu0 %v86
  %974 = vmatpush.msra.mxu0 %v71
  %975 = vmatpush.msra.mxu0 %v56
  %976 = vmatmul.f32.gmra.mxu0 %v44
  %v977 = vpop.f32.mrf.mxu0
  %v978 = vadd.f32 %v540, %v977
  %979 = vdwg.mxu0
  %980 = vmatpush.msra.mxu0 %v521
  %981 = vmatpush.msra.mxu0 %v506
  %982 = vmatpush.msra.mxu0 %v491
  %983 = vmatpush.msra.mxu0 %v476
  %984 = vmatpush.msra.mxu0 %v461
  %985 = vmatpush.msra.mxu0 %v446
  %986 = vmatpush.msra.mxu0 %v431
  %987 = vmatpush.msra.mxu0 %v416
  %988 = vmatpush.msra.mxu0 %v401
  %989 = vmatpush.msra.mxu0 %v386
  %990 = vmatpush.msra.mxu0 %v371
  %991 = vmatpush.msra.mxu0 %v356
  %992 = vmatpush.msra.mxu0 %v341
  %993 = vmatpush.msra.mxu0 %v326
  %994 = vmatpush.msra.mxu0 %v311
  %995 = vmatpush.msra.mxu0 %v296
  %996 = vmatmul.f32.gmra.mxu0 %v45
  %v997 = vpop.f32.mrf.mxu0
  %v998 = vadd.f32 %v978, %v997
  %999 = vdwg.mxu0
  %1000 = vmatpush.msra.mxu0 %v282
  %1001 = vmatpush.msra.mxu0 %v267
  %1002 = vmatpush.msra.mxu0 %v252
  %1003 = vmatpush.msra.mxu0 %v237
  %1004 = vmatpush.msra.mxu0 %v222
  %1005 = vmatpush.msra.mxu0 %v207
  %1006 = vmatpush.msra.mxu0 %v192
  %1007 = vmatpush.msra.mxu0 %v177
  %1008 = vmatpush.msra.mxu0 %v162
  %1009 = vmatpush.msra.mxu0 %v147
  %1010 = vmatpush.msra.mxu0 %v132
  %1011 = vmatpush.msra.mxu0 %v117
  %1012 = vmatpush.msra.mxu0 %v102
  %1013 = vmatpush.msra.mxu0 %v87
  %1014 = vmatpush.msra.mxu0 %v72
  %1015 = vmatpush.msra.mxu0 %v57
  %1016 = vmatmul.f32.gmra.mxu0 %v44
  %v1017 = vpop.f32.mrf.mxu0
  %v1018 = vadd.f32 %v541, %v1017
  %1019 = vdwg.mxu0
  %1020 = vmatpush.msra.mxu0 %v522
  %1021 = vmatpush.msra.mxu0 %v507
  %1022 = vmatpush.msra.mxu0 %v492
  %1023 = vmatpush.msra.mxu0 %v477
  %1024 = vmatpush.msra.mxu0 %v462
  %1025 = vmatpush.msra.mxu0 %v447
  %1026 = vmatpush.msra.mxu0 %v432
  %1027 = vmatpush.msra.mxu0 %v417
  %1028 = vmatpush.msra.mxu0 %v402
  %1029 = vmatpush.msra.mxu0 %v387
  %1030 = vmatpush.msra.mxu0 %v372
  %1031 = vmatpush.msra.mxu0 %v357
  %1032 = vmatpush.msra.mxu0 %v342
  %1033 = vmatpush.msra.mxu0 %v327
  %1034 = vmatpush.msra.mxu0 %v312
  %1035 = vmatpush.msra.mxu0 %v297
  %1036 = vmatmul.f32.gmra.mxu0 %v45
  %v1037 = vpop.f32.mrf.mxu0
  %v1038 = vadd.f32 %v1018, %v1037
  %1039 = vdwg.mxu0
  %1040 = vmatpush.msra.mxu0 %v283
  %1041 = vmatpush.msra.mxu0 %v268
  %1042 = vmatpush.msra.mxu0 %v253
  %1043 = vmatpush.msra.mxu0 %v238
  %1044 = vmatpush.msra.mxu0 %v223
  %1045 = vmatpush.msra.mxu0 %v208
  %1046 = vmatpush.msra.mxu0 %v193
  %1047 = vmatpush.msra.mxu0 %v178
  %1048 = vmatpush.msra.mxu0 %v163
  %1049 = vmatpush.msra.mxu0 %v148
  %1050 = vmatpush.msra.mxu0 %v133
  %1051 = vmatpush.msra.mxu0 %v118
  %1052 = vmatpush.msra.mxu0 %v103
  %1053 = vmatpush.msra.mxu0 %v88
  %1054 = vmatpush.msra.mxu0 %v73
  %1055 = vmatpush.msra.mxu0 %v58
  %1056 = vmatmul.f32.gmra.mxu0 %v44
  %v1057 = vpop.f32.mrf.mxu0
  %v1058 = vadd.f32 %v542, %v1057
  %1059 = vdwg.mxu0
  %1060 = vmatpush.msra.mxu0 %v523
  %1061 = vmatpush.msra.mxu0 %v508
  %1062 = vmatpush.msra.mxu0 %v493
  %1063 = vmatpush.msra.mxu0 %v478
  %1064 = vmatpush.msra.mxu0 %v463
  %1065 = vmatpush.msra.mxu0 %v448
  %1066 = vmatpush.msra.mxu0 %v433
  %1067 = vmatpush.msra.mxu0 %v418
  %1068 = vmatpush.msra.mxu0 %v403
  %1069 = vmatpush.msra.mxu0 %v388
  %1070 = vmatpush.msra.mxu0 %v373
  %1071 = vmatpush.msra.mxu0 %v358
  %1072 = vmatpush.msra.mxu0 %v343
  %1073 = vmatpush.msra.mxu0 %v328
  %1074 = vmatpush.msra.mxu0 %v313
  %1075 = vmatpush.msra.mxu0 %v298
  %1076 = vmatmul.f32.gmra.mxu0 %v45
  %v1077 = vpop.f32.mrf.mxu0
  %v1078 = vadd.f32 %v1058, %v1077
  %1079 = vdwg.mxu0
  %1080 = vmatpush.msra.mxu0 %v284
  %1081 = vmatpush.msra.mxu0 %v269
  %1082 = vmatpush.msra.mxu0 %v254
  %1083 = vmatpush.msra.mxu0 %v239
  %1084 = vmatpush.msra.mxu0 %v224
  %1085 = vmatpush.msra.mxu0 %v209
  %1086 = vmatpush.msra.mxu0 %v194
  %1087 = vmatpush.msra.mxu0 %v179
  %1088 = vmatpush.msra.mxu0 %v164
  %1089 = vmatpush.msra.mxu0 %v149
  %1090 = vmatpush.msra.mxu0 %v134
  %1091 = vmatpush.msra.mxu0 %v119
  %1092 = vmatpush.msra.mxu0 %v104
  %1093 = vmatpush.msra.mxu0 %v89
  %1094 = vmatpush.msra.mxu0 %v74
  %1095 = vmatpush.msra.mxu0 %v59
  %1096 = vmatmul.f32.gmra.mxu0 %v44
  %v1097 = vpop.f32.mrf.mxu0
  %v1098 = vadd.f32 %v543, %v1097
  %1099 = vdwg.mxu0
  %1100 = vmatpush.msra.mxu0 %v524
  %1101 = vmatpush.msra.mxu0 %v509
  %1102 = vmatpush.msra.mxu0 %v494
  %1103 = vmatpush.msra.mxu0 %v479
  %1104 = vmatpush.msra.mxu0 %v464
  %1105 = vmatpush.msra.mxu0 %v449
  %1106 = vmatpush.msra.mxu0 %v434
  %1107 = vmatpush.msra.mxu0 %v419
  %1108 = vmatpush.msra.mxu0 %v404
  %1109 = vmatpush.msra.mxu0 %v389
  %1110 = vmatpush.msra.mxu0 %v374
  %1111 = vmatpush.msra.mxu0 %v359
  %1112 = vmatpush.msra.mxu0 %v344
  %1113 = vmatpush.msra.mxu0 %v329
  %1114 = vmatpush.msra.mxu0 %v314
  %1115 = vmatpush.msra.mxu0 %v299
  %1116 = vmatmul.f32.gmra.mxu0 %v45
  %v1117 = vpop.f32.mrf.mxu0
  %v1118 = vadd.f32 %v1098, %v1117
  %1119 = vdwg.mxu0
  %1120 = vmatpush.msra.mxu0 %v285
  %1121 = vmatpush.msra.mxu0 %v270
  %1122 = vmatpush.msra.mxu0 %v255
  %1123 = vmatpush.msra.mxu0 %v240
  %1124 = vmatpush.msra.mxu0 %v225
  %1125 = vmatpush.msra.mxu0 %v210
  %1126 = vmatpush.msra.mxu0 %v195
  %1127 = vmatpush.msra.mxu0 %v180
  %1128 = vmatpush.msra.mxu0 %v165
  %1129 = vmatpush.msra.mxu0 %v150
  %1130 = vmatpush.msra.mxu0 %v135
  %1131 = vmatpush.msra.mxu0 %v120
  %1132 = vmatpush.msra.mxu0 %v105
  %1133 = vmatpush.msra.mxu0 %v90
  %1134 = vmatpush.msra.mxu0 %v75
  %1135 = vmatpush.msra.mxu0 %v60
  %1136 = vmatmul.f32.gmra.mxu0 %v44
  %v1137 = vpop.f32.mrf.mxu0
  %v1138 = vadd.f32 %v544, %v1137
  %1139 = vdwg.mxu0
  %1140 = vmatpush.msra.mxu0 %v525
  %1141 = vmatpush.msra.mxu0 %v510
  %1142 = vmatpush.msra.mxu0 %v495
  %1143 = vmatpush.msra.mxu0 %v480
  %1144 = vmatpush.msra.mxu0 %v465
  %1145 = vmatpush.msra.mxu0 %v450
  %1146 = vmatpush.msra.mxu0 %v435
  %1147 = vmatpush.msra.mxu0 %v420
  %1148 = vmatpush.msra.mxu0 %v405
  %1149 = vmatpush.msra.mxu0 %v390
  %1150 = vmatpush.msra.mxu0 %v375
  %1151 = vmatpush.msra.mxu0 %v360
  %1152 = vmatpush.msra.mxu0 %v345
  %1153 = vmatpush.msra.mxu0 %v330
  %1154 = vmatpush.msra.mxu0 %v315
  %1155 = vmatpush.msra.mxu0 %v300
  %1156 = vmatmul.f32.gmra.mxu0 %v45
  %v1157 = vpop.f32.mrf.mxu0
  %v1158 = vadd.f32 %v1138, %v1157
  %1159 = vdwg.mxu0
  %v1160 = vmax.f32 %v598, 0.0
  %v1161 = vmax.f32 %v638, 0.0
  %v1162 = vmax.f32 %v678, 0.0
  %v1163 = vmax.f32 %v718, 0.0
  %v1164 = vmax.f32 %v758, 0.0
  %v1165 = vmax.f32 %v798, 0.0
  %v1166 = vmax.f32 %v838, 0.0
  %v1167 = vmax.f32 %v878, 0.0
  %v1168 = vmax.f32 %v918, 0.0
  %v1169 = vmax.f32 %v958, 0.0
  %v1170 = vmax.f32 %v998, 0.0
  %v1171 = vmax.f32 %v1038, 0.0
  %v1172 = vmax.f32 %v1078, 0.0
  %v1173 = vmax.f32 %v1118, 0.0
  %v1174 = vmax.f32 %v1158, 0.0
  %v1175 = vld [vmem:[%s3] sm:$0xff]
  %v1176 = vld [vmem:[%s3 + $0x8] sm:$0xff]
  %v1177 = vld [vmem:[%s3 + $0x10] sm:$0xff]
  %v1178 = vld [vmem:[%s3 + $0x18] sm:$0xff]
  %v1179 = vld [vmem:[%s3 + $0x20] sm:$0xff]
  %v1180 = vld [vmem:[%s3 + $0x28] sm:$0xff]
  %v1181 = vld [vmem:[%s3 + $0x30] sm:$0xff]
  %v1182 = vld [vmem:[%s3 + $0x38] sm:$0xff]
  %v1183 = vld [vmem:[%s3 + $0x40] sm:$0xff]
  %v1184 = vld [vmem:[%s3 + $0x48] sm:$0xff]
  %v1185 = vld [vmem:[%s3 + $0x50] sm:$0xff]
  %v1186 = vld [vmem:[%s3 + $0x58] sm:$0xff]
  %v1187 = vld [vmem:[%s3 + $0x60] sm:$0xff]
  %v1188 = vld [vmem:[%s3 + $0x68] sm:$0xff]
  %v1189 = vld [vmem:[%s3 + $0x70] sm:$0xff]
  %v1190 = vld [vmem:[%s3 + $0x78] sm:$0xff]
  %v1191 = vld [vmem:[%s3 + $0x80] sm:$0xff]
  %v1192 = vld [vmem:[%s3 + $0x88] sm:$0xff]
  %v1193 = vld [vmem:[%s3 + $0x90] sm:$0xff]
  %v1194 = vld [vmem:[%s3 + $0x98] sm:$0xff]
  %v1195 = vld [vmem:[%s3 + $0xa0] sm:$0xff]
  %v1196 = vld [vmem:[%s3 + $0xa8] sm:$0xff]
  %v1197 = vld [vmem:[%s3 + $0xb0] sm:$0xff]
  %v1198 = vld [vmem:[%s3 + $0xb8] sm:$0xff]
  %v1199 = vld [vmem:[%s3 + $0xc0] sm:$0xff]
  %v1200 = vld [vmem:[%s3 + $0xc8] sm:$0xff]
  %v1201 = vld [vmem:[%s3 + $0xd0] sm:$0xff]
  %v1202 = vld [vmem:[%s3 + $0xd8] sm:$0xff]
  %v1203 = vld [vmem:[%s3 + $0xe0] sm:$0xff]
  %v1204 = vld [vmem:[%s3 + $0xe8] sm:$0xff]
  %v1205 = vld [vmem:[%s3 + $0xf0] sm:$0xff]
  %v1206 = vld [vmem:[%s3 + $0xf8] sm:$0xff]
  %v1207 = vld [vmem:[%s3 + $0x100] sm:$0xff]
  %v1208 = vld [vmem:[%s3 + $0x108] sm:$0xff]
  %v1209 = vld [vmem:[%s3 + $0x110] sm:$0xff]
  %v1210 = vld [vmem:[%s3 + $0x118] sm:$0xff]
  %v1211 = vld [vmem:[%s3 + $0x120] sm:$0xff]
  %v1212 = vld [vmem:[%s3 + $0x128] sm:$0xff]
  %v1213 = vld [vmem:[%s3 + $0x130] sm:$0xff]
  %v1214 = vld [vmem:[%s3 + $0x138] sm:$0xff]
  %v1215 = vld [vmem:[%s3 + $0x140] sm:$0xff]
  %v1216 = vld [vmem:[%s3 + $0x148] sm:$0xff]
  %v1217 = vld [vmem:[%s3 + $0x150] sm:$0xff]
  %v1218 = vld [vmem:[%s3 + $0x158] sm:$0xff]
  %v1219 = vld [vmem:[%s3 + $0x160] sm:$0xff]
  %v1220 = vld [vmem:[%s3 + $0x168] sm:$0xff]
  %v1221 = vld [vmem:[%s3 + $0x170] sm:$0xff]
  %v1222 = vld [vmem:[%s3 + $0x178] sm:$0xff]
  %v1223 = vld [vmem:[%s3 + $0x180] sm:$0xff]
  %v1224 = vld [vmem:[%s3 + $0x188] sm:$0xff]
  %v1225 = vld [vmem:[%s3 + $0x190] sm:$0xff]
  %v1226 = vld [vmem:[%s3 + $0x198] sm:$0xff]
  %v1227 = vld [vmem:[%s3 + $0x1a0] sm:$0xff]
  %v1228 = vld [vmem:[%s3 + $0x1a8] sm:$0xff]
  %v1229 = vld [vmem:[%s3 + $0x1b0] sm:$0xff]
  %v1230 = vld [vmem:[%s3 + $0x1b8] sm:$0xff]
  %v1231 = vld [vmem:[%s3 + $0x1c0] sm:$0xff]
  %v1232 = vld [vmem:[%s3 + $0x1c8] sm:$0xff]
  %v1233 = vld [vmem:[%s3 + $0x1d0] sm:$0xff]
  %v1234 = vld [vmem:[%s3 + $0x1d8] sm:$0xff]
  %v1235 = vld [vmem:[%s3 + $0x1e0] sm:$0xff]
  %v1236 = vld [vmem:[%s3 + $0x1e8] sm:$0xff]
  %v1237 = vld [vmem:[%s3 + $0x1f0] sm:$0xff]
  %v1238 = vld [vmem:[%s3 + $0x1f8] sm:$0xff]
  %v1239 = vld [vmem:[%s3 + $0x200] sm:$0xff]
  %v1240 = vld [vmem:[%s3 + $0x208] sm:$0xff]
  %v1241 = vld [vmem:[%s3 + $0x210] sm:$0xff]
  %v1242 = vld [vmem:[%s3 + $0x218] sm:$0xff]
  %v1243 = vld [vmem:[%s3 + $0x220] sm:$0xff]
  %v1244 = vld [vmem:[%s3 + $0x228] sm:$0xff]
  %v1245 = vld [vmem:[%s3 + $0x230] sm:$0xff]
  %v1246 = vld [vmem:[%s3 + $0x238] sm:$0xff]
  %v1247 = vld [vmem:[%s3 + $0x240] sm:$0xff]
  %v1248 = vld [vmem:[%s3 + $0x248] sm:$0xff]
  %v1249 = vld [vmem:[%s3 + $0x250] sm:$0xff]
  %v1250 = vld [vmem:[%s3 + $0x258] sm:$0xff]
  %v1251 = vld [vmem:[%s3 + $0x260] sm:$0xff]
  %v1252 = vld [vmem:[%s3 + $0x268] sm:$0xff]
  %v1253 = vld [vmem:[%s3 + $0x270] sm:$0xff]
  %v1254 = vld [vmem:[%s3 + $0x278] sm:$0xff]
  %v1255 = vld [vmem:[%s3 + $0x280] sm:$0xff]
  %v1256 = vld [vmem:[%s3 + $0x288] sm:$0xff]
  %v1257 = vld [vmem:[%s3 + $0x290] sm:$0xff]
  %v1258 = vld [vmem:[%s3 + $0x298] sm:$0xff]
  %v1259 = vld [vmem:[%s3 + $0x2a0] sm:$0xff]
  %v1260 = vld [vmem:[%s3 + $0x2a8] sm:$0xff]
  %v1261 = vld [vmem:[%s3 + $0x2b0] sm:$0xff]
  %v1262 = vld [vmem:[%s3 + $0x2b8] sm:$0xff]
  %v1263 = vld [vmem:[%s3 + $0x2c0] sm:$0xff]
  %v1264 = vld [vmem:[%s3 + $0x2c8] sm:$0xff]
  %v1265 = vld [vmem:[%s3 + $0x2d0] sm:$0xff]
  %v1266 = vld [vmem:[%s3 + $0x2d8] sm:$0xff]
  %v1267 = vld [vmem:[%s3 + $0x2e0] sm:$0xff]
  %v1268 = vld [vmem:[%s3 + $0x2e8] sm:$0xff]
  %v1269 = vld [vmem:[%s3 + $0x2f0] sm:$0xff]
  %v1270 = vld [vmem:[%s3 + $0x2f8] sm:$0xff]
  %v1271 = vld [vmem:[%s3 + $0x300] sm:$0xff]
  %v1272 = vld [vmem:[%s3 + $0x308] sm:$0xff]
  %v1273 = vld [vmem:[%s3 + $0x310] sm:$0xff]
  %v1274 = vld [vmem:[%s3 + $0x318] sm:$0xff]
  %v1275 = vld [vmem:[%s3 + $0x320] sm:$0xff]
  %v1276 = vld [vmem:[%s3 + $0x328] sm:$0xff]
  %v1277 = vld [vmem:[%s3 + $0x330] sm:$0xff]
  %v1278 = vld [vmem:[%s3 + $0x338] sm:$0xff]
  %v1279 = vld [vmem:[%s3 + $0x340] sm:$0xff]
  %v1280 = vld [vmem:[%s3 + $0x348] sm:$0xff]
  %v1281 = vld [vmem:[%s3 + $0x350] sm:$0xff]
  %v1282 = vld [vmem:[%s3 + $0x358] sm:$0xff]
  %v1283 = vld [vmem:[%s3 + $0x360] sm:$0xff]
  %v1284 = vld [vmem:[%s3 + $0x368] sm:$0xff]
  %v1285 = vld [vmem:[%s3 + $0x370] sm:$0xff]
  %v1286 = vld [vmem:[%s3 + $0x378] sm:$0xff]
  %v1287 = vld [vmem:[%s3 + $0x380] sm:$0xff]
  %v1288 = vld [vmem:[%s3 + $0x388] sm:$0xff]
  %v1289 = vld [vmem:[%s3 + $0x390] sm:$0xff]
  %v1290 = vld [vmem:[%s3 + $0x398] sm:$0xff]
  %v1291 = vld [vmem:[%s3 + $0x3a0] sm:$0xff]
  %v1292 = vld [vmem:[%s3 + $0x3a8] sm:$0xff]
  %v1293 = vld [vmem:[%s3 + $0x3b0] sm:$0xff]
  %v1294 = vld [vmem:[%s3 + $0x3b8] sm:$0xff]
  %v1295 = vld [vmem:[%s3 + $0x3c0] sm:$0xff]
  %v1296 = vld [vmem:[%s3 + $0x3c8] sm:$0xff]
  %v1297 = vld [vmem:[%s3 + $0x3d0] sm:$0xff]
  %v1298 = vld [vmem:[%s3 + $0x3d8] sm:$0xff]
  %v1299 = vld [vmem:[%s3 + $0x3e0] sm:$0xff]
  %v1300 = vld [vmem:[%s3 + $0x3e8] sm:$0xff]
  %v1301 = vld [vmem:[%s3 + $0x3f0] sm:$0xff]
  %v1302 = vld [vmem:[%s3 + $0x3f8] sm:$0xff]
  %v1303 = vld [vmem:[%s3 + $0x400] sm:$0xff]
  %v1304 = vld [vmem:[%s3 + $0x408] sm:$0xff]
  %v1305 = vld [vmem:[%s3 + $0x410] sm:$0xff]
  %v1306 = vld [vmem:[%s3 + $0x418] sm:$0xff]
  %v1307 = vld [vmem:[%s3 + $0x420] sm:$0xff]
  %v1308 = vld [vmem:[%s3 + $0x428] sm:$0xff]
  %v1309 = vld [vmem:[%s3 + $0x430] sm:$0xff]
  %v1310 = vld [vmem:[%s3 + $0x438] sm:$0xff]
  %v1311 = vld [vmem:[%s3 + $0x440] sm:$0xff]
  %v1312 = vld [vmem:[%s3 + $0x448] sm:$0xff]
  %v1313 = vld [vmem:[%s3 + $0x450] sm:$0xff]
  %v1314 = vld [vmem:[%s3 + $0x458] sm:$0xff]
  %v1315 = vld [vmem:[%s3 + $0x460] sm:$0xff]
  %v1316 = vld [vmem:[%s3 + $0x468] sm:$0xff]
  %v1317 = vld [vmem:[%s3 + $0x470] sm:$0xff]
  %v1318 = vld [vmem:[%s3 + $0x478] sm:$0xff]
  %v1319 = vld [vmem:[%s3 + $0x480] sm:$0xff]
  %v1320 = vld [vmem:[%s3 + $0x488] sm:$0xff]
  %v1321 = vld [vmem:[%s3 + $0x490] sm:$0xff]
  %v1322 = vld [vmem:[%s3 + $0x498] sm:$0xff]
  %v1323 = vld [vmem:[%s3 + $0x4a0] sm:$0xff]
  %v1324 = vld [vmem:[%s3 + $0x4a8] sm:$0xff]
  %v1325 = vld [vmem:[%s3 + $0x4b0] sm:$0xff]
  %v1326 = vld [vmem:[%s3 + $0x4b8] sm:$0xff]
  %v1327 = vld [vmem:[%s3 + $0x4c0] sm:$0xff]
  %v1328 = vld [vmem:[%s3 + $0x4c8] sm:$0xff]
  %v1329 = vld [vmem:[%s3 + $0x4d0] sm:$0xff]
  %v1330 = vld [vmem:[%s3 + $0x4d8] sm:$0xff]
  %v1331 = vld [vmem:[%s3 + $0x4e0] sm:$0xff]
  %v1332 = vld [vmem:[%s3 + $0x4e8] sm:$0xff]
  %v1333 = vld [vmem:[%s3 + $0x4f0] sm:$0xff]
  %v1334 = vld [vmem:[%s3 + $0x4f8] sm:$0xff]
  %v1335 = vld [vmem:[%s3 + $0x500] sm:$0xff]
  %v1336 = vld [vmem:[%s3 + $0x508] sm:$0xff]
  %v1337 = vld [vmem:[%s3 + $0x510] sm:$0xff]
  %v1338 = vld [vmem:[%s3 + $0x518] sm:$0xff]
  %v1339 = vld [vmem:[%s3 + $0x520] sm:$0xff]
  %v1340 = vld [vmem:[%s3 + $0x528] sm:$0xff]
  %v1341 = vld [vmem:[%s3 + $0x530] sm:$0xff]
  %v1342 = vld [vmem:[%s3 + $0x538] sm:$0xff]
  %v1343 = vld [vmem:[%s3 + $0x540] sm:$0xff]
  %v1344 = vld [vmem:[%s3 + $0x548] sm:$0xff]
  %v1345 = vld [vmem:[%s3 + $0x550] sm:$0xff]
  %v1346 = vld [vmem:[%s3 + $0x558] sm:$0xff]
  %v1347 = vld [vmem:[%s3 + $0x560] sm:$0xff]
  %v1348 = vld [vmem:[%s3 + $0x568] sm:$0xff]
  %v1349 = vld [vmem:[%s3 + $0x570] sm:$0xff]
  %v1350 = vld [vmem:[%s3 + $0x578] sm:$0xff]
  %v1351 = vld [vmem:[%s3 + $0x580] sm:$0xff]
  %v1352 = vld [vmem:[%s3 + $0x588] sm:$0xff]
  %v1353 = vld [vmem:[%s3 + $0x590] sm:$0xff]
  %v1354 = vld [vmem:[%s3 + $0x598] sm:$0xff]
  %v1355 = vld [vmem:[%s3 + $0x5a0] sm:$0xff]
  %v1356 = vld [vmem:[%s3 + $0x5a8] sm:$0xff]
  %v1357 = vld [vmem:[%s3 + $0x5b0] sm:$0xff]
  %v1358 = vld [vmem:[%s3 + $0x5b8] sm:$0xff]
  %v1359 = vld [vmem:[%s3 + $0x5c0] sm:$0xff]
  %v1360 = vld [vmem:[%s3 + $0x5c8] sm:$0xff]
  %v1361 = vld [vmem:[%s3 + $0x5d0] sm:$0xff]
  %v1362 = vld [vmem:[%s3 + $0x5d8] sm:$0xff]
  %v1363 = vld [vmem:[%s3 + $0x5e0] sm:$0xff]
  %v1364 = vld [vmem:[%s3 + $0x5e8] sm:$0xff]
  %v1365 = vld [vmem:[%s3 + $0x5f0] sm:$0xff]
  %v1366 = vld [vmem:[%s3 + $0x5f8] sm:$0xff]
  %v1367 = vld [vmem:[%s3 + $0x600] sm:$0xff]
  %v1368 = vld [vmem:[%s3 + $0x608] sm:$0xff]
  %v1369 = vld [vmem:[%s3 + $0x610] sm:$0xff]
  %v1370 = vld [vmem:[%s3 + $0x618] sm:$0xff]
  %v1371 = vld [vmem:[%s3 + $0x620] sm:$0xff]
  %v1372 = vld [vmem:[%s3 + $0x628] sm:$0xff]
  %v1373 = vld [vmem:[%s3 + $0x630] sm:$0xff]
  %v1374 = vld [vmem:[%s3 + $0x638] sm:$0xff]
  %v1375 = vld [vmem:[%s3 + $0x640] sm:$0xff]
  %v1376 = vld [vmem:[%s3 + $0x648] sm:$0xff]
  %v1377 = vld [vmem:[%s3 + $0x650] sm:$0xff]
  %v1378 = vld [vmem:[%s3 + $0x658] sm:$0xff]
  %v1379 = vld [vmem:[%s3 + $0x660] sm:$0xff]
  %v1380 = vld [vmem:[%s3 + $0x668] sm:$0xff]
  %v1381 = vld [vmem:[%s3 + $0x670] sm:$0xff]
  %v1382 = vld [vmem:[%s3 + $0x678] sm:$0xff]
  %v1383 = vld [vmem:[%s3 + $0x680] sm:$0xff]
  %v1384 = vld [vmem:[%s3 + $0x688] sm:$0xff]
  %v1385 = vld [vmem:[%s3 + $0x690] sm:$0xff]
  %v1386 = vld [vmem:[%s3 + $0x698] sm:$0xff]
  %v1387 = vld [vmem:[%s3 + $0x6a0] sm:$0xff]
  %v1388 = vld [vmem:[%s3 + $0x6a8] sm:$0xff]
  %v1389 = vld [vmem:[%s3 + $0x6b0] sm:$0xff]
  %v1390 = vld [vmem:[%s3 + $0x6b8] sm:$0xff]
  %v1391 = vld [vmem:[%s3 + $0x6c0] sm:$0xff]
  %v1392 = vld [vmem:[%s3 + $0x6c8] sm:$0xff]
  %v1393 = vld [vmem:[%s3 + $0x6d0] sm:$0xff]
  %v1394 = vld [vmem:[%s3 + $0x6d8] sm:$0xff]
  %v1395 = vld [vmem:[%s3 + $0x6e0] sm:$0xff]
  %v1396 = vld [vmem:[%s3 + $0x6e8] sm:$0xff]
  %v1397 = vld [vmem:[%s3 + $0x6f0] sm:$0xff]
  %v1398 = vld [vmem:[%s3 + $0x6f8] sm:$0xff]
  %v1399 = vld [vmem:[%s3 + $0x700] sm:$0xff]
  %v1400 = vld [vmem:[%s3 + $0x708] sm:$0xff]
  %v1401 = vld [vmem:[%s3 + $0x710] sm:$0xff]
  %v1402 = vld [vmem:[%s3 + $0x718] sm:$0xff]
  %v1403 = vld [vmem:[%s3 + $0x720] sm:$0xff]
  %v1404 = vld [vmem:[%s3 + $0x728] sm:$0xff]
  %v1405 = vld [vmem:[%s3 + $0x730] sm:$0xff]
  %v1406 = vld [vmem:[%s3 + $0x738] sm:$0xff]
  %v1407 = vld [vmem:[%s3 + $0x740] sm:$0xff]
  %v1408 = vld [vmem:[%s3 + $0x748] sm:$0xff]
  %v1409 = vld [vmem:[%s3 + $0x750] sm:$0xff]
  %v1410 = vld [vmem:[%s3 + $0x758] sm:$0xff]
  %v1411 = vld [vmem:[%s3 + $0x760] sm:$0xff]
  %v1412 = vld [vmem:[%s3 + $0x768] sm:$0xff]
  %v1413 = vld [vmem:[%s3 + $0x770] sm:$0xff]
  %v1414 = vld [vmem:[%s3 + $0x778] sm:$0xff]
  %v1415 = vld [vmem:[%s3 + $0x780] sm:$0xff]
  %v1416 = vld [vmem:[%s3 + $0x788] sm:$0xff]
  %v1417 = vld [vmem:[%s3 + $0x790] sm:$0xff]
  %v1418 = vld [vmem:[%s3 + $0x798] sm:$0xff]
  %v1419 = vld [vmem:[%s3 + $0x7a0] sm:$0xff]
  %v1420 = vld [vmem:[%s3 + $0x7a8] sm:$0xff]
  %v1421 = vld [vmem:[%s3 + $0x7b0] sm:$0xff]
  %v1422 = vld [vmem:[%s3 + $0x7b8] sm:$0xff]
  %v1423 = vld [vmem:[%s3 + $0x7c0] sm:$0xff]
  %v1424 = vld [vmem:[%s3 + $0x7c8] sm:$0xff]
  %v1425 = vld [vmem:[%s3 + $0x7d0] sm:$0xff]
  %v1426 = vld [vmem:[%s3 + $0x7d8] sm:$0xff]
  %v1427 = vld [vmem:[%s3 + $0x7e0] sm:$0xff]
  %v1428 = vld [vmem:[%s3 + $0x7e8] sm:$0xff]
  %v1429 = vld [vmem:[%s3 + $0x7f0] sm:$0xff]
  %v1430 = vld [vmem:[%s3 + $0x7f8] sm:$0xff]
  %v1431 = vld [vmem:[%s3 + $0x800] sm:$0xff]
  %v1432 = vld [vmem:[%s3 + $0x808] sm:$0xff]
  %v1433 = vld [vmem:[%s3 + $0x810] sm:$0xff]
  %v1434 = vld [vmem:[%s3 + $0x818] sm:$0xff]
  %v1435 = vld [vmem:[%s3 + $0x820] sm:$0xff]
  %v1436 = vld [vmem:[%s3 + $0x828] sm:$0xff]
  %v1437 = vld [vmem:[%s3 + $0x830] sm:$0xff]
  %v1438 = vld [vmem:[%s3 + $0x838] sm:$0xff]
  %v1439 = vld [vmem:[%s3 + $0x840] sm:$0xff]
  %v1440 = vld [vmem:[%s3 + $0x848] sm:$0xff]
  %v1441 = vld [vmem:[%s3 + $0x850] sm:$0xff]
  %v1442 = vld [vmem:[%s3 + $0x858] sm:$0xff]
  %v1443 = vld [vmem:[%s3 + $0x860] sm:$0xff]
  %v1444 = vld [vmem:[%s3 + $0x868] sm:$0xff]
  %v1445 = vld [vmem:[%s3 + $0x870] sm:$0xff]
  %v1446 = vld [vmem:[%s3 + $0x878] sm:$0xff]
  %v1447 = vld [vmem:[%s3 + $0x880] sm:$0xff]
  %v1448 = vld [vmem:[%s3 + $0x888] sm:$0xff]
  %v1449 = vld [vmem:[%s3 + $0x890] sm:$0xff]
  %v1450 = vld [vmem:[%s3 + $0x898] sm:$0xff]
  %v1451 = vld [vmem:[%s3 + $0x8a0] sm:$0xff]
  %v1452 = vld [vmem:[%s3 + $0x8a8] sm:$0xff]
  %v1453 = vld [vmem:[%s3 + $0x8b0] sm:$0xff]
  %v1454 = vld [vmem:[%s3 + $0x8b8] sm:$0xff]
  %v1455 = vld [vmem:[%s3 + $0x8c0] sm:$0xff]
  %v1456 = vld [vmem:[%s3 + $0x8c8] sm:$0xff]
  %v1457 = vld [vmem:[%s3 + $0x8d0] sm:$0xff]
  %v1458 = vld [vmem:[%s3 + $0x8d8] sm:$0xff]
  %v1459 = vld [vmem:[%s3 + $0x8e0] sm:$0xff]
  %v1460 = vld [vmem:[%s3 + $0x8e8] sm:$0xff]
  %v1461 = vld [vmem:[%s3 + $0x8f0] sm:$0xff]
  %v1462 = vld [vmem:[%s3 + $0x8f8] sm:$0xff]
  %v1463 = vld [vmem:[%s3 + $0x900] sm:$0xff]
  %v1464 = vld [vmem:[%s3 + $0x908] sm:$0xff]
  %v1465 = vld [vmem:[%s3 + $0x910] sm:$0xff]
  %v1466 = vld [vmem:[%s3 + $0x918] sm:$0xff]
  %v1467 = vld [vmem:[%s3 + $0x920] sm:$0xff]
  %v1468 = vld [vmem:[%s3 + $0x928] sm:$0xff]
  %v1469 = vld [vmem:[%s3 + $0x930] sm:$0xff]
  %v1470 = vld [vmem:[%s3 + $0x938] sm:$0xff]
  %v1471 = vld [vmem:[%s3 + $0x940] sm:$0xff]
  %v1472 = vld [vmem:[%s3 + $0x948] sm:$0xff]
  %v1473 = vld [vmem:[%s3 + $0x950] sm:$0xff]
  %v1474 = vld [vmem:[%s3 + $0x958] sm:$0xff]
  %v1475 = vld [vmem:[%s3 + $0x960] sm:$0xff]
  %v1476 = vld [vmem:[%s3 + $0x968] sm:$0xff]
  %v1477 = vld [vmem:[%s3 + $0x970] sm:$0xff]
  %v1478 = vld [vmem:[%s3 + $0x978] sm:$0xff]
  %v1479 = vld [vmem:[%s3 + $0x980] sm:$0xff]
  %v1480 = vld [vmem:[%s3 + $0x988] sm:$0xff]
  %v1481 = vld [vmem:[%s3 + $0x990] sm:$0xff]
  %v1482 = vld [vmem:[%s3 + $0x998] sm:$0xff]
  %v1483 = vld [vmem:[%s3 + $0x9a0] sm:$0xff]
  %v1484 = vld [vmem:[%s3 + $0x9a8] sm:$0xff]
  %v1485 = vld [vmem:[%s3 + $0x9b0] sm:$0xff]
  %v1486 = vld [vmem:[%s3 + $0x9b8] sm:$0xff]
  %v1487 = vld [vmem:[%s3 + $0x9c0] sm:$0xff]
  %v1488 = vld [vmem:[%s3 + $0x9c8] sm:$0xff]
  %v1489 = vld [vmem:[%s3 + $0x9d0] sm:$0xff]
  %v1490 = vld [vmem:[%s3 + $0x9d8] sm:$0xff]
  %v1491 = vld [vmem:[%s3 + $0x9e0] sm:$0xff]
  %v1492 = vld [vmem:[%s3 + $0x9e8] sm:$0xff]
  %v1493 = vld [vmem:[%s3 + $0x9f0] sm:$0xff]
  %v1494 = vld [vmem:[%s3 + $0x9f8] sm:$0xff]
  %v1495 = vld [vmem:[%s3 + $0xa00] sm:$0xff]
  %v1496 = vld [vmem:[%s3 + $0xa08] sm:$0xff]
  %v1497 = vld [vmem:[%s3 + $0xa10] sm:$0xff]
  %v1498 = vld [vmem:[%s3 + $0xa18] sm:$0xff]
  %v1499 = vld [vmem:[%s3 + $0xa20] sm:$0xff]
  %v1500 = vld [vmem:[%s3 + $0xa28] sm:$0xff]
  %v1501 = vld [vmem:[%s3 + $0xa30] sm:$0xff]
  %v1502 = vld [vmem:[%s3 + $0xa38] sm:$0xff]
  %v1503 = vld [vmem:[%s3 + $0xa40] sm:$0xff]
  %v1504 = vld [vmem:[%s3 + $0xa48] sm:$0xff]
  %v1505 = vld [vmem:[%s3 + $0xa50] sm:$0xff]
  %v1506 = vld [vmem:[%s3 + $0xa58] sm:$0xff]
  %v1507 = vld [vmem:[%s3 + $0xa60] sm:$0xff]
  %v1508 = vld [vmem:[%s3 + $0xa68] sm:$0xff]
  %v1509 = vld [vmem:[%s3 + $0xa70] sm:$0xff]
  %v1510 = vld [vmem:[%s3 + $0xa78] sm:$0xff]
  %v1511 = vld [vmem:[%s3 + $0xa80] sm:$0xff]
  %v1512 = vld [vmem:[%s3 + $0xa88] sm:$0xff]
  %v1513 = vld [vmem:[%s3 + $0xa90] sm:$0xff]
  %v1514 = vld [vmem:[%s3 + $0xa98] sm:$0xff]
  %v1515 = vld [vmem:[%s3 + $0xaa0] sm:$0xff]
  %v1516 = vld [vmem:[%s3 + $0xaa8] sm:$0xff]
  %v1517 = vld [vmem:[%s3 + $0xab0] sm:$0xff]
  %v1518 = vld [vmem:[%s3 + $0xab8] sm:$0xff]
  %v1519 = vld [vmem:[%s3 + $0xac0] sm:$0xff]
  %v1520 = vld [vmem:[%s3 + $0xac8] sm:$0xff]
  %v1521 = vld [vmem:[%s3 + $0xad0] sm:$0xff]
  %v1522 = vld [vmem:[%s3 + $0xad8] sm:$0xff]
  %v1523 = vld [vmem:[%s3 + $0xae0] sm:$0xff]
  %v1524 = vld [vmem:[%s3 + $0xae8] sm:$0xff]
  %v1525 = vld [vmem:[%s3 + $0xaf0] sm:$0xff]
  %v1526 = vld [vmem:[%s3 + $0xaf8] sm:$0xff]
  %v1527 = vld [vmem:[%s3 + $0xb00] sm:$0xff]
  %v1528 = vld [vmem:[%s3 + $0xb08] sm:$0xff]
  %v1529 = vld [vmem:[%s3 + $0xb10] sm:$0xff]
  %v1530 = vld [vmem:[%s3 + $0xb18] sm:$0xff]
  %v1531 = vld [vmem:[%s3 + $0xb20] sm:$0xff]
  %v1532 = vld [vmem:[%s3 + $0xb28] sm:$0xff]
  %v1533 = vld [vmem:[%s3 + $0xb30] sm:$0xff]
  %v1534 = vld [vmem:[%s3 + $0xb38] sm:$0xff]
  %v1535 = vld [vmem:[%s3 + $0xb40] sm:$0xff]
  %v1536 = vld [vmem:[%s3 + $0xb48] sm:$0xff]
  %v1537 = vld [vmem:[%s3 + $0xb50] sm:$0xff]
  %v1538 = vld [vmem:[%s3 + $0xb58] sm:$0xff]
  %v1539 = vld [vmem:[%s3 + $0xb60] sm:$0xff]
  %v1540 = vld [vmem:[%s3 + $0xb68] sm:$0xff]
  %v1541 = vld [vmem:[%s3 + $0xb70] sm:$0xff]
  %v1542 = vld [vmem:[%s3 + $0xb78] sm:$0xff]
  %v1543 = vld [vmem:[%s3 + $0xb80] sm:$0xff]
  %v1544 = vld [vmem:[%s3 + $0xb88] sm:$0xff]
  %v1545 = vld [vmem:[%s3 + $0xb90] sm:$0xff]
  %v1546 = vld [vmem:[%s3 + $0xb98] sm:$0xff]
  %v1547 = vld [vmem:[%s3 + $0xba0] sm:$0xff]
  %v1548 = vld [vmem:[%s3 + $0xba8] sm:$0xff]
  %v1549 = vld [vmem:[%s3 + $0xbb0] sm:$0xff]
  %v1550 = vld [vmem:[%s3 + $0xbb8] sm:$0xff]
  %v1551 = vld [vmem:[%s3 + $0xbc0] sm:$0xff]
  %v1552 = vld [vmem:[%s3 + $0xbc8] sm:$0xff]
  %v1553 = vld [vmem:[%s3 + $0xbd0] sm:$0xff]
  %v1554 = vld [vmem:[%s3 + $0xbd8] sm:$0xff]
  %v1555 = vld [vmem:[%s3 + $0xbe0] sm:$0xff]
  %v1556 = vld [vmem:[%s3 + $0xbe8] sm:$0xff]
  %v1557 = vld [vmem:[%s3 + $0xbf0] sm:$0xff]
  %v1558 = vld [vmem:[%s3 + $0xbf8] sm:$0xff]
  %v1559 = vld [vmem:[%s3 + $0xc00] sm:$0xff]
  %v1560 = vld [vmem:[%s3 + $0xc08] sm:$0xff]
  %v1561 = vld [vmem:[%s3 + $0xc10] sm:$0xff]
  %v1562 = vld [vmem:[%s3 + $0xc18] sm:$0xff]
  %v1563 = vld [vmem:[%s3 + $0xc20] sm:$0xff]
  %v1564 = vld [vmem:[%s3 + $0xc28] sm:$0xff]
  %v1565 = vld [vmem:[%s3 + $0xc30] sm:$0xff]
  %v1566 = vld [vmem:[%s3 + $0xc38] sm:$0xff]
  %v1567 = vld [vmem:[%s3 + $0xc40] sm:$0xff]
  %v1568 = vld [vmem:[%s3 + $0xc48] sm:$0xff]
  %v1569 = vld [vmem:[%s3 + $0xc50] sm:$0xff]
  %v1570 = vld [vmem:[%s3 + $0xc58] sm:$0xff]
  %v1571 = vld [vmem:[%s3 + $0xc60] sm:$0xff]
  %v1572 = vld [vmem:[%s3 + $0xc68] sm:$0xff]
  %v1573 = vld [vmem:[%s3 + $0xc70] sm:$0xff]
  %v1574 = vld [vmem:[%s3 + $0xc78] sm:$0xff]
  %v1575 = vld [vmem:[%s3 + $0xc80] sm:$0xff]
  %v1576 = vld [vmem:[%s3 + $0xc88] sm:$0xff]
  %v1577 = vld [vmem:[%s3 + $0xc90] sm:$0xff]
  %v1578 = vld [vmem:[%s3 + $0xc98] sm:$0xff]
  %v1579 = vld [vmem:[%s3 + $0xca0] sm:$0xff]
  %v1580 = vld [vmem:[%s3 + $0xca8] sm:$0xff]
  %v1581 = vld [vmem:[%s3 + $0xcb0] sm:$0xff]
  %v1582 = vld [vmem:[%s3 + $0xcb8] sm:$0xff]
  %v1583 = vld [vmem:[%s3 + $0xcc0] sm:$0xff]
  %v1584 = vld [vmem:[%s3 + $0xcc8] sm:$0xff]
  %v1585 = vld [vmem:[%s3 + $0xcd0] sm:$0xff]
  %v1586 = vld [vmem:[%s3 + $0xcd8] sm:$0xff]
  %v1587 = vld [vmem:[%s3 + $0xce0] sm:$0xff]
  %v1588 = vld [vmem:[%s3 + $0xce8] sm:$0xff]
  %v1589 = vld [vmem:[%s3 + $0xcf0] sm:$0xff]
  %v1590 = vld [vmem:[%s3 + $0xcf8] sm:$0xff]
  %v1591 = vld [vmem:[%s3 + $0xd00] sm:$0xff]
  %v1592 = vld [vmem:[%s3 + $0xd08] sm:$0xff]
  %v1593 = vld [vmem:[%s3 + $0xd10] sm:$0xff]
  %v1594 = vld [vmem:[%s3 + $0xd18] sm:$0xff]
  %v1595 = vld [vmem:[%s3 + $0xd20] sm:$0xff]
  %v1596 = vld [vmem:[%s3 + $0xd28] sm:$0xff]
  %v1597 = vld [vmem:[%s3 + $0xd30] sm:$0xff]
  %v1598 = vld [vmem:[%s3 + $0xd38] sm:$0xff]
  %v1599 = vld [vmem:[%s3 + $0xd40] sm:$0xff]
  %v1600 = vld [vmem:[%s3 + $0xd48] sm:$0xff]
  %v1601 = vld [vmem:[%s3 + $0xd50] sm:$0xff]
  %v1602 = vld [vmem:[%s3 + $0xd58] sm:$0xff]
  %v1603 = vld [vmem:[%s3 + $0xd60] sm:$0xff]
  %v1604 = vld [vmem:[%s3 + $0xd68] sm:$0xff]
  %v1605 = vld [vmem:[%s3 + $0xd70] sm:$0xff]
  %v1606 = vld [vmem:[%s3 + $0xd78] sm:$0xff]
  %v1607 = vld [vmem:[%s3 + $0xd80] sm:$0xff]
  %v1608 = vld [vmem:[%s3 + $0xd88] sm:$0xff]
  %v1609 = vld [vmem:[%s3 + $0xd90] sm:$0xff]
  %v1610 = vld [vmem:[%s3 + $0xd98] sm:$0xff]
  %v1611 = vld [vmem:[%s3 + $0xda0] sm:$0xff]
  %v1612 = vld [vmem:[%s3 + $0xda8] sm:$0xff]
  %v1613 = vld [vmem:[%s3 + $0xdb0] sm:$0xff]
  %v1614 = vld [vmem:[%s3 + $0xdb8] sm:$0xff]
  %v1615 = vld [vmem:[%s3 + $0xdc0] sm:$0xff]
  %v1616 = vld [vmem:[%s3 + $0xdc8] sm:$0xff]
  %v1617 = vld [vmem:[%s3 + $0xdd0] sm:$0xff]
  %v1618 = vld [vmem:[%s3 + $0xdd8] sm:$0xff]
  %v1619 = vld [vmem:[%s3 + $0xde0] sm:$0xff]
  %v1620 = vld [vmem:[%s3 + $0xde8] sm:$0xff]
  %v1621 = vld [vmem:[%s3 + $0xdf0] sm:$0xff]
  %v1622 = vld [vmem:[%s3 + $0xdf8] sm:$0xff]
  %v1623 = vld [vmem:[%s3 + $0xe00] sm:$0xff]
  %v1624 = vld [vmem:[%s3 + $0xe08] sm:$0xff]
  %v1625 = vld [vmem:[%s3 + $0xe10] sm:$0xff]
  %v1626 = vld [vmem:[%s3 + $0xe18] sm:$0xff]
  %v1627 = vld [vmem:[%s3 + $0xe20] sm:$0xff]
  %v1628 = vld [vmem:[%s3 + $0xe28] sm:$0xff]
  %v1629 = vld [vmem:[%s3 + $0xe30] sm:$0xff]
  %v1630 = vld [vmem:[%s3 + $0xe38] sm:$0xff]
  %v1631 = vld [vmem:[%s3 + $0xe40] sm:$0xff]
  %v1632 = vld [vmem:[%s3 + $0xe48] sm:$0xff]
  %v1633 = vld [vmem:[%s3 + $0xe50] sm:$0xff]
  %v1634 = vld [vmem:[%s3 + $0xe58] sm:$0xff]
  %v1635 = vld [vmem:[%s3 + $0xe60] sm:$0xff]
  %v1636 = vld [vmem:[%s3 + $0xe68] sm:$0xff]
  %v1637 = vld [vmem:[%s3 + $0xe70] sm:$0xff]
  %v1638 = vld [vmem:[%s3 + $0xe78] sm:$0xff]
  %v1639 = vld [vmem:[%s3 + $0xe80] sm:$0xff]
  %v1640 = vld [vmem:[%s3 + $0xe88] sm:$0xff]
  %v1641 = vld [vmem:[%s3 + $0xe90] sm:$0xff]
  %v1642 = vld [vmem:[%s3 + $0xe98] sm:$0xff]
  %v1643 = vld [vmem:[%s3 + $0xea0] sm:$0xff]
  %v1644 = vld [vmem:[%s3 + $0xea8] sm:$0xff]
  %v1645 = vld [vmem:[%s3 + $0xeb0] sm:$0xff]
  %v1646 = vld [vmem:[%s3 + $0xeb8] sm:$0xff]
  %v1647 = vld [vmem:[%s3 + $0xec0] sm:$0xff]
  %v1648 = vld [vmem:[%s3 + $0xec8] sm:$0xff]
  %v1649 = vld [vmem:[%s3 + $0xed0] sm:$0xff]
  %v1650 = vld [vmem:[%s3 + $0xed8] sm:$0xff]
  %v1651 = vld [vmem:[%s3 + $0xee0] sm:$0xff]
  %v1652 = vld [vmem:[%s3 + $0xee8] sm:$0xff]
  %v1653 = vld [vmem:[%s3 + $0xef0] sm:$0xff]
  %v1654 = vld [vmem:[%s3 + $0xef8] sm:$0xff]
  %v1655 = vld [vmem:[%s3 + $0xf00] sm:$0xff]
  %v1656 = vld [vmem:[%s3 + $0xf08] sm:$0xff]
  %v1657 = vld [vmem:[%s3 + $0xf10] sm:$0xff]
  %v1658 = vld [vmem:[%s3 + $0xf18] sm:$0xff]
  %v1659 = vld [vmem:[%s3 + $0xf20] sm:$0xff]
  %v1660 = vld [vmem:[%s3 + $0xf28] sm:$0xff]
  %v1661 = vld [vmem:[%s3 + $0xf30] sm:$0xff]
  %v1662 = vld [vmem:[%s3 + $0xf38] sm:$0xff]
  %v1663 = vld [vmem:[%s3 + $0xf40] sm:$0xff]
  %v1664 = vld [vmem:[%s3 + $0xf48] sm:$0xff]
  %v1665 = vld [vmem:[%s3 + $0xf50] sm:$0xff]
  %v1666 = vld [vmem:[%s3 + $0xf58] sm:$0xff]
  %v1667 = vld [vmem:[%s3 + $0xf60] sm:$0xff]
  %v1668 = vld [vmem:[%s3 + $0xf68] sm:$0xff]
  %v1669 = vld [vmem:[%s3 + $0xf70] sm:$0xff]
  %v1670 = vld [vmem:[%s3 + $0xf78] sm:$0xff]
  %v1671 = vld [vmem:[%s3 + $0xf80] sm:$0xff]
  %v1672 = vld [vmem:[%s3 + $0xf88] sm:$0xff]
  %v1673 = vld [vmem:[%s3 + $0xf90] sm:$0xff]
  %v1674 = vld [vmem:[%s3 + $0xf98] sm:$0xff]
  %v1675 = vld [vmem:[%s3 + $0xfa0] sm:$0xff]
  %v1676 = vld [vmem:[%s3 + $0xfa8] sm:$0xff]
  %v1677 = vld [vmem:[%s3 + $0xfb0] sm:$0xff]
  %v1678 = vld [vmem:[%s3 + $0xfb8] sm:$0xff]
  %v1679 = vld [vmem:[%s3 + $0xfc0] sm:$0xff]
  %v1680 = vld [vmem:[%s3 + $0xfc8] sm:$0xff]
  %v1681 = vld [vmem:[%s3 + $0xfd0] sm:$0xff]
  %v1682 = vld [vmem:[%s3 + $0xfd8] sm:$0xff]
  %v1683 = vld [vmem:[%s3 + $0xfe0] sm:$0xff]
  %v1684 = vld [vmem:[%s3 + $0xfe8] sm:$0xff]
  %v1685 = vld [vmem:[%s3 + $0xff0] sm:$0xff]
  %v1686 = vld [vmem:[%s3 + $0xff8] sm:$0xff]
  %v1687 = vld [vmem:[%s3 + $0x1000] sm:$0xff]
  %v1688 = vld [vmem:[%s3 + $0x1008] sm:$0xff]
  %v1689 = vld [vmem:[%s3 + $0x1010] sm:$0xff]
  %v1690 = vld [vmem:[%s3 + $0x1018] sm:$0xff]
  %v1691 = vld [vmem:[%s3 + $0x1020] sm:$0xff]
  %v1692 = vld [vmem:[%s3 + $0x1028] sm:$0xff]
  %v1693 = vld [vmem:[%s3 + $0x1030] sm:$0xff]
  %v1694 = vld [vmem:[%s3 + $0x1038] sm:$0xff]
  %v1695 = vld [vmem:[%s3 + $0x1040] sm:$0xff]
  %v1696 = vld [vmem:[%s3 + $0x1048] sm:$0xff]
  %v1697 = vld [vmem:[%s3 + $0x1050] sm:$0xff]
  %v1698 = vld [vmem:[%s3 + $0x1058] sm:$0xff]
  %v1699 = vld [vmem:[%s3 + $0x1060] sm:$0xff]
  %v1700 = vld [vmem:[%s3 + $0x1068] sm:$0xff]
  %v1701 = vld [vmem:[%s3 + $0x1070] sm:$0xff]
  %v1702 = vld [vmem:[%s3 + $0x1078] sm:$0xff]
  %v1703 = vld [vmem:[%s3 + $0x1080] sm:$0xff]
  %v1704 = vld [vmem:[%s3 + $0x1088] sm:$0xff]
  %v1705 = vld [vmem:[%s3 + $0x1090] sm:$0xff]
  %v1706 = vld [vmem:[%s3 + $0x1098] sm:$0xff]
  %v1707 = vld [vmem:[%s3 + $0x10a0] sm:$0xff]
  %v1708 = vld [vmem:[%s3 + $0x10a8] sm:$0xff]
  %v1709 = vld [vmem:[%s3 + $0x10b0] sm:$0xff]
  %v1710 = vld [vmem:[%s3 + $0x10b8] sm:$0xff]
  %v1711 = vld [vmem:[%s3 + $0x10c0] sm:$0xff]
  %v1712 = vld [vmem:[%s3 + $0x10c8] sm:$0xff]
  %v1713 = vld [vmem:[%s3 + $0x10d0] sm:$0xff]
  %v1714 = vld [vmem:[%s3 + $0x10d8] sm:$0xff]
  %v1715 = vld [vmem:[%s3 + $0x10e0] sm:$0xff]
  %v1716 = vld [vmem:[%s3 + $0x10e8] sm:$0xff]
  %v1717 = vld [vmem:[%s3 + $0x10f0] sm:$0xff]
  %v1718 = vld [vmem:[%s3 + $0x10f8] sm:$0xff]
  %v1719 = vld [vmem:[%s3 + $0x1100] sm:$0xff]
  %v1720 = vld [vmem:[%s3 + $0x1108] sm:$0xff]
  %v1721 = vld [vmem:[%s3 + $0x1110] sm:$0xff]
  %v1722 = vld [vmem:[%s3 + $0x1118] sm:$0xff]
  %v1723 = vld [vmem:[%s3 + $0x1120] sm:$0xff]
  %v1724 = vld [vmem:[%s3 + $0x1128] sm:$0xff]
  %v1725 = vld [vmem:[%s3 + $0x1130] sm:$0xff]
  %v1726 = vld [vmem:[%s3 + $0x1138] sm:$0xff]
  %v1727 = vld [vmem:[%s3 + $0x1140] sm:$0xff]
  %v1728 = vld [vmem:[%s3 + $0x1148] sm:$0xff]
  %v1729 = vld [vmem:[%s3 + $0x1150] sm:$0xff]
  %v1730 = vld [vmem:[%s3 + $0x1158] sm:$0xff]
  %v1731 = vld [vmem:[%s3 + $0x1160] sm:$0xff]
  %v1732 = vld [vmem:[%s3 + $0x1168] sm:$0xff]
  %v1733 = vld [vmem:[%s3 + $0x1170] sm:$0xff]
  %v1734 = vld [vmem:[%s3 + $0x1178] sm:$0xff]
  %v1735 = vld [vmem:[%s3 + $0x1180] sm:$0xff]
  %v1736 = vld [vmem:[%s3 + $0x1188] sm:$0xff]
  %v1737 = vld [vmem:[%s3 + $0x1190] sm:$0xff]
  %v1738 = vld [vmem:[%s3 + $0x1198] sm:$0xff]
  %v1739 = vld [vmem:[%s3 + $0x11a0] sm:$0xff]
  %v1740 = vld [vmem:[%s3 + $0x11a8] sm:$0xff]
  %v1741 = vld [vmem:[%s3 + $0x11b0] sm:$0xff]
  %v1742 = vld [vmem:[%s3 + $0x11b8] sm:$0xff]
  %v1743 = vld [vmem:[%s3 + $0x11c0] sm:$0xff]
  %v1744 = vld [vmem:[%s3 + $0x11c8] sm:$0xff]
  %v1745 = vld [vmem:[%s3 + $0x11d0] sm:$0xff]
  %v1746 = vld [vmem:[%s3 + $0x11d8] sm:$0xff]
  %v1747 = vld [vmem:[%s3 + $0x11e0] sm:$0xff]
  %v1748 = vld [vmem:[%s3 + $0x11e8] sm:$0xff]
  %v1749 = vld [vmem:[%s3 + $0x11f0] sm:$0xff]
  %v1750 = vld [vmem:[%s3 + $0x11f8] sm:$0xff]
  %v1751 = vld [vmem:[%s3 + $0x1200] sm:$0xff]
  %v1752 = vld [vmem:[%s3 + $0x1208] sm:$0xff]
  %v1753 = vld [vmem:[%s3 + $0x1210] sm:$0xff]
  %v1754 = vld [vmem:[%s3 + $0x1218] sm:$0xff]
  %v1755 = vld [vmem:[%s3 + $0x1220] sm:$0xff]
  %v1756 = vld [vmem:[%s3 + $0x1228] sm:$0xff]
  %v1757 = vld [vmem:[%s3 + $0x1230] sm:$0xff]
  %v1758 = vld [vmem:[%s3 + $0x1238] sm:$0xff]
  %v1759 = vld [vmem:[%s3 + $0x1240] sm:$0xff]
  %v1760 = vld [vmem:[%s3 + $0x1248] sm:$0xff]
  %v1761 = vld [vmem:[%s3 + $0x1250] sm:$0xff]
  %v1762 = vld [vmem:[%s3 + $0x1258] sm:$0xff]
  %v1763 = vld [vmem:[%s3 + $0x1260] sm:$0xff]
  %v1764 = vld [vmem:[%s3 + $0x1268] sm:$0xff]
  %v1765 = vld [vmem:[%s3 + $0x1270] sm:$0xff]
  %v1766 = vld [vmem:[%s3 + $0x1278] sm:$0xff]
  %v1767 = vld [vmem:[%s3 + $0x1280] sm:$0xff]
  %v1768 = vld [vmem:[%s3 + $0x1288] sm:$0xff]
  %v1769 = vld [vmem:[%s3 + $0x1290] sm:$0xff]
  %v1770 = vld [vmem:[%s3 + $0x1298] sm:$0xff]
  %v1771 = vld [vmem:[%s3 + $0x12a0] sm:$0xff]
  %v1772 = vld [vmem:[%s3 + $0x12a8] sm:$0xff]
  %v1773 = vld [vmem:[%s3 + $0x12b0] sm:$0xff]
  %v1774 = vld [vmem:[%s3 + $0x12b8] sm:$0xff]
  %v1775 = vld [vmem:[%s3 + $0x12c0] sm:$0xff]
  %v1776 = vld [vmem:[%s3 + $0x12c8] sm:$0xff]
  %v1777 = vld [vmem:[%s3 + $0x12d0] sm:$0xff]
  %v1778 = vld [vmem:[%s3 + $0x12d8] sm:$0xff]
  %v1779 = vld [vmem:[%s3 + $0x12e0] sm:$0xff]
  %v1780 = vld [vmem:[%s3 + $0x12e8] sm:$0xff]
  %v1781 = vld [vmem:[%s3 + $0x12f0] sm:$0xff]
  %v1782 = vld [vmem:[%s3 + $0x12f8] sm:$0xff]
  %v1783 = vld [vmem:[%s3 + $0x1300] sm:$0xff]
  %v1784 = vld [vmem:[%s3 + $0x1308] sm:$0xff]
  %v1785 = vld [vmem:[%s3 + $0x1310] sm:$0xff]
  %v1786 = vld [vmem:[%s3 + $0x1318] sm:$0xff]
  %v1787 = vld [vmem:[%s3 + $0x1320] sm:$0xff]
  %v1788 = vld [vmem:[%s3 + $0x1328] sm:$0xff]
  %v1789 = vld [vmem:[%s3 + $0x1330] sm:$0xff]
  %v1790 = vld [vmem:[%s3 + $0x1338] sm:$0xff]
  %v1791 = vld [vmem:[%s3 + $0x1340] sm:$0xff]
  %v1792 = vld [vmem:[%s3 + $0x1348] sm:$0xff]
  %v1793 = vld [vmem:[%s3 + $0x1350] sm:$0xff]
  %v1794 = vld [vmem:[%s3 + $0x1358] sm:$0xff]
  %v1795 = vld [vmem:[%s3 + $0x1360] sm:$0xff]
  %v1796 = vld [vmem:[%s3 + $0x1368] sm:$0xff]
  %v1797 = vld [vmem:[%s3 + $0x1370] sm:$0xff]
  %v1798 = vld [vmem:[%s3 + $0x1378] sm:$0xff]
  %v1799 = vld [vmem:[%s3 + $0x1380] sm:$0xff]
  %v1800 = vld [vmem:[%s3 + $0x1388] sm:$0xff]
  %v1801 = vld [vmem:[%s3 + $0x1390] sm:$0xff]
  %v1802 = vld [vmem:[%s3 + $0x1398] sm:$0xff]
  %v1803 = vld [vmem:[%s3 + $0x13a0] sm:$0xff]
  %v1804 = vld [vmem:[%s3 + $0x13a8] sm:$0xff]
  %v1805 = vld [vmem:[%s3 + $0x13b0] sm:$0xff]
  %v1806 = vld [vmem:[%s3 + $0x13b8] sm:$0xff]
  %v1807 = vld [vmem:[%s3 + $0x13c0] sm:$0xff]
  %v1808 = vld [vmem:[%s3 + $0x13c8] sm:$0xff]
  %v1809 = vld [vmem:[%s3 + $0x13d0] sm:$0xff]
  %v1810 = vld [vmem:[%s3 + $0x13d8] sm:$0xff]
  %v1811 = vld [vmem:[%s3 + $0x13e0] sm:$0xff]
  %v1812 = vld [vmem:[%s3 + $0x13e8] sm:$0xff]
  %v1813 = vld [vmem:[%s3 + $0x13f0] sm:$0xff]
  %v1814 = vld [vmem:[%s3 + $0x13f8] sm:$0xff]
  %v1815 = vld [vmem:[%s3 + $0x1400] sm:$0xff]
  %v1816 = vld [vmem:[%s3 + $0x1408] sm:$0xff]
  %v1817 = vld [vmem:[%s3 + $0x1410] sm:$0xff]
  %v1818 = vld [vmem:[%s3 + $0x1418] sm:$0xff]
  %v1819 = vld [vmem:[%s3 + $0x1420] sm:$0xff]
  %v1820 = vld [vmem:[%s3 + $0x1428] sm:$0xff]
  %v1821 = vld [vmem:[%s3 + $0x1430] sm:$0xff]
  %v1822 = vld [vmem:[%s3 + $0x1438] sm:$0xff]
  %v1823 = vld [vmem:[%s3 + $0x1440] sm:$0xff]
  %v1824 = vld [vmem:[%s3 + $0x1448] sm:$0xff]
  %v1825 = vld [vmem:[%s3 + $0x1450] sm:$0xff]
  %v1826 = vld [vmem:[%s3 + $0x1458] sm:$0xff]
  %v1827 = vld [vmem:[%s3 + $0x1460] sm:$0xff]
  %v1828 = vld [vmem:[%s3 + $0x1468] sm:$0xff]
  %v1829 = vld [vmem:[%s3 + $0x1470] sm:$0xff]
  %v1830 = vld [vmem:[%s3 + $0x1478] sm:$0xff]
  %v1831 = vld [vmem:[%s3 + $0x1480] sm:$0xff]
  %v1832 = vld [vmem:[%s3 + $0x1488] sm:$0xff]
  %v1833 = vld [vmem:[%s3 + $0x1490] sm:$0xff]
  %v1834 = vld [vmem:[%s3 + $0x1498] sm:$0xff]
  %v1835 = vld [vmem:[%s3 + $0x14a0] sm:$0xff]
  %v1836 = vld [vmem:[%s3 + $0x14a8] sm:$0xff]
  %v1837 = vld [vmem:[%s3 + $0x14b0] sm:$0xff]
  %v1838 = vld [vmem:[%s3 + $0x14b8] sm:$0xff]
  %v1839 = vld [vmem:[%s3 + $0x14c0] sm:$0xff]
  %v1840 = vld [vmem:[%s3 + $0x14c8] sm:$0xff]
  %v1841 = vld [vmem:[%s3 + $0x14d0] sm:$0xff]
  %v1842 = vld [vmem:[%s3 + $0x14d8] sm:$0xff]
  %v1843 = vld [vmem:[%s3 + $0x14e0] sm:$0xff]
  %v1844 = vld [vmem:[%s3 + $0x14e8] sm:$0xff]
  %v1845 = vld [vmem:[%s3 + $0x14f0] sm:$0xff]
  %v1846 = vld [vmem:[%s3 + $0x14f8] sm:$0xff]
  %v1847 = vld [vmem:[%s3 + $0x1500] sm:$0xff]
  %v1848 = vld [vmem:[%s3 + $0x1508] sm:$0xff]
  %v1849 = vld [vmem:[%s3 + $0x1510] sm:$0xff]
  %v1850 = vld [vmem:[%s3 + $0x1518] sm:$0xff]
  %v1851 = vld [vmem:[%s3 + $0x1520] sm:$0xff]
  %v1852 = vld [vmem:[%s3 + $0x1528] sm:$0xff]
  %v1853 = vld [vmem:[%s3 + $0x1530] sm:$0xff]
  %v1854 = vld [vmem:[%s3 + $0x1538] sm:$0xff]
  %v1855 = vld [vmem:[%s3 + $0x1540] sm:$0xff]
  %v1856 = vld [vmem:[%s3 + $0x1548] sm:$0xff]
  %v1857 = vld [vmem:[%s3 + $0x1550] sm:$0xff]
  %v1858 = vld [vmem:[%s3 + $0x1558] sm:$0xff]
  %v1859 = vld [vmem:[%s3 + $0x1560] sm:$0xff]
  %v1860 = vld [vmem:[%s3 + $0x1568] sm:$0xff]
  %v1861 = vld [vmem:[%s3 + $0x1570] sm:$0xff]
  %v1862 = vld [vmem:[%s3 + $0x1578] sm:$0xff]
  %v1863 = vld [vmem:[%s3 + $0x1580] sm:$0xff]
  %v1864 = vld [vmem:[%s3 + $0x1588] sm:$0xff]
  %v1865 = vld [vmem:[%s3 + $0x1590] sm:$0xff]
  %v1866 = vld [vmem:[%s3 + $0x1598] sm:$0xff]
  %v1867 = vld [vmem:[%s3 + $0x15a0] sm:$0xff]
  %v1868 = vld [vmem:[%s3 + $0x15a8] sm:$0xff]
  %v1869 = vld [vmem:[%s3 + $0x15b0] sm:$0xff]
  %v1870 = vld [vmem:[%s3 + $0x15b8] sm:$0xff]
  %v1871 = vld [vmem:[%s3 + $0x15c0] sm:$0xff]
  %v1872 = vld [vmem:[%s3 + $0x15c8] sm:$0xff]
  %v1873 = vld [vmem:[%s3 + $0x15d0] sm:$0xff]
  %v1874 = vld [vmem:[%s3 + $0x15d8] sm:$0xff]
  %v1875 = vld [vmem:[%s3 + $0x15e0] sm:$0xff]
  %v1876 = vld [vmem:[%s3 + $0x15e8] sm:$0xff]
  %v1877 = vld [vmem:[%s3 + $0x15f0] sm:$0xff]
  %v1878 = vld [vmem:[%s3 + $0x15f8] sm:$0xff]
  %v1879 = vld [vmem:[%s3 + $0x1600] sm:$0xff]
  %v1880 = vld [vmem:[%s3 + $0x1608] sm:$0xff]
  %v1881 = vld [vmem:[%s3 + $0x1610] sm:$0xff]
  %v1882 = vld [vmem:[%s3 + $0x1618] sm:$0xff]
  %v1883 = vld [vmem:[%s3 + $0x1620] sm:$0xff]
  %v1884 = vld [vmem:[%s3 + $0x1628] sm:$0xff]
  %v1885 = vld [vmem:[%s3 + $0x1630] sm:$0xff]
  %v1886 = vld [vmem:[%s3 + $0x1638] sm:$0xff]
  %v1887 = vld [vmem:[%s3 + $0x1640] sm:$0xff]
  %v1888 = vld [vmem:[%s3 + $0x1648] sm:$0xff]
  %v1889 = vld [vmem:[%s3 + $0x1650] sm:$0xff]
  %v1890 = vld [vmem:[%s3 + $0x1658] sm:$0xff]
  %v1891 = vld [vmem:[%s3 + $0x1660] sm:$0xff]
  %v1892 = vld [vmem:[%s3 + $0x1668] sm:$0xff]
  %v1893 = vld [vmem:[%s3 + $0x1670] sm:$0xff]
  %v1894 = vld [vmem:[%s3 + $0x1678] sm:$0xff]
  %v1895 = vld [vmem:[%s3 + $0x1680] sm:$0xff]
  %v1896 = vld [vmem:[%s3 + $0x1688] sm:$0xff]
  %v1897 = vld [vmem:[%s3 + $0x1690] sm:$0xff]
  %v1898 = vld [vmem:[%s3 + $0x1698] sm:$0xff]
  %v1899 = vld [vmem:[%s3 + $0x16a0] sm:$0xff]
  %v1900 = vld [vmem:[%s3 + $0x16a8] sm:$0xff]
  %v1901 = vld [vmem:[%s3 + $0x16b0] sm:$0xff]
  %v1902 = vld [vmem:[%s3 + $0x16b8] sm:$0xff]
  %v1903 = vld [vmem:[%s3 + $0x16c0] sm:$0xff]
  %v1904 = vld [vmem:[%s3 + $0x16c8] sm:$0xff]
  %v1905 = vld [vmem:[%s3 + $0x16d0] sm:$0xff]
  %v1906 = vld [vmem:[%s3 + $0x16d8] sm:$0xff]
  %v1907 = vld [vmem:[%s3 + $0x16e0] sm:$0xff]
  %v1908 = vld [vmem:[%s3 + $0x16e8] sm:$0xff]
  %v1909 = vld [vmem:[%s3 + $0x16f0] sm:$0xff]
  %v1910 = vld [vmem:[%s3 + $0x16f8] sm:$0xff]
  %v1911 = vld [vmem:[%s3 + $0x1700] sm:$0xff]
  %v1912 = vld [vmem:[%s3 + $0x1708] sm:$0xff]
  %v1913 = vld [vmem:[%s3 + $0x1710] sm:$0xff]
  %v1914 = vld [vmem:[%s3 + $0x1718] sm:$0xff]
  %v1915 = vld [vmem:[%s3 + $0x1720] sm:$0xff]
  %v1916 = vld [vmem:[%s3 + $0x1728] sm:$0xff]
  %v1917 = vld [vmem:[%s3 + $0x1730] sm:$0xff]
  %v1918 = vld [vmem:[%s3 + $0x1738] sm:$0xff]
  %v1919 = vld [vmem:[%s3 + $0x1740] sm:$0xff]
  %v1920 = vld [vmem:[%s3 + $0x1748] sm:$0xff]
  %v1921 = vld [vmem:[%s3 + $0x1750] sm:$0xff]
  %v1922 = vld [vmem:[%s3 + $0x1758] sm:$0xff]
  %v1923 = vld [vmem:[%s3 + $0x1760] sm:$0xff]
  %v1924 = vld [vmem:[%s3 + $0x1768] sm:$0xff]
  %v1925 = vld [vmem:[%s3 + $0x1770] sm:$0xff]
  %v1926 = vld [vmem:[%s3 + $0x1778] sm:$0xff]
  %v1927 = vld [vmem:[%s3 + $0x1780] sm:$0xff]
  %v1928 = vld [vmem:[%s3 + $0x1788] sm:$0xff]
  %v1929 = vld [vmem:[%s3 + $0x1790] sm:$0xff]
  %v1930 = vld [vmem:[%s3 + $0x1798] sm:$0xff]
  %v1931 = vld [vmem:[%s3 + $0x17a0] sm:$0xff]
  %v1932 = vld [vmem:[%s3 + $0x17a8] sm:$0xff]
  %v1933 = vld [vmem:[%s3 + $0x17b0] sm:$0xff]
  %v1934 = vld [vmem:[%s3 + $0x17b8] sm:$0xff]
  %v1935 = vld [vmem:[%s3 + $0x17c0] sm:$0xff]
  %v1936 = vld [vmem:[%s3 + $0x17c8] sm:$0xff]
  %v1937 = vld [vmem:[%s3 + $0x17d0] sm:$0xff]
  %v1938 = vld [vmem:[%s3 + $0x17d8] sm:$0xff]
  %v1939 = vld [vmem:[%s3 + $0x17e0] sm:$0xff]
  %v1940 = vld [vmem:[%s3 + $0x17e8] sm:$0xff]
  %v1941 = vld [vmem:[%s3 + $0x17f0] sm:$0xff]
  %v1942 = vld [vmem:[%s3 + $0x17f8] sm:$0xff]
  %v1943 = vld [vmem:[%s3 + $0x1800] sm:$0xff]
  %v1944 = vld [vmem:[%s3 + $0x1808] sm:$0xff]
  %v1945 = vld [vmem:[%s3 + $0x1810] sm:$0xff]
  %v1946 = vld [vmem:[%s3 + $0x1818] sm:$0xff]
  %v1947 = vld [vmem:[%s3 + $0x1820] sm:$0xff]
  %v1948 = vld [vmem:[%s3 + $0x1828] sm:$0xff]
  %v1949 = vld [vmem:[%s3 + $0x1830] sm:$0xff]
  %v1950 = vld [vmem:[%s3 + $0x1838] sm:$0xff]
  %v1951 = vld [vmem:[%s3 + $0x1840] sm:$0xff]
  %v1952 = vld [vmem:[%s3 + $0x1848] sm:$0xff]
  %v1953 = vld [vmem:[%s3 + $0x1850] sm:$0xff]
  %v1954 = vld [vmem:[%s3 + $0x1858] sm:$0xff]
  %v1955 = vld [vmem:[%s3 + $0x1860] sm:$0xff]
  %v1956 = vld [vmem:[%s3 + $0x1868] sm:$0xff]
  %v1957 = vld [vmem:[%s3 + $0x1870] sm:$0xff]
  %v1958 = vld [vmem:[%s3 + $0x1878] sm:$0xff]
  %v1959 = vld [vmem:[%s3 + $0x1880] sm:$0xff]
  %v1960 = vld [vmem:[%s3 + $0x1888] sm:$0xff]
  %v1961 = vld [vmem:[%s3 + $0x1890] sm:$0xff]
  %v1962 = vld [vmem:[%s3 + $0x1898] sm:$0xff]
  %v1963 = vld [vmem:[%s3 + $0x18a0] sm:$0xff]
  %v1964 = vld [vmem:[%s3 + $0x18a8] sm:$0xff]
  %v1965 = vld [vmem:[%s3 + $0x18b0] sm:$0xff]
  %v1966 = vld [vmem:[%s3 + $0x18b8] sm:$0xff]
  %v1967 = vld [vmem:[%s3 + $0x18c0] sm:$0xff]
  %v1968 = vld [vmem:[%s3 + $0x18c8] sm:$0xff]
  %v1969 = vld [vmem:[%s3 + $0x18d0] sm:$0xff]
  %v1970 = vld [vmem:[%s3 + $0x18d8] sm:$0xff]
  %v1971 = vld [vmem:[%s3 + $0x18e0] sm:$0xff]
  %v1972 = vld [vmem:[%s3 + $0x18e8] sm:$0xff]
  %v1973 = vld [vmem:[%s3 + $0x18f0] sm:$0xff]
  %v1974 = vld [vmem:[%s3 + $0x18f8] sm:$0xff]
  %v1975 = vld [vmem:[%s3 + $0x1900] sm:$0xff]
  %v1976 = vld [vmem:[%s3 + $0x1908] sm:$0xff]
  %v1977 = vld [vmem:[%s3 + $0x1910] sm:$0xff]
  %v1978 = vld [vmem:[%s3 + $0x1918] sm:$0xff]
  %v1979 = vld [vmem:[%s3 + $0x1920] sm:$0xff]
  %v1980 = vld [vmem:[%s3 + $0x1928] sm:$0xff]
  %v1981 = vld [vmem:[%s3 + $0x1930] sm:$0xff]
  %v1982 = vld [vmem:[%s3 + $0x1938] sm:$0xff]
  %v1983 = vld [vmem:[%s3 + $0x1940] sm:$0xff]
  %v1984 = vld [vmem:[%s3 + $0x1948] sm:$0xff]
  %v1985 = vld [vmem:[%s3 + $0x1950] sm:$0xff]
  %v1986 = vld [vmem:[%s3 + $0x1958] sm:$0xff]
  %v1987 = vld [vmem:[%s3 + $0x1960] sm:$0xff]
  %v1988 = vld [vmem:[%s3 + $0x1968] sm:$0xff]
  %v1989 = vld [vmem:[%s3 + $0x1970] sm:$0xff]
  %v1990 = vld [vmem:[%s3 + $0x1978] sm:$0xff]
  %v1991 = vld [vmem:[%s3 + $0x1980] sm:$0xff]
  %v1992 = vld [vmem:[%s3 + $0x1988] sm:$0xff]
  %v1993 = vld [vmem:[%s3 + $0x1990] sm:$0xff]
  %v1994 = vld [vmem:[%s3 + $0x1998] sm:$0xff]
  %v1995 = vld [vmem:[%s3 + $0x19a0] sm:$0xff]
  %v1996 = vld [vmem:[%s3 + $0x19a8] sm:$0xff]
  %v1997 = vld [vmem:[%s3 + $0x19b0] sm:$0xff]
  %v1998 = vld [vmem:[%s3 + $0x19b8] sm:$0xff]
  %v1999 = vld [vmem:[%s3 + $0x19c0] sm:$0xff]
  %v2000 = vld [vmem:[%s3 + $0x19c8] sm:$0xff]
  %v2001 = vld [vmem:[%s3 + $0x19d0] sm:$0xff]
  %v2002 = vld [vmem:[%s3 + $0x19d8] sm:$0xff]
  %v2003 = vld [vmem:[%s3 + $0x19e0] sm:$0xff]
  %v2004 = vld [vmem:[%s3 + $0x19e8] sm:$0xff]
  %v2005 = vld [vmem:[%s3 + $0x19f0] sm:$0xff]
  %v2006 = vld [vmem:[%s3 + $0x19f8] sm:$0xff]
  %v2007 = vld [vmem:[%s3 + $0x1a00] sm:$0xff]
  %v2008 = vld [vmem:[%s3 + $0x1a08] sm:$0xff]
  %v2009 = vld [vmem:[%s3 + $0x1a10] sm:$0xff]
  %v2010 = vld [vmem:[%s3 + $0x1a18] sm:$0xff]
  %v2011 = vld [vmem:[%s3 + $0x1a20] sm:$0xff]
  %v2012 = vld [vmem:[%s3 + $0x1a28] sm:$0xff]
  %v2013 = vld [vmem:[%s3 + $0x1a30] sm:$0xff]
  %v2014 = vld [vmem:[%s3 + $0x1a38] sm:$0xff]
  %v2015 = vld [vmem:[%s3 + $0x1a40] sm:$0xff]
  %v2016 = vld [vmem:[%s3 + $0x1a48] sm:$0xff]
  %v2017 = vld [vmem:[%s3 + $0x1a50] sm:$0xff]
  %v2018 = vld [vmem:[%s3 + $0x1a58] sm:$0xff]
  %v2019 = vld [vmem:[%s3 + $0x1a60] sm:$0xff]
  %v2020 = vld [vmem:[%s3 + $0x1a68] sm:$0xff]
  %v2021 = vld [vmem:[%s3 + $0x1a70] sm:$0xff]
  %v2022 = vld [vmem:[%s3 + $0x1a78] sm:$0xff]
  %v2023 = vld [vmem:[%s3 + $0x1a80] sm:$0xff]
  %v2024 = vld [vmem:[%s3 + $0x1a88] sm:$0xff]
  %v2025 = vld [vmem:[%s3 + $0x1a90] sm:$0xff]
  %v2026 = vld [vmem:[%s3 + $0x1a98] sm:$0xff]
  %v2027 = vld [vmem:[%s3 + $0x1aa0] sm:$0xff]
  %v2028 = vld [vmem:[%s3 + $0x1aa8] sm:$0xff]
  %v2029 = vld [vmem:[%s3 + $0x1ab0] sm:$0xff]
  %v2030 = vld [vmem:[%s3 + $0x1ab8] sm:$0xff]
  %v2031 = vld [vmem:[%s3 + $0x1ac0] sm:$0xff]
  %v2032 = vld [vmem:[%s3 + $0x1ac8] sm:$0xff]
  %v2033 = vld [vmem:[%s3 + $0x1ad0] sm:$0xff]
  %v2034 = vld [vmem:[%s3 + $0x1ad8] sm:$0xff]
  %v2035 = vld [vmem:[%s3 + $0x1ae0] sm:$0xff]
  %v2036 = vld [vmem:[%s3 + $0x1ae8] sm:$0xff]
  %v2037 = vld [vmem:[%s3 + $0x1af0] sm:$0xff]
  %v2038 = vld [vmem:[%s3 + $0x1af8] sm:$0xff]
  %v2039 = vld [vmem:[%s3 + $0x1b00] sm:$0xff]
  %v2040 = vld [vmem:[%s3 + $0x1b08] sm:$0xff]
  %v2041 = vld [vmem:[%s3 + $0x1b10] sm:$0xff]
  %v2042 = vld [vmem:[%s3 + $0x1b18] sm:$0xff]
  %v2043 = vld [vmem:[%s3 + $0x1b20] sm:$0xff]
  %v2044 = vld [vmem:[%s3 + $0x1b28] sm:$0xff]
  %v2045 = vld [vmem:[%s3 + $0x1b30] sm:$0xff]
  %v2046 = vld [vmem:[%s3 + $0x1b38] sm:$0xff]
  %v2047 = vld [vmem:[%s3 + $0x1b40] sm:$0xff]
  %v2048 = vld [vmem:[%s3 + $0x1b48] sm:$0xff]
  %v2049 = vld [vmem:[%s3 + $0x1b50] sm:$0xff]
  %v2050 = vld [vmem:[%s3 + $0x1b58] sm:$0xff]
  %v2051 = vld [vmem:[%s3 + $0x1b60] sm:$0xff]
  %v2052 = vld [vmem:[%s3 + $0x1b68] sm:$0xff]
  %v2053 = vld [vmem:[%s3 + $0x1b70] sm:$0xff]
  %v2054 = vld [vmem:[%s3 + $0x1b78] sm:$0xff]
  %v2055 = vld [vmem:[%s3 + $0x1b80] sm:$0xff]
  %v2056 = vld [vmem:[%s3 + $0x1b88] sm:$0xff]
  %v2057 = vld [vmem:[%s3 + $0x1b90] sm:$0xff]
  %v2058 = vld [vmem:[%s3 + $0x1b98] sm:$0xff]
  %v2059 = vld [vmem:[%s3 + $0x1ba0] sm:$0xff]
  %v2060 = vld [vmem:[%s3 + $0x1ba8] sm:$0xff]
  %v2061 = vld [vmem:[%s3 + $0x1bb0] sm:$0xff]
  %v2062 = vld [vmem:[%s3 + $0x1bb8] sm:$0xff]
  %v2063 = vld [vmem:[%s3 + $0x1bc0] sm:$0xff]
  %v2064 = vld [vmem:[%s3 + $0x1bc8] sm:$0xff]
  %v2065 = vld [vmem:[%s3 + $0x1bd0] sm:$0xff]
  %v2066 = vld [vmem:[%s3 + $0x1bd8] sm:$0xff]
  %v2067 = vld [vmem:[%s3 + $0x1be0] sm:$0xff]
  %v2068 = vld [vmem:[%s3 + $0x1be8] sm:$0xff]
  %v2069 = vld [vmem:[%s3 + $0x1bf0] sm:$0xff]
  %v2070 = vld [vmem:[%s3 + $0x1bf8] sm:$0xff]
  %v2071 = vld [vmem:[%s3 + $0x1c00] sm:$0xff]
  %v2072 = vld [vmem:[%s3 + $0x1c08] sm:$0xff]
  %v2073 = vld [vmem:[%s3 + $0x1c10] sm:$0xff]
  %v2074 = vld [vmem:[%s3 + $0x1c18] sm:$0xff]
  %v2075 = vld [vmem:[%s3 + $0x1c20] sm:$0xff]
  %v2076 = vld [vmem:[%s3 + $0x1c28] sm:$0xff]
  %v2077 = vld [vmem:[%s3 + $0x1c30] sm:$0xff]
  %v2078 = vld [vmem:[%s3 + $0x1c38] sm:$0xff]
  %v2079 = vld [vmem:[%s3 + $0x1c40] sm:$0xff]
  %v2080 = vld [vmem:[%s3 + $0x1c48] sm:$0xff]
  %v2081 = vld [vmem:[%s3 + $0x1c50] sm:$0xff]
  %v2082 = vld [vmem:[%s3 + $0x1c58] sm:$0xff]
  %v2083 = vld [vmem:[%s3 + $0x1c60] sm:$0xff]
  %v2084 = vld [vmem:[%s3 + $0x1c68] sm:$0xff]
  %v2085 = vld [vmem:[%s3 + $0x1c70] sm:$0xff]
  %v2086 = vld [vmem:[%s3 + $0x1c78] sm:$0xff]
  %v2087 = vld [vmem:[%s3 + $0x1c80] sm:$0xff]
  %v2088 = vld [vmem:[%s3 + $0x1c88] sm:$0xff]
  %v2089 = vld [vmem:[%s3 + $0x1c90] sm:$0xff]
  %v2090 = vld [vmem:[%s3 + $0x1c98] sm:$0xff]
  %v2091 = vld [vmem:[%s3 + $0x1ca0] sm:$0xff]
  %v2092 = vld [vmem:[%s3 + $0x1ca8] sm:$0xff]
  %v2093 = vld [vmem:[%s3 + $0x1cb0] sm:$0xff]
  %v2094 = vld [vmem:[%s3 + $0x1cb8] sm:$0xff]
  %v2095 = vld [vmem:[%s3 + $0x1cc0] sm:$0xff]
  %v2096 = vld [vmem:[%s3 + $0x1cc8] sm:$0xff]
  %v2097 = vld [vmem:[%s3 + $0x1cd0] sm:$0xff]
  %v2098 = vld [vmem:[%s3 + $0x1cd8] sm:$0xff]
  %v2099 = vld [vmem:[%s3 + $0x1ce0] sm:$0xff]
  %v2100 = vld [vmem:[%s3 + $0x1ce8] sm:$0xff]
  %v2101 = vld [vmem:[%s3 + $0x1cf0] sm:$0xff]
  %v2102 = vld [vmem:[%s3 + $0x1cf8] sm:$0xff]
  %v2103 = vld [vmem:[%s3 + $0x1d00] sm:$0xff]
  %v2104 = vld [vmem:[%s3 + $0x1d08] sm:$0xff]
  %v2105 = vld [vmem:[%s3 + $0x1d10] sm:$0xff]
  %v2106 = vld [vmem:[%s3 + $0x1d18] sm:$0xff]
  %v2107 = vld [vmem:[%s3 + $0x1d20] sm:$0xff]
  %v2108 = vld [vmem:[%s3 + $0x1d28] sm:$0xff]
  %v2109 = vld [vmem:[%s3 + $0x1d30] sm:$0xff]
  %v2110 = vld [vmem:[%s3 + $0x1d38] sm:$0xff]
  %v2111 = vld [vmem:[%s3 + $0x1d40] sm:$0xff]
  %v2112 = vld [vmem:[%s3 + $0x1d48] sm:$0xff]
  %v2113 = vld [vmem:[%s3 + $0x1d50] sm:$0xff]
  %v2114 = vld [vmem:[%s3 + $0x1d58] sm:$0xff]
  %v2115 = vld [vmem:[%s3 + $0x1d60] sm:$0xff]
  %v2116 = vld [vmem:[%s3 + $0x1d68] sm:$0xff]
  %v2117 = vld [vmem:[%s3 + $0x1d70] sm:$0xff]
  %v2118 = vld [vmem:[%s3 + $0x1d78] sm:$0xff]
  %v2119 = vld [vmem:[%s3 + $0x1d80] sm:$0xff]
  %v2120 = vld [vmem:[%s3 + $0x1d88] sm:$0xff]
  %v2121 = vld [vmem:[%s3 + $0x1d90] sm:$0xff]
  %v2122 = vld [vmem:[%s3 + $0x1d98] sm:$0xff]
  %v2123 = vld [vmem:[%s3 + $0x1da0] sm:$0xff]
  %v2124 = vld [vmem:[%s3 + $0x1da8] sm:$0xff]
  %v2125 = vld [vmem:[%s3 + $0x1db0] sm:$0xff]
  %v2126 = vld [vmem:[%s3 + $0x1db8] sm:$0xff]
  %v2127 = vld [vmem:[%s3 + $0x1dc0] sm:$0xff]
  %v2128 = vld [vmem:[%s3 + $0x1dc8] sm:$0xff]
  %v2129 = vld [vmem:[%s3 + $0x1dd0] sm:$0xff]
  %v2130 = vld [vmem:[%s3 + $0x1dd8] sm:$0xff]
  %v2131 = vld [vmem:[%s3 + $0x1de0] sm:$0xff]
  %v2132 = vld [vmem:[%s3 + $0x1de8] sm:$0xff]
  %v2133 = vld [vmem:[%s3 + $0x1df0] sm:$0xff]
  %v2134 = vld [vmem:[%s3 + $0x1df8] sm:$0xff]
  %v2135 = vld [vmem:[%s4] sm:$0xf]
  %v2137 = vperm.slane %v2135, 0
  %v2138 = vperm.slane %v2135, 1
  %v2139 = vperm.slane %v2135, 2
  %v2140 = vperm.slane %v2135, 3
  %2145 = vmatpush.msra.mxu0 %v1235
  %2146 = vmatpush.msra.mxu0 %v1231
  %2147 = vmatpush.msra.mxu0 %v1227
  %2148 = vmatpush.msra.mxu0 %v1223
  %2149 = vmatpush.msra.mxu0 %v1219
  %2150 = vmatpush.msra.mxu0 %v1215
  %2151 = vmatpush.msra.mxu0 %v1211
  %2152 = vmatpush.msra.mxu0 %v1207
  %2153 = vmatpush.msra.mxu0 %v1203
  %2154 = vmatpush.msra.mxu0 %v1199
  %2155 = vmatpush.msra.mxu0 %v1195
  %2156 = vmatpush.msra.mxu0 %v1191
  %2157 = vmatpush.msra.mxu0 %v1187
  %2158 = vmatpush.msra.mxu0 %v1183
  %2159 = vmatpush.msra.mxu0 %v1179
  %2160 = vmatpush.msra.mxu0 %v1175
  %2161 = vmatmul.f32.gmra.mxu0 %v1160
  %v2162 = vpop.f32.mrf.mxu0
  %v2163 = vadd.f32 %v2137, %v2162
  %2164 = vdwg.mxu0
  %2165 = vmatpush.msra.mxu0 %v1299
  %2166 = vmatpush.msra.mxu0 %v1295
  %2167 = vmatpush.msra.mxu0 %v1291
  %2168 = vmatpush.msra.mxu0 %v1287
  %2169 = vmatpush.msra.mxu0 %v1283
  %2170 = vmatpush.msra.mxu0 %v1279
  %2171 = vmatpush.msra.mxu0 %v1275
  %2172 = vmatpush.msra.mxu0 %v1271
  %2173 = vmatpush.msra.mxu0 %v1267
  %2174 = vmatpush.msra.mxu0 %v1263
  %2175 = vmatpush.msra.mxu0 %v1259
  %2176 = vmatpush.msra.mxu0 %v1255
  %2177 = vmatpush.msra.mxu0 %v1251
  %2178 = vmatpush.msra.mxu0 %v1247
  %2179 = vmatpush.msra.mxu0 %v1243
  %2180 = vmatpush.msra.mxu0 %v1239
  %2181 = vmatmul.f32.gmra.mxu0 %v1161
  %v2182 = vpop.f32.mrf.mxu0
  %v2183 = vadd.f32 %v2163, %v2182
  %2184 = vdwg.mxu0
  %2185 = vmatpush.msra.mxu0 %v1363
  %2186 = vmatpush.msra.mxu0 %v1359
  %2187 = vmatpush.msra.mxu0 %v1355
  %2188 = vmatpush.msra.mxu0 %v1351
  %2189 = vmatpush.msra.mxu0 %v1347
  %2190 = vmatpush.msra.mxu0 %v1343
  %2191 = vmatpush.msra.mxu0 %v1339
  %2192 = vmatpush.msra.mxu0 %v1335
  %2193 = vmatpush.msra.mxu0 %v1331
  %2194 = vmatpush.msra.mxu0 %v1327
  %2195 = vmatpush.msra.mxu0 %v1323
  %2196 = vmatpush.msra.mxu0 %v1319
  %2197 = vmatpush.msra.mxu0 %v1315
  %2198 = vmatpush.msra.mxu0 %v1311
  %2199 = vmatpush.msra.mxu0 %v1307
  %2200 = vmatpush.msra.mxu0 %v1303
  %2201 = vmatmul.f32.gmra.mxu0 %v1162
  %v2202 = vpop.f32.mrf.mxu0
  %v2203 = vadd.f32 %v2183, %v2202
  %2204 = vdwg.mxu0
  %2205 = vmatpush.msra.mxu0 %v1427
  %2206 = vmatpush.msra.mxu0 %v1423
  %2207 = vmatpush.msra.mxu0 %v1419
  %2208 = vmatpush.msra.mxu0 %v1415
  %2209 = vmatpush.msra.mxu0 %v1411
  %2210 = vmatpush.msra.mxu0 %v1407
  %2211 = vmatpush.msra.mxu0 %v1403
  %2212 = vmatpush.msra.mxu0 %v1399
  %2213 = vmatpush.msra.mxu0 %v1395
  %2214 = vmatpush.msra.mxu0 %v1391
  %2215 = vmatpush.msra.mxu0 %v1387
  %2216 = vmatpush.msra.mxu0 %v1383
  %2217 = vmatpush.msra.mxu0 %v1379
  %2218 = vmatpush.msra.mxu0 %v1375
  %2219 = vmatpush.msra.mxu0 %v1371
  %2220 = vmatpush.msra.mxu0 %v1367
  %2221 = vmatmul.f32.gmra.mxu0 %v1163
  %v2222 = vpop.f32.mrf.mxu0
  %v2223 = vadd.f32 %v2203, %v2222
  %2224 = vdwg.mxu0
  %2225 = vmatpush.msra.mxu0 %v1491
  %2226 = vmatpush.msra.mxu0 %v1487
  %2227 = vmatpush.msra.mxu0 %v1483
  %2228 = vmatpush.msra.mxu0 %v1479
  %2229 = vmatpush.msra.mxu0 %v1475
  %2230 = vmatpush.msra.mxu0 %v1471
  %2231 = vmatpush.msra.mxu0 %v1467
  %2232 = vmatpush.msra.mxu0 %v1463
  %2233 = vmatpush.msra.mxu0 %v1459
  %2234 = vmatpush.msra.mxu0 %v1455
  %2235 = vmatpush.msra.mxu0 %v1451
  %2236 = vmatpush.msra.mxu0 %v1447
  %2237 = vmatpush.msra.mxu0 %v1443
  %2238 = vmatpush.msra.mxu0 %v1439
  %2239 = vmatpush.msra.mxu0 %v1435
  %2240 = vmatpush.msra.mxu0 %v1431
  %2241 = vmatmul.f32.gmra.mxu0 %v1164
  %v2242 = vpop.f32.mrf.mxu0
  %v2243 = vadd.f32 %v2223, %v2242
  %2244 = vdwg.mxu0
  %2245 = vmatpush.msra.mxu0 %v1555
  %2246 = vmatpush.msra.mxu0 %v1551
  %2247 = vmatpush.msra.mxu0 %v1547
  %2248 = vmatpush.msra.mxu0 %v1543
  %2249 = vmatpush.msra.mxu0 %v1539
  %2250 = vmatpush.msra.mxu0 %v1535
  %2251 = vmatpush.msra.mxu0 %v1531
  %2252 = vmatpush.msra.mxu0 %v1527
  %2253 = vmatpush.msra.mxu0 %v1523
  %2254 = vmatpush.msra.mxu0 %v1519
  %2255 = vmatpush.msra.mxu0 %v1515
  %2256 = vmatpush.msra.mxu0 %v1511
  %2257 = vmatpush.msra.mxu0 %v1507
  %2258 = vmatpush.msra.mxu0 %v1503
  %2259 = vmatpush.msra.mxu0 %v1499
  %2260 = vmatpush.msra.mxu0 %v1495
  %2261 = vmatmul.f32.gmra.mxu0 %v1165
  %v2262 = vpop.f32.mrf.mxu0
  %v2263 = vadd.f32 %v2243, %v2262
  %2264 = vdwg.mxu0
  %2265 = vmatpush.msra.mxu0 %v1619
  %2266 = vmatpush.msra.mxu0 %v1615
  %2267 = vmatpush.msra.mxu0 %v1611
  %2268 = vmatpush.msra.mxu0 %v1607
  %2269 = vmatpush.msra.mxu0 %v1603
  %2270 = vmatpush.msra.mxu0 %v1599
  %2271 = vmatpush.msra.mxu0 %v1595
  %2272 = vmatpush.msra.mxu0 %v1591
  %2273 = vmatpush.msra.mxu0 %v1587
  %2274 = vmatpush.msra.mxu0 %v1583
  %2275 = vmatpush.msra.mxu0 %v1579
  %2276 = vmatpush.msra.mxu0 %v1575
  %2277 = vmatpush.msra.mxu0 %v1571
  %2278 = vmatpush.msra.mxu0 %v1567
  %2279 = vmatpush.msra.mxu0 %v1563
  %2280 = vmatpush.msra.mxu0 %v1559
  %2281 = vmatmul.f32.gmra.mxu0 %v1166
  %v2282 = vpop.f32.mrf.mxu0
  %v2283 = vadd.f32 %v2263, %v2282
  %2284 = vdwg.mxu0
  %2285 = vmatpush.msra.mxu0 %v1683
  %2286 = vmatpush.msra.mxu0 %v1679
  %2287 = vmatpush.msra.mxu0 %v1675
  %2288 = vmatpush.msra.mxu0 %v1671
  %2289 = vmatpush.msra.mxu0 %v1667
  %2290 = vmatpush.msra.mxu0 %v1663
  %2291 = vmatpush.msra.mxu0 %v1659
  %2292 = vmatpush.msra.mxu0 %v1655
  %2293 = vmatpush.msra.mxu0 %v1651
  %2294 = vmatpush.msra.mxu0 %v1647
  %2295 = vmatpush.msra.mxu0 %v1643
  %2296 = vmatpush.msra.mxu0 %v1639
  %2297 = vmatpush.msra.mxu0 %v1635
  %2298 = vmatpush.msra.mxu0 %v1631
  %2299 = vmatpush.msra.mxu0 %v1627
  %2300 = vmatpush.msra.mxu0 %v1623
  %2301 = vmatmul.f32.gmra.mxu0 %v1167
  %v2302 = vpop.f32.mrf.mxu0
  %v2303 = vadd.f32 %v2283, %v2302
  %2304 = vdwg.mxu0
  %2305 = vmatpush.msra.mxu0 %v1747
  %2306 = vmatpush.msra.mxu0 %v1743
  %2307 = vmatpush.msra.mxu0 %v1739
  %2308 = vmatpush.msra.mxu0 %v1735
  %2309 = vmatpush.msra.mxu0 %v1731
  %2310 = vmatpush.msra.mxu0 %v1727
  %2311 = vmatpush.msra.mxu0 %v1723
  %2312 = vmatpush.msra.mxu0 %v1719
  %2313 = vmatpush.msra.mxu0 %v1715
  %2314 = vmatpush.msra.mxu0 %v1711
  %2315 = vmatpush.msra.mxu0 %v1707
  %2316 = vmatpush.msra.mxu0 %v1703
  %2317 = vmatpush.msra.mxu0 %v1699
  %2318 = vmatpush.msra.mxu0 %v1695
  %2319 = vmatpush.msra.mxu0 %v1691
  %2320 = vmatpush.msra.mxu0 %v1687
  %2321 = vmatmul.f32.gmra.mxu0 %v1168
  %v2322 = vpop.f32.mrf.mxu0
  %v2323 = vadd.f32 %v2303, %v2322
  %2324 = vdwg.mxu0
  %2325 = vmatpush.msra.mxu0 %v1811
  %2326 = vmatpush.msra.mxu0 %v1807
  %2327 = vmatpush.msra.mxu0 %v1803
  %2328 = vmatpush.msra.mxu0 %v1799
  %2329 = vmatpush.msra.mxu0 %v1795
  %2330 = vmatpush.msra.mxu0 %v1791
  %2331 = vmatpush.msra.mxu0 %v1787
  %2332 = vmatpush.msra.mxu0 %v1783
  %2333 = vmatpush.msra.mxu0 %v1779
  %2334 = vmatpush.msra.mxu0 %v1775
  %2335 = vmatpush.msra.mxu0 %v1771
  %2336 = vmatpush.msra.mxu0 %v1767
  %2337 = vmatpush.msra.mxu0 %v1763
  %2338 = vmatpush.msra.mxu0 %v1759
  %2339 = vmatpush.msra.mxu0 %v1755
  %2340 = vmatpush.msra.mxu0 %v1751
  %2341 = vmatmul.f32.gmra.mxu0 %v1169
  %v2342 = vpop.f32.mrf.mxu0
  %v2343 = vadd.f32 %v2323, %v2342
  %2344 = vdwg.mxu0
  %2345 = vmatpush.msra.mxu0 %v1875
  %2346 = vmatpush.msra.mxu0 %v1871
  %2347 = vmatpush.msra.mxu0 %v1867
  %2348 = vmatpush.msra.mxu0 %v1863
  %2349 = vmatpush.msra.mxu0 %v1859
  %2350 = vmatpush.msra.mxu0 %v1855
  %2351 = vmatpush.msra.mxu0 %v1851
  %2352 = vmatpush.msra.mxu0 %v1847
  %2353 = vmatpush.msra.mxu0 %v1843
  %2354 = vmatpush.msra.mxu0 %v1839
  %2355 = vmatpush.msra.mxu0 %v1835
  %2356 = vmatpush.msra.mxu0 %v1831
  %2357 = vmatpush.msra.mxu0 %v1827
  %2358 = vmatpush.msra.mxu0 %v1823
  %2359 = vmatpush.msra.mxu0 %v1819
  %2360 = vmatpush.msra.mxu0 %v1815
  %2361 = vmatmul.f32.gmra.mxu0 %v1170
  %v2362 = vpop.f32.mrf.mxu0
  %v2363 = vadd.f32 %v2343, %v2362
  %2364 = vdwg.mxu0
  %2365 = vmatpush.msra.mxu0 %v1939
  %2366 = vmatpush.msra.mxu0 %v1935
  %2367 = vmatpush.msra.mxu0 %v1931
  %2368 = vmatpush.msra.mxu0 %v1927
  %2369 = vmatpush.msra.mxu0 %v1923
  %2370 = vmatpush.msra.mxu0 %v1919
  %2371 = vmatpush.msra.mxu0 %v1915
  %2372 = vmatpush.msra.mxu0 %v1911
  %2373 = vmatpush.msra.mxu0 %v1907
  %2374 = vmatpush.msra.mxu0 %v1903
  %2375 = vmatpush.msra.mxu0 %v1899
  %2376 = vmatpush.msra.mxu0 %v1895
  %2377 = vmatpush.msra.mxu0 %v1891
  %2378 = vmatpush.msra.mxu0 %v1887
  %2379 = vmatpush.msra.mxu0 %v1883
  %2380 = vmatpush.msra.mxu0 %v1879
  %2381 = vmatmul.f32.gmra.mxu0 %v1171
  %v2382 = vpop.f32.mrf.mxu0
  %v2383 = vadd.f32 %v2363, %v2382
  %2384 = vdwg.mxu0
  %2385 = vmatpush.msra.mxu0 %v2003
  %2386 = vmatpush.msra.mxu0 %v1999
  %2387 = vmatpush.msra.mxu0 %v1995
  %2388 = vmatpush.msra.mxu0 %v1991
  %2389 = vmatpush.msra.mxu0 %v1987
  %2390 = vmatpush.msra.mxu0 %v1983
  %2391 = vmatpush.msra.mxu0 %v1979
  %2392 = vmatpush.msra.mxu0 %v1975
  %2393 = vmatpush.msra.mxu0 %v1971
  %2394 = vmatpush.msra.mxu0 %v1967
  %2395 = vmatpush.msra.mxu0 %v1963
  %2396 = vmatpush.msra.mxu0 %v1959
  %2397 = vmatpush.msra.mxu0 %v1955
  %2398 = vmatpush.msra.mxu0 %v1951
  %2399 = vmatpush.msra.mxu0 %v1947
  %2400 = vmatpush.msra.mxu0 %v1943
  %2401 = vmatmul.f32.gmra.mxu0 %v1172
  %v2402 = vpop.f32.mrf.mxu0
  %v2403 = vadd.f32 %v2383, %v2402
  %2404 = vdwg.mxu0
  %2405 = vmatpush.msra.mxu0 %v2067
  %2406 = vmatpush.msra.mxu0 %v2063
  %2407 = vmatpush.msra.mxu0 %v2059
  %2408 = vmatpush.msra.mxu0 %v2055
  %2409 = vmatpush.msra.mxu0 %v2051
  %2410 = vmatpush.msra.mxu0 %v2047
  %2411 = vmatpush.msra.mxu0 %v2043
  %2412 = vmatpush.msra.mxu0 %v2039
  %2413 = vmatpush.msra.mxu0 %v2035
  %2414 = vmatpush.msra.mxu0 %v2031
  %2415 = vmatpush.msra.mxu0 %v2027
  %2416 = vmatpush.msra.mxu0 %v2023
  %2417 = vmatpush.msra.mxu0 %v2019
  %2418 = vmatpush.msra.mxu0 %v2015
  %2419 = vmatpush.msra.mxu0 %v2011
  %2420 = vmatpush.msra.mxu0 %v2007
  %2421 = vmatmul.f32.gmra.mxu0 %v1173
  %v2422 = vpop.f32.mrf.mxu0
  %v2423 = vadd.f32 %v2403, %v2422
  %2424 = vdwg.mxu0
  %2425 = vmatpush.msra.mxu0 %v2131
  %2426 = vmatpush.msra.mxu0 %v2127
  %2427 = vmatpush.msra.mxu0 %v2123
  %2428 = vmatpush.msra.mxu0 %v2119
  %2429 = vmatpush.msra.mxu0 %v2115
  %2430 = vmatpush.msra.mxu0 %v2111
  %2431 = vmatpush.msra.mxu0 %v2107
  %2432 = vmatpush.msra.mxu0 %v2103
  %2433 = vmatpush.msra.mxu0 %v2099
  %2434 = vmatpush.msra.mxu0 %v2095
  %2435 = vmatpush.msra.mxu0 %v2091
  %2436 = vmatpush.msra.mxu0 %v2087
  %2437 = vmatpush.msra.mxu0 %v2083
  %2438 = vmatpush.msra.mxu0 %v2079
  %2439 = vmatpush.msra.mxu0 %v2075
  %2440 = vmatpush.msra.mxu0 %v2071
  %2441 = vmatmul.f32.gmra.mxu0 %v1174
  %v2442 = vpop.f32.mrf.mxu0
  %v2443 = vadd.f32 %v2423, %v2442
  %2444 = vdwg.mxu0
  %2445 = vmatpush.msra.mxu0 %v1236
  %2446 = vmatpush.msra.mxu0 %v1232
  %2447 = vmatpush.msra.mxu0 %v1228
  %2448 = vmatpush.msra.mxu0 %v1224
  %2449 = vmatpush.msra.mxu0 %v1220
  %2450 = vmatpush.msra.mxu0 %v1216
  %2451 = vmatpush.msra.mxu0 %v1212
  %2452 = vmatpush.msra.mxu0 %v1208
  %2453 = vmatpush.msra.mxu0 %v1204
  %2454 = vmatpush.msra.mxu0 %v1200
  %2455 = vmatpush.msra.mxu0 %v1196
  %2456 = vmatpush.msra.mxu0 %v1192
  %2457 = vmatpush.msra.mxu0 %v1188
  %2458 = vmatpush.msra.mxu0 %v1184
  %2459 = vmatpush.msra.mxu0 %v1180
  %2460 = vmatpush.msra.mxu0 %v1176
  %2461 = vmatmul.f32.gmra.mxu0 %v1160
  %v2462 = vpop.f32.mrf.mxu0
  %v2463 = vadd.f32 %v2138, %v2462
  %2464 = vdwg.mxu0
  %2465 = vmatpush.msra.mxu0 %v1300
  %2466 = vmatpush.msra.mxu0 %v1296
  %2467 = vmatpush.msra.mxu0 %v1292
  %2468 = vmatpush.msra.mxu0 %v1288
  %2469 = vmatpush.msra.mxu0 %v1284
  %2470 = vmatpush.msra.mxu0 %v1280
  %2471 = vmatpush.msra.mxu0 %v1276
  %2472 = vmatpush.msra.mxu0 %v1272
  %2473 = vmatpush.msra.mxu0 %v1268
  %2474 = vmatpush.msra.mxu0 %v1264
  %2475 = vmatpush.msra.mxu0 %v1260
  %2476 = vmatpush.msra.mxu0 %v1256
  %2477 = vmatpush.msra.mxu0 %v1252
  %2478 = vmatpush.msra.mxu0 %v1248
  %2479 = vmatpush.msra.mxu0 %v1244
  %2480 = vmatpush.msra.mxu0 %v1240
  %2481 = vmatmul.f32.gmra.mxu0 %v1161
  %v2482 = vpop.f32.mrf.mxu0
  %v2483 = vadd.f32 %v2463, %v2482
  %2484 = vdwg.mxu0
  %2485 = vmatpush.msra.mxu0 %v1364
  %2486 = vmatpush.msra.mxu0 %v1360
  %2487 = vmatpush.msra.mxu0 %v1356
  %2488 = vmatpush.msra.mxu0 %v1352
  %2489 = vmatpush.msra.mxu0 %v1348
  %2490 = vmatpush.msra.mxu0 %v1344
  %2491 = vmatpush.msra.mxu0 %v1340
  %2492 = vmatpush.msra.mxu0 %v1336
  %2493 = vmatpush.msra.mxu0 %v1332
  %2494 = vmatpush.msra.mxu0 %v1328
  %2495 = vmatpush.msra.mxu0 %v1324
  %2496 = vmatpush.msra.mxu0 %v1320
  %2497 = vmatpush.msra.mxu0 %v1316
  %2498 = vmatpush.msra.mxu0 %v1312
  %2499 = vmatpush.msra.mxu0 %v1308
  %2500 = vmatpush.msra.mxu0 %v1304
  %2501 = vmatmul.f32.gmra.mxu0 %v1162
  %v2502 = vpop.f32.mrf.mxu0
  %v2503 = vadd.f32 %v2483, %v2502
  %2504 = vdwg.mxu0
  %2505 = vmatpush.msra.mxu0 %v1428
  %2506 = vmatpush.msra.mxu0 %v1424
  %2507 = vmatpush.msra.mxu0 %v1420
  %2508 = vmatpush.msra.mxu0 %v1416
  %2509 = vmatpush.msra.mxu0 %v1412
  %2510 = vmatpush.msra.mxu0 %v1408
  %2511 = vmatpush.msra.mxu0 %v1404
  %2512 = vmatpush.msra.mxu0 %v1400
  %2513 = vmatpush.msra.mxu0 %v1396
  %2514 = vmatpush.msra.mxu0 %v1392
  %2515 = vmatpush.msra.mxu0 %v1388
  %2516 = vmatpush.msra.mxu0 %v1384
  %2517 = vmatpush.msra.mxu0 %v1380
  %2518 = vmatpush.msra.mxu0 %v1376
  %2519 = vmatpush.msra.mxu0 %v1372
  %2520 = vmatpush.msra.mxu0 %v1368
  %2521 = vmatmul.f32.gmra.mxu0 %v1163
  %v2522 = vpop.f32.mrf.mxu0
  %v2523 = vadd.f32 %v2503, %v2522
  %2524 = vdwg.mxu0
  %2525 = vmatpush.msra.mxu0 %v1492
  %2526 = vmatpush.msra.mxu0 %v1488
  %2527 = vmatpush.msra.mxu0 %v1484
  %2528 = vmatpush.msra.mxu0 %v1480
  %2529 = vmatpush.msra.mxu0 %v1476
  %2530 = vmatpush.msra.mxu0 %v1472
  %2531 = vmatpush.msra.mxu0 %v1468
  %2532 = vmatpush.msra.mxu0 %v1464
  %2533 = vmatpush.msra.mxu0 %v1460
  %2534 = vmatpush.msra.mxu0 %v1456
  %2535 = vmatpush.msra.mxu0 %v1452
  %2536 = vmatpush.msra.mxu0 %v1448
  %2537 = vmatpush.msra.mxu0 %v1444
  %2538 = vmatpush.msra.mxu0 %v1440
  %2539 = vmatpush.msra.mxu0 %v1436
  %2540 = vmatpush.msra.mxu0 %v1432
  %2541 = vmatmul.f32.gmra.mxu0 %v1164
  %v2542 = vpop.f32.mrf.mxu0
  %v2543 = vadd.f32 %v2523, %v2542
  %2544 = vdwg.mxu0
  %2545 = vmatpush.msra.mxu0 %v1556
  %2546 = vmatpush.msra.mxu0 %v1552
  %2547 = vmatpush.msra.mxu0 %v1548
  %2548 = vmatpush.msra.mxu0 %v1544
  %2549 = vmatpush.msra.mxu0 %v1540
  %2550 = vmatpush.msra.mxu0 %v1536
  %2551 = vmatpush.msra.mxu0 %v1532
  %2552 = vmatpush.msra.mxu0 %v1528
  %2553 = vmatpush.msra.mxu0 %v1524
  %2554 = vmatpush.msra.mxu0 %v1520
  %2555 = vmatpush.msra.mxu0 %v1516
  %2556 = vmatpush.msra.mxu0 %v1512
  %2557 = vmatpush.msra.mxu0 %v1508
  %2558 = vmatpush.msra.mxu0 %v1504
  %2559 = vmatpush.msra.mxu0 %v1500
  %2560 = vmatpush.msra.mxu0 %v1496
  %2561 = vmatmul.f32.gmra.mxu0 %v1165
  %v2562 = vpop.f32.mrf.mxu0
  %v2563 = vadd.f32 %v2543, %v2562
  %2564 = vdwg.mxu0
  %2565 = vmatpush.msra.mxu0 %v1620
  %2566 = vmatpush.msra.mxu0 %v1616
  %2567 = vmatpush.msra.mxu0 %v1612
  %2568 = vmatpush.msra.mxu0 %v1608
  %2569 = vmatpush.msra.mxu0 %v1604
  %2570 = vmatpush.msra.mxu0 %v1600
  %2571 = vmatpush.msra.mxu0 %v1596
  %2572 = vmatpush.msra.mxu0 %v1592
  %2573 = vmatpush.msra.mxu0 %v1588
  %2574 = vmatpush.msra.mxu0 %v1584
  %2575 = vmatpush.msra.mxu0 %v1580
  %2576 = vmatpush.msra.mxu0 %v1576
  %2577 = vmatpush.msra.mxu0 %v1572
  %2578 = vmatpush.msra.mxu0 %v1568
  %2579 = vmatpush.msra.mxu0 %v1564
  %2580 = vmatpush.msra.mxu0 %v1560
  %2581 = vmatmul.f32.gmra.mxu0 %v1166
  %v2582 = vpop.f32.mrf.mxu0
  %v2583 = vadd.f32 %v2563, %v2582
  %2584 = vdwg.mxu0
  %2585 = vmatpush.msra.mxu0 %v1684
  %2586 = vmatpush.msra.mxu0 %v1680
  %2587 = vmatpush.msra.mxu0 %v1676
  %2588 = vmatpush.msra.mxu0 %v1672
  %2589 = vmatpush.msra.mxu0 %v1668
  %2590 = vmatpush.msra.mxu0 %v1664
  %2591 = vmatpush.msra.mxu0 %v1660
  %2592 = vmatpush.msra.mxu0 %v1656
  %2593 = vmatpush.msra.mxu0 %v1652
  %2594 = vmatpush.msra.mxu0 %v1648
  %2595 = vmatpush.msra.mxu0 %v1644
  %2596 = vmatpush.msra.mxu0 %v1640
  %2597 = vmatpush.msra.mxu0 %v1636
  %2598 = vmatpush.msra.mxu0 %v1632
  %2599 = vmatpush.msra.mxu0 %v1628
  %2600 = vmatpush.msra.mxu0 %v1624
  %2601 = vmatmul.f32.gmra.mxu0 %v1167
  %v2602 = vpop.f32.mrf.mxu0
  %v2603 = vadd.f32 %v2583, %v2602
  %2604 = vdwg.mxu0
  %2605 = vmatpush.msra.mxu0 %v1748
  %2606 = vmatpush.msra.mxu0 %v1744
  %2607 = vmatpush.msra.mxu0 %v1740
  %2608 = vmatpush.msra.mxu0 %v1736
  %2609 = vmatpush.msra.mxu0 %v1732
  %2610 = vmatpush.msra.mxu0 %v1728
  %2611 = vmatpush.msra.mxu0 %v1724
  %2612 = vmatpush.msra.mxu0 %v1720
  %2613 = vmatpush.msra.mxu0 %v1716
  %2614 = vmatpush.msra.mxu0 %v1712
  %2615 = vmatpush.msra.mxu0 %v1708
  %2616 = vmatpush.msra.mxu0 %v1704
  %2617 = vmatpush.msra.mxu0 %v1700
  %2618 = vmatpush.msra.mxu0 %v1696
  %2619 = vmatpush.msra.mxu0 %v1692
  %2620 = vmatpush.msra.mxu0 %v1688
  %2621 = vmatmul.f32.gmra.mxu0 %v1168
  %v2622 = vpop.f32.mrf.mxu0
  %v2623 = vadd.f32 %v2603, %v2622
  %2624 = vdwg.mxu0
  %2625 = vmatpush.msra.mxu0 %v1812
  %2626 = vmatpush.msra.mxu0 %v1808
  %2627 = vmatpush.msra.mxu0 %v1804
  %2628 = vmatpush.msra.mxu0 %v1800
  %2629 = vmatpush.msra.mxu0 %v1796
  %2630 = vmatpush.msra.mxu0 %v1792
  %2631 = vmatpush.msra.mxu0 %v1788
  %2632 = vmatpush.msra.mxu0 %v1784
  %2633 = vmatpush.msra.mxu0 %v1780
  %2634 = vmatpush.msra.mxu0 %v1776
  %2635 = vmatpush.msra.mxu0 %v1772
  %2636 = vmatpush.msra.mxu0 %v1768
  %2637 = vmatpush.msra.mxu0 %v1764
  %2638 = vmatpush.msra.mxu0 %v1760
  %2639 = vmatpush.msra.mxu0 %v1756
  %2640 = vmatpush.msra.mxu0 %v1752
  %2641 = vmatmul.f32.gmra.mxu0 %v1169
  %v2642 = vpop.f32.mrf.mxu0
  %v2643 = vadd.f32 %v2623, %v2642
  %2644 = vdwg.mxu0
  %2645 = vmatpush.msra.mxu0 %v1876
  %2646 = vmatpush.msra.mxu0 %v1872
  %2647 = vmatpush.msra.mxu0 %v1868
  %2648 = vmatpush.msra.mxu0 %v1864
  %2649 = vmatpush.msra.mxu0 %v1860
  %2650 = vmatpush.msra.mxu0 %v1856
  %2651 = vmatpush.msra.mxu0 %v1852
  %2652 = vmatpush.msra.mxu0 %v1848
  %2653 = vmatpush.msra.mxu0 %v1844
  %2654 = vmatpush.msra.mxu0 %v1840
  %2655 = vmatpush.msra.mxu0 %v1836
  %2656 = vmatpush.msra.mxu0 %v1832
  %2657 = vmatpush.msra.mxu0 %v1828
  %2658 = vmatpush.msra.mxu0 %v1824
  %2659 = vmatpush.msra.mxu0 %v1820
  %2660 = vmatpush.msra.mxu0 %v1816
  %2661 = vmatmul.f32.gmra.mxu0 %v1170
  %v2662 = vpop.f32.mrf.mxu0
  %v2663 = vadd.f32 %v2643, %v2662
  %2664 = vdwg.mxu0
  %2665 = vmatpush.msra.mxu0 %v1940
  %2666 = vmatpush.msra.mxu0 %v1936
  %2667 = vmatpush.msra.mxu0 %v1932
  %2668 = vmatpush.msra.mxu0 %v1928
  %2669 = vmatpush.msra.mxu0 %v1924
  %2670 = vmatpush.msra.mxu0 %v1920
  %2671 = vmatpush.msra.mxu0 %v1916
  %2672 = vmatpush.msra.mxu0 %v1912
  %2673 = vmatpush.msra.mxu0 %v1908
  %2674 = vmatpush.msra.mxu0 %v1904
  %2675 = vmatpush.msra.mxu0 %v1900
  %2676 = vmatpush.msra.mxu0 %v1896
  %2677 = vmatpush.msra.mxu0 %v1892
  %2678 = vmatpush.msra.mxu0 %v1888
  %2679 = vmatpush.msra.mxu0 %v1884
  %2680 = vmatpush.msra.mxu0 %v1880
  %2681 = vmatmul.f32.gmra.mxu0 %v1171
  %v2682 = vpop.f32.mrf.mxu0
  %v2683 = vadd.f32 %v2663, %v2682
  %2684 = vdwg.mxu0
  %2685 = vmatpush.msra.mxu0 %v2004
  %2686 = vmatpush.msra.mxu0 %v2000
  %2687 = vmatpush.msra.mxu0 %v1996
  %2688 = vmatpush.msra.mxu0 %v1992
  %2689 = vmatpush.msra.mxu0 %v1988
  %2690 = vmatpush.msra.mxu0 %v1984
  %2691 = vmatpush.msra.mxu0 %v1980
  %2692 = vmatpush.msra.mxu0 %v1976
  %2693 = vmatpush.msra.mxu0 %v1972
  %2694 = vmatpush.msra.mxu0 %v1968
  %2695 = vmatpush.msra.mxu0 %v1964
  %2696 = vmatpush.msra.mxu0 %v1960
  %2697 = vmatpush.msra.mxu0 %v1956
  %2698 = vmatpush.msra.mxu0 %v1952
  %2699 = vmatpush.msra.mxu0 %v1948
  %2700 = vmatpush.msra.mxu0 %v1944
  %2701 = vmatmul.f32.gmra.mxu0 %v1172
  %v2702 = vpop.f32.mrf.mxu0
  %v2703 = vadd.f32 %v2683, %v2702
  %2704 = vdwg.mxu0
  %2705 = vmatpush.msra.mxu0 %v2068
  %2706 = vmatpush.msra.mxu0 %v2064
  %2707 = vmatpush.msra.mxu0 %v2060
  %2708 = vmatpush.msra.mxu0 %v2056
  %2709 = vmatpush.msra.mxu0 %v2052
  %2710 = vmatpush.msra.mxu0 %v2048
  %2711 = vmatpush.msra.mxu0 %v2044
  %2712 = vmatpush.msra.mxu0 %v2040
  %2713 = vmatpush.msra.mxu0 %v2036
  %2714 = vmatpush.msra.mxu0 %v2032
  %2715 = vmatpush.msra.mxu0 %v2028
  %2716 = vmatpush.msra.mxu0 %v2024
  %2717 = vmatpush.msra.mxu0 %v2020
  %2718 = vmatpush.msra.mxu0 %v2016
  %2719 = vmatpush.msra.mxu0 %v2012
  %2720 = vmatpush.msra.mxu0 %v2008
  %2721 = vmatmul.f32.gmra.mxu0 %v1173
  %v2722 = vpop.f32.mrf.mxu0
  %v2723 = vadd.f32 %v2703, %v2722
  %2724 = vdwg.mxu0
  %2725 = vmatpush.msra.mxu0 %v2132
  %2726 = vmatpush.msra.mxu0 %v2128
  %2727 = vmatpush.msra.mxu0 %v2124
  %2728 = vmatpush.msra.mxu0 %v2120
  %2729 = vmatpush.msra.mxu0 %v2116
  %2730 = vmatpush.msra.mxu0 %v2112
  %2731 = vmatpush.msra.mxu0 %v2108
  %2732 = vmatpush.msra.mxu0 %v2104
  %2733 = vmatpush.msra.mxu0 %v2100
  %2734 = vmatpush.msra.mxu0 %v2096
  %2735 = vmatpush.msra.mxu0 %v2092
  %2736 = vmatpush.msra.mxu0 %v2088
  %2737 = vmatpush.msra.mxu0 %v2084
  %2738 = vmatpush.msra.mxu0 %v2080
  %2739 = vmatpush.msra.mxu0 %v2076
  %2740 = vmatpush.msra.mxu0 %v2072
  %2741 = vmatmul.f32.gmra.mxu0 %v1174
  %v2742 = vpop.f32.mrf.mxu0
  %v2743 = vadd.f32 %v2723, %v2742
  %2744 = vdwg.mxu0
  %2745 = vmatpush.msra.mxu0 %v1237
  %2746 = vmatpush.msra.mxu0 %v1233
  %2747 = vmatpush.msra.mxu0 %v1229
  %2748 = vmatpush.msra.mxu0 %v1225
  %2749 = vmatpush.msra.mxu0 %v1221
  %2750 = vmatpush.msra.mxu0 %v1217
  %2751 = vmatpush.msra.mxu0 %v1213
  %2752 = vmatpush.msra.mxu0 %v1209
  %2753 = vmatpush.msra.mxu0 %v1205
  %2754 = vmatpush.msra.mxu0 %v1201
  %2755 = vmatpush.msra.mxu0 %v1197
  %2756 = vmatpush.msra.mxu0 %v1193
  %2757 = vmatpush.msra.mxu0 %v1189
  %2758 = vmatpush.msra.mxu0 %v1185
  %2759 = vmatpush.msra.mxu0 %v1181
  %2760 = vmatpush.msra.mxu0 %v1177
  %2761 = vmatmul.f32.gmra.mxu0 %v1160
  %v2762 = vpop.f32.mrf.mxu0
  %v2763 = vadd.f32 %v2139, %v2762
  %2764 = vdwg.mxu0
  %2765 = vmatpush.msra.mxu0 %v1301
  %2766 = vmatpush.msra.mxu0 %v1297
  %2767 = vmatpush.msra.mxu0 %v1293
  %2768 = vmatpush.msra.mxu0 %v1289
  %2769 = vmatpush.msra.mxu0 %v1285
  %2770 = vmatpush.msra.mxu0 %v1281
  %2771 = vmatpush.msra.mxu0 %v1277
  %2772 = vmatpush.msra.mxu0 %v1273
  %2773 = vmatpush.msra.mxu0 %v1269
  %2774 = vmatpush.msra.mxu0 %v1265
  %2775 = vmatpush.msra.mxu0 %v1261
  %2776 = vmatpush.msra.mxu0 %v1257
  %2777 = vmatpush.msra.mxu0 %v1253
  %2778 = vmatpush.msra.mxu0 %v1249
  %2779 = vmatpush.msra.mxu0 %v1245
  %2780 = vmatpush.msra.mxu0 %v1241
  %2781 = vmatmul.f32.gmra.mxu0 %v1161
  %v2782 = vpop.f32.mrf.mxu0
  %v2783 = vadd.f32 %v2763, %v2782
  %2784 = vdwg.mxu0
  %2785 = vmatpush.msra.mxu0 %v1365
  %2786 = vmatpush.msra.mxu0 %v1361
  %2787 = vmatpush.msra.mxu0 %v1357
  %2788 = vmatpush.msra.mxu0 %v1353
  %2789 = vmatpush.msra.mxu0 %v1349
  %2790 = vmatpush.msra.mxu0 %v1345
  %2791 = vmatpush.msra.mxu0 %v1341
  %2792 = vmatpush.msra.mxu0 %v1337
  %2793 = vmatpush.msra.mxu0 %v1333
  %2794 = vmatpush.msra.mxu0 %v1329
  %2795 = vmatpush.msra.mxu0 %v1325
  %2796 = vmatpush.msra.mxu0 %v1321
  %2797 = vmatpush.msra.mxu0 %v1317
  %2798 = vmatpush.msra.mxu0 %v1313
  %2799 = vmatpush.msra.mxu0 %v1309
  %2800 = vmatpush.msra.mxu0 %v1305
  %2801 = vmatmul.f32.gmra.mxu0 %v1162
  %v2802 = vpop.f32.mrf.mxu0
  %v2803 = vadd.f32 %v2783, %v2802
  %2804 = vdwg.mxu0
  %2805 = vmatpush.msra.mxu0 %v1429
  %2806 = vmatpush.msra.mxu0 %v1425
  %2807 = vmatpush.msra.mxu0 %v1421
  %2808 = vmatpush.msra.mxu0 %v1417
  %2809 = vmatpush.msra.mxu0 %v1413
  %2810 = vmatpush.msra.mxu0 %v1409
  %2811 = vmatpush.msra.mxu0 %v1405
  %2812 = vmatpush.msra.mxu0 %v1401
  %2813 = vmatpush.msra.mxu0 %v1397
  %2814 = vmatpush.msra.mxu0 %v1393
  %2815 = vmatpush.msra.mxu0 %v1389
  %2816 = vmatpush.msra.mxu0 %v1385
  %2817 = vmatpush.msra.mxu0 %v1381
  %2818 = vmatpush.msra.mxu0 %v1377
  %2819 = vmatpush.msra.mxu0 %v1373
  %2820 = vmatpush.msra.mxu0 %v1369
  %2821 = vmatmul.f32.gmra.mxu0 %v1163
  %v2822 = vpop.f32.mrf.mxu0
  %v2823 = vadd.f32 %v2803, %v2822
  %2824 = vdwg.mxu0
  %2825 = vmatpush.msra.mxu0 %v1493
  %2826 = vmatpush.msra.mxu0 %v1489
  %2827 = vmatpush.msra.mxu0 %v1485
  %2828 = vmatpush.msra.mxu0 %v1481
  %2829 = vmatpush.msra.mxu0 %v1477
  %2830 = vmatpush.msra.mxu0 %v1473
  %2831 = vmatpush.msra.mxu0 %v1469
  %2832 = vmatpush.msra.mxu0 %v1465
  %2833 = vmatpush.msra.mxu0 %v1461
  %2834 = vmatpush.msra.mxu0 %v1457
  %2835 = vmatpush.msra.mxu0 %v1453
  %2836 = vmatpush.msra.mxu0 %v1449
  %2837 = vmatpush.msra.mxu0 %v1445
  %2838 = vmatpush.msra.mxu0 %v1441
  %2839 = vmatpush.msra.mxu0 %v1437
  %2840 = vmatpush.msra.mxu0 %v1433
  %2841 = vmatmul.f32.gmra.mxu0 %v1164
  %v2842 = vpop.f32.mrf.mxu0
  %v2843 = vadd.f32 %v2823, %v2842
  %2844 = vdwg.mxu0
  %2845 = vmatpush.msra.mxu0 %v1557
  %2846 = vmatpush.msra.mxu0 %v1553
  %2847 = vmatpush.msra.mxu0 %v1549
  %2848 = vmatpush.msra.mxu0 %v1545
  %2849 = vmatpush.msra.mxu0 %v1541
  %2850 = vmatpush.msra.mxu0 %v1537
  %2851 = vmatpush.msra.mxu0 %v1533
  %2852 = vmatpush.msra.mxu0 %v1529
  %2853 = vmatpush.msra.mxu0 %v1525
  %2854 = vmatpush.msra.mxu0 %v1521
  %2855 = vmatpush.msra.mxu0 %v1517
  %2856 = vmatpush.msra.mxu0 %v1513
  %2857 = vmatpush.msra.mxu0 %v1509
  %2858 = vmatpush.msra.mxu0 %v1505
  %2859 = vmatpush.msra.mxu0 %v1501
  %2860 = vmatpush.msra.mxu0 %v1497
  %2861 = vmatmul.f32.gmra.mxu0 %v1165
  %v2862 = vpop.f32.mrf.mxu0
  %v2863 = vadd.f32 %v2843, %v2862
  %2864 = vdwg.mxu0
  %2865 = vmatpush.msra.mxu0 %v1621
  %2866 = vmatpush.msra.mxu0 %v1617
  %2867 = vmatpush.msra.mxu0 %v1613
  %2868 = vmatpush.msra.mxu0 %v1609
  %2869 = vmatpush.msra.mxu0 %v1605
  %2870 = vmatpush.msra.mxu0 %v1601
  %2871 = vmatpush.msra.mxu0 %v1597
  %2872 = vmatpush.msra.mxu0 %v1593
  %2873 = vmatpush.msra.mxu0 %v1589
  %2874 = vmatpush.msra.mxu0 %v1585
  %2875 = vmatpush.msra.mxu0 %v1581
  %2876 = vmatpush.msra.mxu0 %v1577
  %2877 = vmatpush.msra.mxu0 %v1573
  %2878 = vmatpush.msra.mxu0 %v1569
  %2879 = vmatpush.msra.mxu0 %v1565
  %2880 = vmatpush.msra.mxu0 %v1561
  %2881 = vmatmul.f32.gmra.mxu0 %v1166
  %v2882 = vpop.f32.mrf.mxu0
  %v2883 = vadd.f32 %v2863, %v2882
  %2884 = vdwg.mxu0
  %2885 = vmatpush.msra.mxu0 %v1685
  %2886 = vmatpush.msra.mxu0 %v1681
  %2887 = vmatpush.msra.mxu0 %v1677
  %2888 = vmatpush.msra.mxu0 %v1673
  %2889 = vmatpush.msra.mxu0 %v1669
  %2890 = vmatpush.msra.mxu0 %v1665
  %2891 = vmatpush.msra.mxu0 %v1661
  %2892 = vmatpush.msra.mxu0 %v1657
  %2893 = vmatpush.msra.mxu0 %v1653
  %2894 = vmatpush.msra.mxu0 %v1649
  %2895 = vmatpush.msra.mxu0 %v1645
  %2896 = vmatpush.msra.mxu0 %v1641
  %2897 = vmatpush.msra.mxu0 %v1637
  %2898 = vmatpush.msra.mxu0 %v1633
  %2899 = vmatpush.msra.mxu0 %v1629
  %2900 = vmatpush.msra.mxu0 %v1625
  %2901 = vmatmul.f32.gmra.mxu0 %v1167
  %v2902 = vpop.f32.mrf.mxu0
  %v2903 = vadd.f32 %v2883, %v2902
  %2904 = vdwg.mxu0
  %2905 = vmatpush.msra.mxu0 %v1749
  %2906 = vmatpush.msra.mxu0 %v1745
  %2907 = vmatpush.msra.mxu0 %v1741
  %2908 = vmatpush.msra.mxu0 %v1737
  %2909 = vmatpush.msra.mxu0 %v1733
  %2910 = vmatpush.msra.mxu0 %v1729
  %2911 = vmatpush.msra.mxu0 %v1725
  %2912 = vmatpush.msra.mxu0 %v1721
  %2913 = vmatpush.msra.mxu0 %v1717
  %2914 = vmatpush.msra.mxu0 %v1713
  %2915 = vmatpush.msra.mxu0 %v1709
  %2916 = vmatpush.msra.mxu0 %v1705
  %2917 = vmatpush.msra.mxu0 %v1701
  %2918 = vmatpush.msra.mxu0 %v1697
  %2919 = vmatpush.msra.mxu0 %v1693
  %2920 = vmatpush.msra.mxu0 %v1689
  %2921 = vmatmul.f32.gmra.mxu0 %v1168
  %v2922 = vpop.f32.mrf.mxu0
  %v2923 = vadd.f32 %v2903, %v2922
  %2924 = vdwg.mxu0
  %2925 = vmatpush.msra.mxu0 %v1813
  %2926 = vmatpush.msra.mxu0 %v1809
  %2927 = vmatpush.msra.mxu0 %v1805
  %2928 = vmatpush.msra.mxu0 %v1801
  %2929 = vmatpush.msra.mxu0 %v1797
  %2930 = vmatpush.msra.mxu0 %v1793
  %2931 = vmatpush.msra.mxu0 %v1789
  %2932 = vmatpush.msra.mxu0 %v1785
  %2933 = vmatpush.msra.mxu0 %v1781
  %2934 = vmatpush.msra.mxu0 %v1777
  %2935 = vmatpush.msra.mxu0 %v1773
  %2936 = vmatpush.msra.mxu0 %v1769
  %2937 = vmatpush.msra.mxu0 %v1765
  %2938 = vmatpush.msra.mxu0 %v1761
  %2939 = vmatpush.msra.mxu0 %v1757
  %2940 = vmatpush.msra.mxu0 %v1753
  %2941 = vmatmul.f32.gmra.mxu0 %v1169
  %v2942 = vpop.f32.mrf.mxu0
  %v2943 = vadd.f32 %v2923, %v2942
  %2944 = vdwg.mxu0
  %2945 = vmatpush.msra.mxu0 %v1877
  %2946 = vmatpush.msra.mxu0 %v1873
  %2947 = vmatpush.msra.mxu0 %v1869
  %2948 = vmatpush.msra.mxu0 %v1865
  %2949 = vmatpush.msra.mxu0 %v1861
  %2950 = vmatpush.msra.mxu0 %v1857
  %2951 = vmatpush.msra.mxu0 %v1853
  %2952 = vmatpush.msra.mxu0 %v1849
  %2953 = vmatpush.msra.mxu0 %v1845
  %2954 = vmatpush.msra.mxu0 %v1841
  %2955 = vmatpush.msra.mxu0 %v1837
  %2956 = vmatpush.msra.mxu0 %v1833
  %2957 = vmatpush.msra.mxu0 %v1829
  %2958 = vmatpush.msra.mxu0 %v1825
  %2959 = vmatpush.msra.mxu0 %v1821
  %2960 = vmatpush.msra.mxu0 %v1817
  %2961 = vmatmul.f32.gmra.mxu0 %v1170
  %v2962 = vpop.f32.mrf.mxu0
  %v2963 = vadd.f32 %v2943, %v2962
  %2964 = vdwg.mxu0
  %2965 = vmatpush.msra.mxu0 %v1941
  %2966 = vmatpush.msra.mxu0 %v1937
  %2967 = vmatpush.msra.mxu0 %v1933
  %2968 = vmatpush.msra.mxu0 %v1929
  %2969 = vmatpush.msra.mxu0 %v1925
  %2970 = vmatpush.msra.mxu0 %v1921
  %2971 = vmatpush.msra.mxu0 %v1917
  %2972 = vmatpush.msra.mxu0 %v1913
  %2973 = vmatpush.msra.mxu0 %v1909
  %2974 = vmatpush.msra.mxu0 %v1905
  %2975 = vmatpush.msra.mxu0 %v1901
  %2976 = vmatpush.msra.mxu0 %v1897
  %2977 = vmatpush.msra.mxu0 %v1893
  %2978 = vmatpush.msra.mxu0 %v1889
  %2979 = vmatpush.msra.mxu0 %v1885
  %2980 = vmatpush.msra.mxu0 %v1881
  %2981 = vmatmul.f32.gmra.mxu0 %v1171
  %v2982 = vpop.f32.mrf.mxu0
  %v2983 = vadd.f32 %v2963, %v2982
  %2984 = vdwg.mxu0
  %2985 = vmatpush.msra.mxu0 %v2005
  %2986 = vmatpush.msra.mxu0 %v2001
  %2987 = vmatpush.msra.mxu0 %v1997
  %2988 = vmatpush.msra.mxu0 %v1993
  %2989 = vmatpush.msra.mxu0 %v1989
  %2990 = vmatpush.msra.mxu0 %v1985
  %2991 = vmatpush.msra.mxu0 %v1981
  %2992 = vmatpush.msra.mxu0 %v1977
  %2993 = vmatpush.msra.mxu0 %v1973
  %2994 = vmatpush.msra.mxu0 %v1969
  %2995 = vmatpush.msra.mxu0 %v1965
  %2996 = vmatpush.msra.mxu0 %v1961
  %2997 = vmatpush.msra.mxu0 %v1957
  %2998 = vmatpush.msra.mxu0 %v1953
  %2999 = vmatpush.msra.mxu0 %v1949
  %3000 = vmatpush.msra.mxu0 %v1945
  %3001 = vmatmul.f32.gmra.mxu0 %v1172
  %v3002 = vpop.f32.mrf.mxu0
  %v3003 = vadd.f32 %v2983, %v3002
  %3004 = vdwg.mxu0
  %3005 = vmatpush.msra.mxu0 %v2069
  %3006 = vmatpush.msra.mxu0 %v2065
  %3007 = vmatpush.msra.mxu0 %v2061
  %3008 = vmatpush.msra.mxu0 %v2057
  %3009 = vmatpush.msra.mxu0 %v2053
  %3010 = vmatpush.msra.mxu0 %v2049
  %3011 = vmatpush.msra.mxu0 %v2045
  %3012 = vmatpush.msra.mxu0 %v2041
  %3013 = vmatpush.msra.mxu0 %v2037
  %3014 = vmatpush.msra.mxu0 %v2033
  %3015 = vmatpush.msra.mxu0 %v2029
  %3016 = vmatpush.msra.mxu0 %v2025
  %3017 = vmatpush.msra.mxu0 %v2021
  %3018 = vmatpush.msra.mxu0 %v2017
  %3019 = vmatpush.msra.mxu0 %v2013
  %3020 = vmatpush.msra.mxu0 %v2009
  %3021 = vmatmul.f32.gmra.mxu0 %v1173
  %v3022 = vpop.f32.mrf.mxu0
  %v3023 = vadd.f32 %v3003, %v3022
  %3024 = vdwg.mxu0
  %3025 = vmatpush.msra.mxu0 %v2133
  %3026 = vmatpush.msra.mxu0 %v2129
  %3027 = vmatpush.msra.mxu0 %v2125
  %3028 = vmatpush.msra.mxu0 %v2121
  %3029 = vmatpush.msra.mxu0 %v2117
  %3030 = vmatpush.msra.mxu0 %v2113
  %3031 = vmatpush.msra.mxu0 %v2109
  %3032 = vmatpush.msra.mxu0 %v2105
  %3033 = vmatpush.msra.mxu0 %v2101
  %3034 = vmatpush.msra.mxu0 %v2097
  %3035 = vmatpush.msra.mxu0 %v2093
  %3036 = vmatpush.msra.mxu0 %v2089
  %3037 = vmatpush.msra.mxu0 %v2085
  %3038 = vmatpush.msra.mxu0 %v2081
  %3039 = vmatpush.msra.mxu0 %v2077
  %3040 = vmatpush.msra.mxu0 %v2073
  %3041 = vmatmul.f32.gmra.mxu0 %v1174
  %v3042 = vpop.f32.mrf.mxu0
  %v3043 = vadd.f32 %v3023, %v3042
  %3044 = vdwg.mxu0
  %3045 = vmatpush.msra.mxu0 %v1238
  %3046 = vmatpush.msra.mxu0 %v1234
  %3047 = vmatpush.msra.mxu0 %v1230
  %3048 = vmatpush.msra.mxu0 %v1226
  %3049 = vmatpush.msra.mxu0 %v1222
  %3050 = vmatpush.msra.mxu0 %v1218
  %3051 = vmatpush.msra.mxu0 %v1214
  %3052 = vmatpush.msra.mxu0 %v1210
  %3053 = vmatpush.msra.mxu0 %v1206
  %3054 = vmatpush.msra.mxu0 %v1202
  %3055 = vmatpush.msra.mxu0 %v1198
  %3056 = vmatpush.msra.mxu0 %v1194
  %3057 = vmatpush.msra.mxu0 %v1190
  %3058 = vmatpush.msra.mxu0 %v1186
  %3059 = vmatpush.msra.mxu0 %v1182
  %3060 = vmatpush.msra.mxu0 %v1178
  %3061 = vmatmul.f32.gmra.mxu0 %v1160
  %v3062 = vpop.f32.mrf.mxu0
  %v3063 = vadd.f32 %v2140, %v3062
  %3064 = vdwg.mxu0
  %3065 = vmatpush.msra.mxu0 %v1302
  %3066 = vmatpush.msra.mxu0 %v1298
  %3067 = vmatpush.msra.mxu0 %v1294
  %3068 = vmatpush.msra.mxu0 %v1290
  %3069 = vmatpush.msra.mxu0 %v1286
  %3070 = vmatpush.msra.mxu0 %v1282
  %3071 = vmatpush.msra.mxu0 %v1278
  %3072 = vmatpush.msra.mxu0 %v1274
  %3073 = vmatpush.msra.mxu0 %v1270
  %3074 = vmatpush.msra.mxu0 %v1266
  %3075 = vmatpush.msra.mxu0 %v1262
  %3076 = vmatpush.msra.mxu0 %v1258
  %3077 = vmatpush.msra.mxu0 %v1254
  %3078 = vmatpush.msra.mxu0 %v1250
  %3079 = vmatpush.msra.mxu0 %v1246
  %3080 = vmatpush.msra.mxu0 %v1242
  %3081 = vmatmul.f32.gmra.mxu0 %v1161
  %v3082 = vpop.f32.mrf.mxu0
  %v3083 = vadd.f32 %v3063, %v3082
  %3084 = vdwg.mxu0
  %3085 = vmatpush.msra.mxu0 %v1366
  %3086 = vmatpush.msra.mxu0 %v1362
  %3087 = vmatpush.msra.mxu0 %v1358
  %3088 = vmatpush.msra.mxu0 %v1354
  %3089 = vmatpush.msra.mxu0 %v1350
  %3090 = vmatpush.msra.mxu0 %v1346
  %3091 = vmatpush.msra.mxu0 %v1342
  %3092 = vmatpush.msra.mxu0 %v1338
  %3093 = vmatpush.msra.mxu0 %v1334
  %3094 = vmatpush.msra.mxu0 %v1330
  %3095 = vmatpush.msra.mxu0 %v1326
  %3096 = vmatpush.msra.mxu0 %v1322
  %3097 = vmatpush.msra.mxu0 %v1318
  %3098 = vmatpush.msra.mxu0 %v1314
  %3099 = vmatpush.msra.mxu0 %v1310
  %3100 = vmatpush.msra.mxu0 %v1306
  %3101 = vmatmul.f32.gmra.mxu0 %v1162
  %v3102 = vpop.f32.mrf.mxu0
  %v3103 = vadd.f32 %v3083, %v3102
  %3104 = vdwg.mxu0
  %3105 = vmatpush.msra.mxu0 %v1430
  %3106 = vmatpush.msra.mxu0 %v1426
  %3107 = vmatpush.msra.mxu0 %v1422
  %3108 = vmatpush.msra.mxu0 %v1418
  %3109 = vmatpush.msra.mxu0 %v1414
  %3110 = vmatpush.msra.mxu0 %v1410
  %3111 = vmatpush.msra.mxu0 %v1406
  %3112 = vmatpush.msra.mxu0 %v1402
  %3113 = vmatpush.msra.mxu0 %v1398
  %3114 = vmatpush.msra.mxu0 %v1394
  %3115 = vmatpush.msra.mxu0 %v1390
  %3116 = vmatpush.msra.mxu0 %v1386
  %3117 = vmatpush.msra.mxu0 %v1382
  %3118 = vmatpush.msra.mxu0 %v1378
  %3119 = vmatpush.msra.mxu0 %v1374
  %3120 = vmatpush.msra.mxu0 %v1370
  %3121 = vmatmul.f32.gmra.mxu0 %v1163
  %v3122 = vpop.f32.mrf.mxu0
  %v3123 = vadd.f32 %v3103, %v3122
  %3124 = vdwg.mxu0
  %3125 = vmatpush.msra.mxu0 %v1494
  %3126 = vmatpush.msra.mxu0 %v1490
  %3127 = vmatpush.msra.mxu0 %v1486
  %3128 = vmatpush.msra.mxu0 %v1482
  %3129 = vmatpush.msra.mxu0 %v1478
  %3130 = vmatpush.msra.mxu0 %v1474
  %3131 = vmatpush.msra.mxu0 %v1470
  %3132 = vmatpush.msra.mxu0 %v1466
  %3133 = vmatpush.msra.mxu0 %v1462
  %3134 = vmatpush.msra.mxu0 %v1458
  %3135 = vmatpush.msra.mxu0 %v1454
  %3136 = vmatpush.msra.mxu0 %v1450
  %3137 = vmatpush.msra.mxu0 %v1446
  %3138 = vmatpush.msra.mxu0 %v1442
  %3139 = vmatpush.msra.mxu0 %v1438
  %3140 = vmatpush.msra.mxu0 %v1434
  %3141 = vmatmul.f32.gmra.mxu0 %v1164
  %v3142 = vpop.f32.mrf.mxu0
  %v3143 = vadd.f32 %v3123, %v3142
  %3144 = vdwg.mxu0
  %3145 = vmatpush.msra.mxu0 %v1558
  %3146 = vmatpush.msra.mxu0 %v1554
  %3147 = vmatpush.msra.mxu0 %v1550
  %3148 = vmatpush.msra.mxu0 %v1546
  %3149 = vmatpush.msra.mxu0 %v1542
  %3150 = vmatpush.msra.mxu0 %v1538
  %3151 = vmatpush.msra.mxu0 %v1534
  %3152 = vmatpush.msra.mxu0 %v1530
  %3153 = vmatpush.msra.mxu0 %v1526
  %3154 = vmatpush.msra.mxu0 %v1522
  %3155 = vmatpush.msra.mxu0 %v1518
  %3156 = vmatpush.msra.mxu0 %v1514
  %3157 = vmatpush.msra.mxu0 %v1510
  %3158 = vmatpush.msra.mxu0 %v1506
  %3159 = vmatpush.msra.mxu0 %v1502
  %3160 = vmatpush.msra.mxu0 %v1498
  %3161 = vmatmul.f32.gmra.mxu0 %v1165
  %v3162 = vpop.f32.mrf.mxu0
  %v3163 = vadd.f32 %v3143, %v3162
  %3164 = vdwg.mxu0
  %3165 = vmatpush.msra.mxu0 %v1622
  %3166 = vmatpush.msra.mxu0 %v1618
  %3167 = vmatpush.msra.mxu0 %v1614
  %3168 = vmatpush.msra.mxu0 %v1610
  %3169 = vmatpush.msra.mxu0 %v1606
  %3170 = vmatpush.msra.mxu0 %v1602
  %3171 = vmatpush.msra.mxu0 %v1598
  %3172 = vmatpush.msra.mxu0 %v1594
  %3173 = vmatpush.msra.mxu0 %v1590
  %3174 = vmatpush.msra.mxu0 %v1586
  %3175 = vmatpush.msra.mxu0 %v1582
  %3176 = vmatpush.msra.mxu0 %v1578
  %3177 = vmatpush.msra.mxu0 %v1574
  %3178 = vmatpush.msra.mxu0 %v1570
  %3179 = vmatpush.msra.mxu0 %v1566
  %3180 = vmatpush.msra.mxu0 %v1562
  %3181 = vmatmul.f32.gmra.mxu0 %v1166
  %v3182 = vpop.f32.mrf.mxu0
  %v3183 = vadd.f32 %v3163, %v3182
  %3184 = vdwg.mxu0
  %3185 = vmatpush.msra.mxu0 %v1686
  %3186 = vmatpush.msra.mxu0 %v1682
  %3187 = vmatpush.msra.mxu0 %v1678
  %3188 = vmatpush.msra.mxu0 %v1674
  %3189 = vmatpush.msra.mxu0 %v1670
  %3190 = vmatpush.msra.mxu0 %v1666
  %3191 = vmatpush.msra.mxu0 %v1662
  %3192 = vmatpush.msra.mxu0 %v1658
  %3193 = vmatpush.msra.mxu0 %v1654
  %3194 = vmatpush.msra.mxu0 %v1650
  %3195 = vmatpush.msra.mxu0 %v1646
  %3196 = vmatpush.msra.mxu0 %v1642
  %3197 = vmatpush.msra.mxu0 %v1638
  %3198 = vmatpush.msra.mxu0 %v1634
  %3199 = vmatpush.msra.mxu0 %v1630
  %3200 = vmatpush.msra.mxu0 %v1626
  %3201 = vmatmul.f32.gmra.mxu0 %v1167
  %v3202 = vpop.f32.mrf.mxu0
  %v3203 = vadd.f32 %v3183, %v3202
  %3204 = vdwg.mxu0
  %3205 = vmatpush.msra.mxu0 %v1750
  %3206 = vmatpush.msra.mxu0 %v1746
  %3207 = vmatpush.msra.mxu0 %v1742
  %3208 = vmatpush.msra.mxu0 %v1738
  %3209 = vmatpush.msra.mxu0 %v1734
  %3210 = vmatpush.msra.mxu0 %v1730
  %3211 = vmatpush.msra.mxu0 %v1726
  %3212 = vmatpush.msra.mxu0 %v1722
  %3213 = vmatpush.msra.mxu0 %v1718
  %3214 = vmatpush.msra.mxu0 %v1714
  %3215 = vmatpush.msra.mxu0 %v1710
  %3216 = vmatpush.msra.mxu0 %v1706
  %3217 = vmatpush.msra.mxu0 %v1702
  %3218 = vmatpush.msra.mxu0 %v1698
  %3219 = vmatpush.msra.mxu0 %v1694
  %3220 = vmatpush.msra.mxu0 %v1690
  %3221 = vmatmul.f32.gmra.mxu0 %v1168
  %v3222 = vpop.f32.mrf.mxu0
  %v3223 = vadd.f32 %v3203, %v3222
  %3224 = vdwg.mxu0
  %3225 = vmatpush.msra.mxu0 %v1814
  %3226 = vmatpush.msra.mxu0 %v1810
  %3227 = vmatpush.msra.mxu0 %v1806
  %3228 = vmatpush.msra.mxu0 %v1802
  %3229 = vmatpush.msra.mxu0 %v1798
  %3230 = vmatpush.msra.mxu0 %v1794
  %3231 = vmatpush.msra.mxu0 %v1790
  %3232 = vmatpush.msra.mxu0 %v1786
  %3233 = vmatpush.msra.mxu0 %v1782
  %3234 = vmatpush.msra.mxu0 %v1778
  %3235 = vmatpush.msra.mxu0 %v1774
  %3236 = vmatpush.msra.mxu0 %v1770
  %3237 = vmatpush.msra.mxu0 %v1766
  %3238 = vmatpush.msra.mxu0 %v1762
  %3239 = vmatpush.msra.mxu0 %v1758
  %3240 = vmatpush.msra.mxu0 %v1754
  %3241 = vmatmul.f32.gmra.mxu0 %v1169
  %v3242 = vpop.f32.mrf.mxu0
  %v3243 = vadd.f32 %v3223, %v3242
  %3244 = vdwg.mxu0
  %3245 = vmatpush.msra.mxu0 %v1878
  %3246 = vmatpush.msra.mxu0 %v1874
  %3247 = vmatpush.msra.mxu0 %v1870
  %3248 = vmatpush.msra.mxu0 %v1866
  %3249 = vmatpush.msra.mxu0 %v1862
  %3250 = vmatpush.msra.mxu0 %v1858
  %3251 = vmatpush.msra.mxu0 %v1854
  %3252 = vmatpush.msra.mxu0 %v1850
  %3253 = vmatpush.msra.mxu0 %v1846
  %3254 = vmatpush.msra.mxu0 %v1842
  %3255 = vmatpush.msra.mxu0 %v1838
  %3256 = vmatpush.msra.mxu0 %v1834
  %3257 = vmatpush.msra.mxu0 %v1830
  %3258 = vmatpush.msra.mxu0 %v1826
  %3259 = vmatpush.msra.mxu0 %v1822
  %3260 = vmatpush.msra.mxu0 %v1818
  %3261 = vmatmul.f32.gmra.mxu0 %v1170
  %v3262 = vpop.f32.mrf.mxu0
  %v3263 = vadd.f32 %v3243, %v3262
  %3264 = vdwg.mxu0
  %3265 = vmatpush.msra.mxu0 %v1942
  %3266 = vmatpush.msra.mxu0 %v1938
  %3267 = vmatpush.msra.mxu0 %v1934
  %3268 = vmatpush.msra.mxu0 %v1930
  %3269 = vmatpush.msra.mxu0 %v1926
  %3270 = vmatpush.msra.mxu0 %v1922
  %3271 = vmatpush.msra.mxu0 %v1918
  %3272 = vmatpush.msra.mxu0 %v1914
  %3273 = vmatpush.msra.mxu0 %v1910
  %3274 = vmatpush.msra.mxu0 %v1906
  %3275 = vmatpush.msra.mxu0 %v1902
  %3276 = vmatpush.msra.mxu0 %v1898
  %3277 = vmatpush.msra.mxu0 %v1894
  %3278 = vmatpush.msra.mxu0 %v1890
  %3279 = vmatpush.msra.mxu0 %v1886
  %3280 = vmatpush.msra.mxu0 %v1882
  %3281 = vmatmul.f32.gmra.mxu0 %v1171
  %v3282 = vpop.f32.mrf.mxu0
  %v3283 = vadd.f32 %v3263, %v3282
  %3284 = vdwg.mxu0
  %3285 = vmatpush.msra.mxu0 %v2006
  %3286 = vmatpush.msra.mxu0 %v2002
  %3287 = vmatpush.msra.mxu0 %v1998
  %3288 = vmatpush.msra.mxu0 %v1994
  %3289 = vmatpush.msra.mxu0 %v1990
  %3290 = vmatpush.msra.mxu0 %v1986
  %3291 = vmatpush.msra.mxu0 %v1982
  %3292 = vmatpush.msra.mxu0 %v1978
  %3293 = vmatpush.msra.mxu0 %v1974
  %3294 = vmatpush.msra.mxu0 %v1970
  %3295 = vmatpush.msra.mxu0 %v1966
  %3296 = vmatpush.msra.mxu0 %v1962
  %3297 = vmatpush.msra.mxu0 %v1958
  %3298 = vmatpush.msra.mxu0 %v1954
  %3299 = vmatpush.msra.mxu0 %v1950
  %3300 = vmatpush.msra.mxu0 %v1946
  %3301 = vmatmul.f32.gmra.mxu0 %v1172
  %v3302 = vpop.f32.mrf.mxu0
  %v3303 = vadd.f32 %v3283, %v3302
  %3304 = vdwg.mxu0
  %3305 = vmatpush.msra.mxu0 %v2070
  %3306 = vmatpush.msra.mxu0 %v2066
  %3307 = vmatpush.msra.mxu0 %v2062
  %3308 = vmatpush.msra.mxu0 %v2058
  %3309 = vmatpush.msra.mxu0 %v2054
  %3310 = vmatpush.msra.mxu0 %v2050
  %3311 = vmatpush.msra.mxu0 %v2046
  %3312 = vmatpush.msra.mxu0 %v2042
  %3313 = vmatpush.msra.mxu0 %v2038
  %3314 = vmatpush.msra.mxu0 %v2034
  %3315 = vmatpush.msra.mxu0 %v2030
  %3316 = vmatpush.msra.mxu0 %v2026
  %3317 = vmatpush.msra.mxu0 %v2022
  %3318 = vmatpush.msra.mxu0 %v2018
  %3319 = vmatpush.msra.mxu0 %v2014
  %3320 = vmatpush.msra.mxu0 %v2010
  %3321 = vmatmul.f32.gmra.mxu0 %v1173
  %v3322 = vpop.f32.mrf.mxu0
  %v3323 = vadd.f32 %v3303, %v3322
  %3324 = vdwg.mxu0
  %3325 = vmatpush.msra.mxu0 %v2134
  %3326 = vmatpush.msra.mxu0 %v2130
  %3327 = vmatpush.msra.mxu0 %v2126
  %3328 = vmatpush.msra.mxu0 %v2122
  %3329 = vmatpush.msra.mxu0 %v2118
  %3330 = vmatpush.msra.mxu0 %v2114
  %3331 = vmatpush.msra.mxu0 %v2110
  %3332 = vmatpush.msra.mxu0 %v2106
  %3333 = vmatpush.msra.mxu0 %v2102
  %3334 = vmatpush.msra.mxu0 %v2098
  %3335 = vmatpush.msra.mxu0 %v2094
  %3336 = vmatpush.msra.mxu0 %v2090
  %3337 = vmatpush.msra.mxu0 %v2086
  %3338 = vmatpush.msra.mxu0 %v2082
  %3339 = vmatpush.msra.mxu0 %v2078
  %3340 = vmatpush.msra.mxu0 %v2074
  %3341 = vmatmul.f32.gmra.mxu0 %v1174
  %v3342 = vpop.f32.mrf.mxu0
  %v3343 = vadd.f32 %v3323, %v3342
  %3344 = vdwg.mxu0
  %v3345 = vmax.f32 %v2443, 0.0
  %v3346 = vmax.f32 %v2743, 0.0
  %v3347 = vmax.f32 %v3043, 0.0
  %v3348 = vmax.f32 %v3343, 0.0
  %v3349 = vld [vmem:[%s5] sm:$0xff]
  %v3350 = vld [vmem:[%s5 + $0x8] sm:$0xff]
  %v3351 = vld [vmem:[%s5 + $0x10] sm:$0xff]
  %v3352 = vld [vmem:[%s5 + $0x18] sm:$0xff]
  %v3353 = vld [vmem:[%s5 + $0x20] sm:$0xff]
  %v3354 = vld [vmem:[%s5 + $0x28] sm:$0xff]
  %v3355 = vld [vmem:[%s5 + $0x30] sm:$0xff]
  %v3356 = vld [vmem:[%s5 + $0x38] sm:$0xff]
  %v3357 = vld [vmem:[%s5 + $0x40] sm:$0xff]
  %v3358 = vld [vmem:[%s5 + $0x48] sm:$0xff]
  %v3359 = vld [vmem:[%s5 + $0x50] sm:$0xff]
  %v3360 = vld [vmem:[%s5 + $0x58] sm:$0xff]
  %v3361 = vld [vmem:[%s5 + $0x60] sm:$0xff]
  %v3362 = vld [vmem:[%s5 + $0x68] sm:$0xff]
  %v3363 = vld [vmem:[%s5 + $0x70] sm:$0xff]
  %v3364 = vld [vmem:[%s5 + $0x78] sm:$0xff]
  %v3365 = vld [vmem:[%s5 + $0x80] sm:$0xff]
  %v3366 = vld [vmem:[%s5 + $0x88] sm:$0xff]
  %v3367 = vld [vmem:[%s5 + $0x90] sm:$0xff]
  %v3368 = vld [vmem:[%s5 + $0x98] sm:$0xff]
  %v3369 = vld [vmem:[%s5 + $0xa0] sm:$0xff]
  %v3370 = vld [vmem:[%s5 + $0xa8] sm:$0xff]
  %v3371 = vld [vmem:[%s5 + $0xb0] sm:$0xff]
  %v3372 = vld [vmem:[%s5 + $0xb8] sm:$0xff]
  %v3373 = vld [vmem:[%s5 + $0xc0] sm:$0xff]
  %v3374 = vld [vmem:[%s5 + $0xc8] sm:$0xff]
  %v3375 = vld [vmem:[%s5 + $0xd0] sm:$0xff]
  %v3376 = vld [vmem:[%s5 + $0xd8] sm:$0xff]
  %v3377 = vld [vmem:[%s5 + $0xe0] sm:$0xff]
  %v3378 = vld [vmem:[%s5 + $0xe8] sm:$0xff]
  %v3379 = vld [vmem:[%s5 + $0xf0] sm:$0xff]
  %v3380 = vld [vmem:[%s5 + $0xf8] sm:$0xff]
  %v3381 = vld [vmem:[%s5 + $0x100] sm:$0xff]
  %v3382 = vld [vmem:[%s5 + $0x108] sm:$0xff]
  %v3383 = vld [vmem:[%s5 + $0x110] sm:$0xff]
  %v3384 = vld [vmem:[%s5 + $0x118] sm:$0xff]
  %v3385 = vld [vmem:[%s5 + $0x120] sm:$0xff]
  %v3386 = vld [vmem:[%s5 + $0x128] sm:$0xff]
  %v3387 = vld [vmem:[%s5 + $0x130] sm:$0xff]
  %v3388 = vld [vmem:[%s5 + $0x138] sm:$0xff]
  %v3389 = vld [vmem:[%s5 + $0x140] sm:$0xff]
  %v3390 = vld [vmem:[%s5 + $0x148] sm:$0xff]
  %v3391 = vld [vmem:[%s5 + $0x150] sm:$0xff]
  %v3392 = vld [vmem:[%s5 + $0x158] sm:$0xff]
  %v3393 = vld [vmem:[%s5 + $0x160] sm:$0xff]
  %v3394 = vld [vmem:[%s5 + $0x168] sm:$0xff]
  %v3395 = vld [vmem:[%s5 + $0x170] sm:$0xff]
  %v3396 = vld [vmem:[%s5 + $0x178] sm:$0xff]
  %v3397 = vld [vmem:[%s5 + $0x180] sm:$0xff]
  %v3398 = vld [vmem:[%s5 + $0x188] sm:$0xff]
  %v3399 = vld [vmem:[%s5 + $0x190] sm:$0xff]
  %v3400 = vld [vmem:[%s5 + $0x198] sm:$0xff]
  %v3401 = vld [vmem:[%s5 + $0x1a0] sm:$0xff]
  %v3402 = vld [vmem:[%s5 + $0x1a8] sm:$0xff]
  %v3403 = vld [vmem:[%s5 + $0x1b0] sm:$0xff]
  %v3404 = vld [vmem:[%s5 + $0x1b8] sm:$0xff]
  %v3405 = vld [vmem:[%s5 + $0x1c0] sm:$0xff]
  %v3406 = vld [vmem:[%s5 + $0x1c8] sm:$0xff]
  %v3407 = vld [vmem:[%s5 + $0x1d0] sm:$0xff]
  %v3408 = vld [vmem:[%s5 + $0x1d8] sm:$0xff]
  %v3409 = vld [vmem:[%s5 + $0x1e0] sm:$0xff]
  %v3410 = vld [vmem:[%s5 + $0x1e8] sm:$0xff]
  %v3411 = vld [vmem:[%s5 + $0x1f0] sm:$0xff]
  %v3412 = vld [vmem:[%s5 + $0x1f8] sm:$0xff]
  %v3413 = vld [vmem:[%s5 + $0x200] sm:$0xff]
  %v3414 = vld [vmem:[%s5 + $0x208] sm:$0xff]
  %v3415 = vld [vmem:[%s5 + $0x210] sm:$0xff]
  %v3416 = vld [vmem:[%s5 + $0x218] sm:$0xff]
  %v3417 = vld [vmem:[%s5 + $0x220] sm:$0xff]
  %v3418 = vld [vmem:[%s5 + $0x228] sm:$0xff]
  %v3419 = vld [vmem:[%s5 + $0x230] sm:$0xff]
  %v3420 = vld [vmem:[%s5 + $0x238] sm:$0xff]
  %v3421 = vld [vmem:[%s5 + $0x240] sm:$0xff]
  %v3422 = vld [vmem:[%s5 + $0x248] sm:$0xff]
  %v3423 = vld [vmem:[%s5 + $0x250] sm:$0xff]
  %v3424 = vld [vmem:[%s5 + $0x258] sm:$0xff]
  %v3425 = vld [vmem:[%s5 + $0x260] sm:$0xff]
  %v3426 = vld [vmem:[%s5 + $0x268] sm:$0xff]
  %v3427 = vld [vmem:[%s5 + $0x270] sm:$0xff]
  %v3428 = vld [vmem:[%s5 + $0x278] sm:$0xff]
  %v3429 = vld [vmem:[%s5 + $0x280] sm:$0xff]
  %v3430 = vld [vmem:[%s5 + $0x288] sm:$0xff]
  %v3431 = vld [vmem:[%s5 + $0x290] sm:$0xff]
  %v3432 = vld [vmem:[%s5 + $0x298] sm:$0xff]
  %v3433 = vld [vmem:[%s5 + $0x2a0] sm:$0xff]
  %v3434 = vld [vmem:[%s5 + $0x2a8] sm:$0xff]
  %v3435 = vld [vmem:[%s5 + $0x2b0] sm:$0xff]
  %v3436 = vld [vmem:[%s5 + $0x2b8] sm:$0xff]
  %v3437 = vld [vmem:[%s5 + $0x2c0] sm:$0xff]
  %v3438 = vld [vmem:[%s5 + $0x2c8] sm:$0xff]
  %v3439 = vld [vmem:[%s5 + $0x2d0] sm:$0xff]
  %v3440 = vld [vmem:[%s5 + $0x2d8] sm:$0xff]
  %v3441 = vld [vmem:[%s5 + $0x2e0] sm:$0xff]
  %v3442 = vld [vmem:[%s5 + $0x2e8] sm:$0xff]
  %v3443 = vld [vmem:[%s5 + $0x2f0] sm:$0xff]
  %v3444 = vld [vmem:[%s5 + $0x2f8] sm:$0xff]
  %v3445 = vld [vmem:[%s5 + $0x300] sm:$0xff]
  %v3446 = vld [vmem:[%s5 + $0x308] sm:$0xff]
  %v3447 = vld [vmem:[%s5 + $0x310] sm:$0xff]
  %v3448 = vld [vmem:[%s5 + $0x318] sm:$0xff]
  %v3449 = vld [vmem:[%s5 + $0x320] sm:$0xff]
  %v3450 = vld [vmem:[%s5 + $0x328] sm:$0xff]
  %v3451 = vld [vmem:[%s5 + $0x330] sm:$0xff]
  %v3452 = vld [vmem:[%s5 + $0x338] sm:$0xff]
  %v3453 = vld [vmem:[%s6] sm:$0x3]
  %v3455 = vperm.slane %v3453, 0
  %v3456 = vperm.slane %v3453, 1
  %vm3459 = vcmask 261120
  %v3461 = vsel %vm3459, %v3348, 0
  %3463 = vmatpush.msra.mxu0 %v3379
  %3464 = vmatpush.msra.mxu0 %v3377
  %3465 = vmatpush.msra.mxu0 %v3375
  %3466 = vmatpush.msra.mxu0 %v3373
  %3467 = vmatpush.msra.mxu0 %v3371
  %3468 = vmatpush.msra.mxu0 %v3369
  %3469 = vmatpush.msra.mxu0 %v3367
  %3470 = vmatpush.msra.mxu0 %v3365
  %3471 = vmatpush.msra.mxu0 %v3363
  %3472 = vmatpush.msra.mxu0 %v3361
  %3473 = vmatpush.msra.mxu0 %v3359
  %3474 = vmatpush.msra.mxu0 %v3357
  %3475 = vmatpush.msra.mxu0 %v3355
  %3476 = vmatpush.msra.mxu0 %v3353
  %3477 = vmatpush.msra.mxu0 %v3351
  %3478 = vmatpush.msra.mxu0 %v3349
  %3479 = vmatmul.f32.gmra.mxu0 %v3345
  %v3480 = vpop.f32.mrf.mxu0
  %v3481 = vadd.f32 %v3455, %v3480
  %3482 = vdwg.mxu0
  %3483 = vmatpush.msra.mxu0 %v3411
  %3484 = vmatpush.msra.mxu0 %v3409
  %3485 = vmatpush.msra.mxu0 %v3407
  %3486 = vmatpush.msra.mxu0 %v3405
  %3487 = vmatpush.msra.mxu0 %v3403
  %3488 = vmatpush.msra.mxu0 %v3401
  %3489 = vmatpush.msra.mxu0 %v3399
  %3490 = vmatpush.msra.mxu0 %v3397
  %3491 = vmatpush.msra.mxu0 %v3395
  %3492 = vmatpush.msra.mxu0 %v3393
  %3493 = vmatpush.msra.mxu0 %v3391
  %3494 = vmatpush.msra.mxu0 %v3389
  %3495 = vmatpush.msra.mxu0 %v3387
  %3496 = vmatpush.msra.mxu0 %v3385
  %3497 = vmatpush.msra.mxu0 %v3383
  %3498 = vmatpush.msra.mxu0 %v3381
  %3499 = vmatmul.f32.gmra.mxu0 %v3346
  %v3500 = vpop.f32.mrf.mxu0
  %v3501 = vadd.f32 %v3481, %v3500
  %3502 = vdwg.mxu0
  %3503 = vmatpush.msra.mxu0 %v3443
  %3504 = vmatpush.msra.mxu0 %v3441
  %3505 = vmatpush.msra.mxu0 %v3439
  %3506 = vmatpush.msra.mxu0 %v3437
  %3507 = vmatpush.msra.mxu0 %v3435
  %3508 = vmatpush.msra.mxu0 %v3433
  %3509 = vmatpush.msra.mxu0 %v3431
  %3510 = vmatpush.msra.mxu0 %v3429
  %3511 = vmatpush.msra.mxu0 %v3427
  %3512 = vmatpush.msra.mxu0 %v3425
  %3513 = vmatpush.msra.mxu0 %v3423
  %3514 = vmatpush.msra.mxu0 %v3421
  %3515 = vmatpush.msra.mxu0 %v3419
  %3516 = vmatpush.msra.mxu0 %v3417
  %3517 = vmatpush.msra.mxu0 %v3415
  %3518 = vmatpush.msra.mxu0 %v3413
  %3519 = vmatmul.f32.gmra.mxu0 %v3347
  %v3520 = vpop.f32.mrf.mxu0
  %v3521 = vadd.f32 %v3501, %v3520
  %3522 = vdwg.mxu0
  %3523 = vmatpush.msra.mxu0 0.0
  %3524 = vmatpush.msra.mxu0 0.0
  %3525 = vmatpush.msra.mxu0 0.0
  %3526 = vmatpush.msra.mxu0 0.0
  %3527 = vmatpush.msra.mxu0 0.0
  %3528 = vmatpush.msra.mxu0 0.0
  %3529 = vmatpush.msra.mxu0 0.0
  %3530 = vmatpush.msra.mxu0 0.0
  %3531 = vmatpush.msra.mxu0 0.0
  %3532 = vmatpush.msra.mxu0 0.0
  %3533 = vmatpush.msra.mxu0 0.0
  %3534 = vmatpush.msra.mxu0 0.0
  %3535 = vmatpush.msra.mxu0 %v3451
  %3536 = vmatpush.msra.mxu0 %v3449
  %3537 = vmatpush.msra.mxu0 %v3447
  %3538 = vmatpush.msra.mxu0 %v3445
  %3539 = vmatmul.f32.gmra.mxu0 %v3461
  %v3540 = vpop.f32.mrf.mxu0
  %v3541 = vadd.f32 %v3521, %v3540
  %3542 = vdwg.mxu0
  %3543 = vmatpush.msra.mxu0 %v3380
  %3544 = vmatpush.msra.mxu0 %v3378
  %3545 = vmatpush.msra.mxu0 %v3376
  %3546 = vmatpush.msra.mxu0 %v3374
  %3547 = vmatpush.msra.mxu0 %v3372
  %3548 = vmatpush.msra.mxu0 %v3370
  %3549 = vmatpush.msra.mxu0 %v3368
  %3550 = vmatpush.msra.mxu0 %v3366
  %3551 = vmatpush.msra.mxu0 %v3364
  %3552 = vmatpush.msra.mxu0 %v3362
  %3553 = vmatpush.msra.mxu0 %v3360
  %3554 = vmatpush.msra.mxu0 %v3358
  %3555 = vmatpush.msra.mxu0 %v3356
  %3556 = vmatpush.msra.mxu0 %v3354
  %3557 = vmatpush.msra.mxu0 %v3352
  %3558 = vmatpush.msra.mxu0 %v3350
  %3559 = vmatmul.f32.gmra.mxu0 %v3345
  %v3560 = vpop.f32.mrf.mxu0
  %v3561 = vadd.f32 %v3456, %v3560
  %3562 = vdwg.mxu0
  %3563 = vmatpush.msra.mxu0 %v3412
  %3564 = vmatpush.msra.mxu0 %v3410
  %3565 = vmatpush.msra.mxu0 %v3408
  %3566 = vmatpush.msra.mxu0 %v3406
  %3567 = vmatpush.msra.mxu0 %v3404
  %3568 = vmatpush.msra.mxu0 %v3402
  %3569 = vmatpush.msra.mxu0 %v3400
  %3570 = vmatpush.msra.mxu0 %v3398
  %3571 = vmatpush.msra.mxu0 %v3396
  %3572 = vmatpush.msra.mxu0 %v3394
  %3573 = vmatpush.msra.mxu0 %v3392
  %3574 = vmatpush.msra.mxu0 %v3390
  %3575 = vmatpush.msra.mxu0 %v3388
  %3576 = vmatpush.msra.mxu0 %v3386
  %3577 = vmatpush.msra.mxu0 %v3384
  %3578 = vmatpush.msra.mxu0 %v3382
  %3579 = vmatmul.f32.gmra.mxu0 %v3346
  %v3580 = vpop.f32.mrf.mxu0
  %v3581 = vadd.f32 %v3561, %v3580
  %3582 = vdwg.mxu0
  %3583 = vmatpush.msra.mxu0 %v3444
  %3584 = vmatpush.msra.mxu0 %v3442
  %3585 = vmatpush.msra.mxu0 %v3440
  %3586 = vmatpush.msra.mxu0 %v3438
  %3587 = vmatpush.msra.mxu0 %v3436
  %3588 = vmatpush.msra.mxu0 %v3434
  %3589 = vmatpush.msra.mxu0 %v3432
  %3590 = vmatpush.msra.mxu0 %v3430
  %3591 = vmatpush.msra.mxu0 %v3428
  %3592 = vmatpush.msra.mxu0 %v3426
  %3593 = vmatpush.msra.mxu0 %v3424
  %3594 = vmatpush.msra.mxu0 %v3422
  %3595 = vmatpush.msra.mxu0 %v3420
  %3596 = vmatpush.msra.mxu0 %v3418
  %3597 = vmatpush.msra.mxu0 %v3416
  %3598 = vmatpush.msra.mxu0 %v3414
  %3599 = vmatmul.f32.gmra.mxu0 %v3347
  %v3600 = vpop.f32.mrf.mxu0
  %v3601 = vadd.f32 %v3581, %v3600
  %3602 = vdwg.mxu0
  %3603 = vmatpush.msra.mxu0 0.0
  %3604 = vmatpush.msra.mxu0 0.0
  %3605 = vmatpush.msra.mxu0 0.0
  %3606 = vmatpush.msra.mxu0 0.0
  %3607 = vmatpush.msra.mxu0 0.0
  %3608 = vmatpush.msra.mxu0 0.0
  %3609 = vmatpush.msra.mxu0 0.0
  %3610 = vmatpush.msra.mxu0 0.0
  %3611 = vmatpush.msra.mxu0 0.0
  %3612 = vmatpush.msra.mxu0 0.0
  %3613 = vmatpush.msra.mxu0 0.0
  %3614 = vmatpush.msra.mxu0 0.0
  %3615 = vmatpush.msra.mxu0 %v3452
  %3616 = vmatpush.msra.mxu0 %v3450
  %3617 = vmatpush.msra.mxu0 %v3448
  %3618 = vmatpush.msra.mxu0 %v3446
  %3619 = vmatmul.f32.gmra.mxu0 %v3461
  %v3620 = vpop.f32.mrf.mxu0
  %v3621 = vadd.f32 %v3601, %v3620
  %3622 = vdwg.mxu0
  %v3623 = vmax.f32 %v3541, 0.0
  %v3624 = vmax.f32 %v3621, 0.0
  %v3625 = vld [vmem:[%s7] sm:$0xff]
  %v3626 = vld [vmem:[%s7 + $0x8] sm:$0xff]
  %v3627 = vld [vmem:[%s7 + $0x10] sm:$0xff]
  %v3628 = vld [vmem:[%s7 + $0x18] sm:$0xff]
  %v3629 = vld [vmem:[%s7 + $0x20] sm:$0xff]
  %v3630 = vld [vmem:[%s7 + $0x28] sm:$0xff]
  %v3631 = vld [vmem:[%s7 + $0x30] sm:$0xff]
  %v3632 = vld [vmem:[%s7 + $0x38] sm:$0xff]
  %v3633 = vld [vmem:[%s7 + $0x40] sm:$0xff]
  %v3634 = vld [vmem:[%s7 + $0x48] sm:$0xff]
  %v3635 = vld [vmem:[%s7 + $0x50] sm:$0xff]
  %v3636 = vld [vmem:[%s7 + $0x58] sm:$0xff]
  %v3637 = vld [vmem:[%s7 + $0x60] sm:$0xff]
  %v3638 = vld [vmem:[%s7 + $0x68] sm:$0xff]
  %v3639 = vld [vmem:[%s7 + $0x70] sm:$0xff]
  %v3640 = vld [vmem:[%s7 + $0x78] sm:$0xff]
  %v3641 = vld [vmem:[%s7 + $0x80] sm:$0xff]
  %v3642 = vld [vmem:[%s7 + $0x88] sm:$0xff]
  %v3643 = vld [vmem:[%s7 + $0x90] sm:$0xff]
  %v3644 = vld [vmem:[%s7 + $0x98] sm:$0xff]
  %v3645 = vld [vmem:[%s7 + $0xa0] sm:$0xff]
  %v3646 = vld [vmem:[%s7 + $0xa8] sm:$0xff]
  %v3647 = vld [vmem:[%s8] sm:$0x1]
  %v3649 = vperm.slane %v3647, 0
  %vm3651 = vcmask 392192
  %v3653 = vsel %vm3651, %v3624, 0
  %3655 = vmatpush.msra.mxu0 %v3640
  %3656 = vmatpush.msra.mxu0 %v3639
  %3657 = vmatpush.msra.mxu0 %v3638
  %3658 = vmatpush.msra.mxu0 %v3637
  %3659 = vmatpush.msra.mxu0 %v3636
  %3660 = vmatpush.msra.mxu0 %v3635
  %3661 = vmatpush.msra.mxu0 %v3634
  %3662 = vmatpush.msra.mxu0 %v3633
  %3663 = vmatpush.msra.mxu0 %v3632
  %3664 = vmatpush.msra.mxu0 %v3631
  %3665 = vmatpush.msra.mxu0 %v3630
  %3666 = vmatpush.msra.mxu0 %v3629
  %3667 = vmatpush.msra.mxu0 %v3628
  %3668 = vmatpush.msra.mxu0 %v3627
  %3669 = vmatpush.msra.mxu0 %v3626
  %3670 = vmatpush.msra.mxu0 %v3625
  %3671 = vmatmul.f32.gmra.mxu0 %v3623
  %v3672 = vpop.f32.mrf.mxu0
  %v3673 = vadd.f32 %v3649, %v3672
  %3674 = vdwg.mxu0
  %3675 = vmatpush.msra.mxu0 0.0
  %3676 = vmatpush.msra.mxu0 0.0
  %3677 = vmatpush.msra.mxu0 0.0
  %3678 = vmatpush.msra.mxu0 0.0
  %3679 = vmatpush.msra.mxu0 0.0
  %3680 = vmatpush.msra.mxu0 0.0
  %3681 = vmatpush.msra.mxu0 0.0
  %3682 = vmatpush.msra.mxu0 0.0
  %3683 = vmatpush.msra.mxu0 0.0
  %3684 = vmatpush.msra.mxu0 0.0
  %3685 = vmatpush.msra.mxu0 %v3646
  %3686 = vmatpush.msra.mxu0 %v3645
  %3687 = vmatpush.msra.mxu0 %v3644
  %3688 = vmatpush.msra.mxu0 %v3643
  %3689 = vmatpush.msra.mxu0 %v3642
  %3690 = vmatpush.msra.mxu0 %v3641
  %3691 = vmatmul.f32.gmra.mxu0 %v3653
  %v3692 = vpop.f32.mrf.mxu0
  %v3693 = vadd.f32 %v3673, %v3692
  %3694 = vdwg.mxu0
  %v3695 = vmax.f32 %v3693, 0.0
  %v3696 = vld [vmem:[%s9] sm:$0xff]
  %v3697 = vld [vmem:[%s9 + $0x8] sm:$0xff]
  %v3698 = vld [vmem:[%s9 + $0x10] sm:$0xff]
  %v3699 = vld [vmem:[%s9 + $0x18] sm:$0xff]
  %v3700 = vld [vmem:[%s9 + $0x20] sm:$0xff]
  %v3701 = vld [vmem:[%s9 + $0x28] sm:$0xff]
  %v3702 = vld [vmem:[%s9 + $0x30] sm:$0xff]
  %v3703 = vld [vmem:[%s9 + $0x38] sm:$0xff]
  %v3704 = vld [vmem:[%s9 + $0x40] sm:$0xff]
  %v3705 = vld [vmem:[%s9 + $0x48] sm:$0xff]
  %v3706 = vld [vmem:[%s9 + $0x50] sm:$0xff]
  %v3707 = vld [vmem:[%s9 + $0x58] sm:$0xff]
  %v3708 = vld [vmem:[%s9 + $0x60] sm:$0xff]
  %v3709 = vld [vmem:[%s9 + $0x68] sm:$0xff]
  %v3710 = vld [vmem:[%s9 + $0x70] sm:$0xff]
  %v3711 = vld [vmem:[%s9 + $0x78] sm:$0xff]
  %v3712 = vld [vmem:[%s9 + $0x80] sm:$0xff]
  %v3713 = vld [vmem:[%s9 + $0x88] sm:$0xff]
  %v3714 = vld [vmem:[%s9 + $0x90] sm:$0xff]
  %v3715 = vld [vmem:[%s9 + $0x98] sm:$0xff]
  %v3716 = vld [vmem:[%s9 + $0xa0] sm:$0xff]
  %v3717 = vld [vmem:[%s9 + $0xa8] sm:$0xff]
  %v3718 = vld [vmem:[%s9 + $0xb0] sm:$0xff]
  %v3719 = vld [vmem:[%s9 + $0xb8] sm:$0xff]
  %v3720 = vld [vmem:[%s9 + $0xc0] sm:$0xff]
  %v3721 = vld [vmem:[%s9 + $0xc8] sm:$0xff]
  %v3722 = vld [vmem:[%s9 + $0xd0] sm:$0xff]
  %v3723 = vld [vmem:[%s9 + $0xd8] sm:$0xff]
  %v3724 = vld [vmem:[%s9 + $0xe0] sm:$0xff]
  %v3725 = vld [vmem:[%s9 + $0xe8] sm:$0xff]
  %v3726 = vld [vmem:[%s9 + $0xf0] sm:$0xff]
  %v3727 = vld [vmem:[%s9 + $0xf8] sm:$0xff]
  %v3728 = vld [vmem:[%s9 + $0x100] sm:$0xff]
  %v3729 = vld [vmem:[%s9 + $0x108] sm:$0xff]
  %v3730 = vld [vmem:[%s9 + $0x110] sm:$0xff]
  %v3731 = vld [vmem:[%s9 + $0x118] sm:$0xff]
  %v3732 = vld [vmem:[%s9 + $0x120] sm:$0xff]
  %v3733 = vld [vmem:[%s9 + $0x128] sm:$0xff]
  %v3734 = vld [vmem:[%s9 + $0x130] sm:$0xff]
  %v3735 = vld [vmem:[%s9 + $0x138] sm:$0xff]
  %v3736 = vld [vmem:[%s9 + $0x140] sm:$0xff]
  %v3737 = vld [vmem:[%s9 + $0x148] sm:$0xff]
  %v3738 = vld [vmem:[%s9 + $0x150] sm:$0xff]
  %v3739 = vld [vmem:[%s9 + $0x158] sm:$0xff]
  %v3740 = vld [vmem:[%s9 + $0x160] sm:$0xff]
  %v3741 = vld [vmem:[%s9 + $0x168] sm:$0xff]
  %v3742 = vld [vmem:[%s9 + $0x170] sm:$0xff]
  %v3743 = vld [vmem:[%s9 + $0x178] sm:$0xff]
  %v3744 = vld [vmem:[%s9 + $0x180] sm:$0xff]
  %v3745 = vld [vmem:[%s9 + $0x188] sm:$0xff]
  %v3746 = vld [vmem:[%s9 + $0x190] sm:$0xff]
  %v3747 = vld [vmem:[%s9 + $0x198] sm:$0xff]
  %v3748 = vld [vmem:[%s9 + $0x1a0] sm:$0xff]
  %v3749 = vld [vmem:[%s9 + $0x1a8] sm:$0xff]
  %v3750 = vld [vmem:[%s9 + $0x1b0] sm:$0xff]
  %v3751 = vld [vmem:[%s9 + $0x1b8] sm:$0xff]
  %v3752 = vld [vmem:[%s9 + $0x1c0] sm:$0xff]
  %v3753 = vld [vmem:[%s9 + $0x1c8] sm:$0xff]
  %v3754 = vld [vmem:[%s9 + $0x1d0] sm:$0xff]
  %v3755 = vld [vmem:[%s9 + $0x1d8] sm:$0xff]
  %v3756 = vld [vmem:[%s9 + $0x1e0] sm:$0xff]
  %v3757 = vld [vmem:[%s9 + $0x1e8] sm:$0xff]
  %v3758 = vld [vmem:[%s9 + $0x1f0] sm:$0xff]
  %v3759 = vld [vmem:[%s9 + $0x1f8] sm:$0xff]
  %v3760 = vld [vmem:[%s9 + $0x200] sm:$0xff]
  %v3761 = vld [vmem:[%s9 + $0x208] sm:$0xff]
  %v3762 = vld [vmem:[%s9 + $0x210] sm:$0xff]
  %v3763 = vld [vmem:[%s9 + $0x218] sm:$0xff]
  %v3764 = vld [vmem:[%s9 + $0x220] sm:$0xff]
  %v3765 = vld [vmem:[%s9 + $0x228] sm:$0xff]
  %v3766 = vld [vmem:[%s9 + $0x230] sm:$0xff]
  %v3767 = vld [vmem:[%s9 + $0x238] sm:$0xff]
  %v3768 = vld [vmem:[%s9 + $0x240] sm:$0xff]
  %v3769 = vld [vmem:[%s9 + $0x248] sm:$0xff]
  %v3770 = vld [vmem:[%s9 + $0x250] sm:$0xff]
  %v3771 = vld [vmem:[%s9 + $0x258] sm:$0xff]
  %v3772 = vld [vmem:[%s9 + $0x260] sm:$0xff]
  %v3773 = vld [vmem:[%s9 + $0x268] sm:$0xff]
  %v3774 = vld [vmem:[%s9 + $0x270] sm:$0xff]
  %v3775 = vld [vmem:[%s9 + $0x278] sm:$0xff]
  %v3776 = vld [vmem:[%s9 + $0x280] sm:$0xff]
  %v3777 = vld [vmem:[%s9 + $0x288] sm:$0xff]
  %v3778 = vld [vmem:[%s9 + $0x290] sm:$0xff]
  %v3779 = vld [vmem:[%s9 + $0x298] sm:$0xff]
  %v3780 = vld [vmem:[%s9 + $0x2a0] sm:$0xff]
  %v3781 = vld [vmem:[%s9 + $0x2a8] sm:$0xff]
  %v3782 = vld [vmem:[%s9 + $0x2b0] sm:$0xff]
  %v3783 = vld [vmem:[%s9 + $0x2b8] sm:$0xff]
  %v3784 = vld [vmem:[%s9 + $0x2c0] sm:$0xff]
  %v3785 = vld [vmem:[%s9 + $0x2c8] sm:$0xff]
  %v3786 = vld [vmem:[%s9 + $0x2d0] sm:$0xff]
  %v3787 = vld [vmem:[%s9 + $0x2d8] sm:$0xff]
  %v3788 = vld [vmem:[%s9 + $0x2e0] sm:$0xff]
  %v3789 = vld [vmem:[%s9 + $0x2e8] sm:$0xff]
  %v3790 = vld [vmem:[%s9 + $0x2f0] sm:$0xff]
  %v3791 = vld [vmem:[%s9 + $0x2f8] sm:$0xff]
  %v3792 = vld [vmem:[%s9 + $0x300] sm:$0xff]
  %v3793 = vld [vmem:[%s9 + $0x308] sm:$0xff]
  %v3794 = vld [vmem:[%s9 + $0x310] sm:$0xff]
  %v3795 = vld [vmem:[%s9 + $0x318] sm:$0xff]
  %v3796 = vld [vmem:[%s9 + $0x320] sm:$0xff]
  %v3797 = vld [vmem:[%s9 + $0x328] sm:$0xff]
  %v3798 = vld [vmem:[%s9 + $0x330] sm:$0xff]
  %v3799 = vld [vmem:[%s9 + $0x338] sm:$0xff]
  %v3800 = vld [vmem:[%s9 + $0x340] sm:$0xff]
  %v3801 = vld [vmem:[%s9 + $0x348] sm:$0xff]
  %v3802 = vld [vmem:[%s9 + $0x350] sm:$0xff]
  %v3803 = vld [vmem:[%s9 + $0x358] sm:$0xff]
  %v3804 = vld [vmem:[%s9 + $0x360] sm:$0xff]
  %v3805 = vld [vmem:[%s9 + $0x368] sm:$0xff]
  %v3806 = vld [vmem:[%s9 + $0x370] sm:$0xff]
  %v3807 = vld [vmem:[%s9 + $0x378] sm:$0xff]
  %v3808 = vld [vmem:[%s9 + $0x380] sm:$0xff]
  %v3809 = vld [vmem:[%s9 + $0x388] sm:$0xff]
  %v3810 = vld [vmem:[%s9 + $0x390] sm:$0xff]
  %v3811 = vld [vmem:[%s9 + $0x398] sm:$0xff]
  %v3812 = vld [vmem:[%s9 + $0x3a0] sm:$0xff]
  %v3813 = vld [vmem:[%s9 + $0x3a8] sm:$0xff]
  %v3814 = vld [vmem:[%s9 + $0x3b0] sm:$0xff]
  %v3815 = vld [vmem:[%s9 + $0x3b8] sm:$0xff]
  %v3816 = vld [vmem:[%s9 + $0x3c0] sm:$0xff]
  %v3817 = vld [vmem:[%s9 + $0x3c8] sm:$0xff]
  %v3818 = vld [vmem:[%s9 + $0x3d0] sm:$0xff]
  %v3819 = vld [vmem:[%s9 + $0x3d8] sm:$0xff]
  %v3820 = vld [vmem:[%s9 + $0x3e0] sm:$0xff]
  %v3821 = vld [vmem:[%s9 + $0x3e8] sm:$0xff]
  %v3822 = vld [vmem:[%s9 + $0x3f0] sm:$0xff]
  %v3823 = vld [vmem:[%s9 + $0x3f8] sm:$0xff]
  %v3824 = vld [vmem:[%s9 + $0x400] sm:$0xff]
  %v3825 = vld [vmem:[%s9 + $0x408] sm:$0xff]
  %v3826 = vld [vmem:[%s9 + $0x410] sm:$0xff]
  %v3827 = vld [vmem:[%s9 + $0x418] sm:$0xff]
  %v3828 = vld [vmem:[%s9 + $0x420] sm:$0xff]
  %v3829 = vld [vmem:[%s9 + $0x428] sm:$0xff]
  %v3830 = vld [vmem:[%s9 + $0x430] sm:$0xff]
  %v3831 = vld [vmem:[%s9 + $0x438] sm:$0xff]
  %v3832 = vld [vmem:[%s9 + $0x440] sm:$0xff]
  %v3833 = vld [vmem:[%s9 + $0x448] sm:$0xff]
  %v3834 = vld [vmem:[%s9 + $0x450] sm:$0xff]
  %v3835 = vld [vmem:[%s9 + $0x458] sm:$0xff]
  %v3836 = vld [vmem:[%s9 + $0x460] sm:$0xff]
  %v3837 = vld [vmem:[%s9 + $0x468] sm:$0xff]
  %v3838 = vld [vmem:[%s9 + $0x470] sm:$0xff]
  %v3839 = vld [vmem:[%s9 + $0x478] sm:$0xff]
  %v3840 = vld [vmem:[%s10] sm:$0xff]
  %v3841 = vld [vmem:[%s10 + $0x8] sm:$0xff]
  %v3844 = vperm.slane %v3840, 0
  %v3845 = vperm.slane %v3840, 1
  %v3846 = vperm.slane %v3840, 2
  %v3847 = vperm.slane %v3840, 3
  %v3848 = vperm.slane %v3840, 4
  %v3849 = vperm.slane %v3840, 5
  %v3850 = vperm.slane %v3840, 6
  %v3851 = vperm.slane %v3840, 7
  %v3852 = vperm.slane %v3841, 0
  %v3853 = vperm.slane %v3841, 1
  %v3854 = vperm.slane %v3841, 2
  %v3855 = vperm.slane %v3841, 3
  %v3856 = vperm.slane %v3841, 4
  %v3857 = vperm.slane %v3841, 5
  %v3858 = vperm.slane %v3841, 6
  %v3859 = vperm.slane %v3841, 7
  %vm3876 = vcmask 588800
  %v3878 = vsel %vm3876, %v3695, 0
  %3880 = vmatpush.msra.mxu0 0.0
  %3881 = vmatpush.msra.mxu0 0.0
  %3882 = vmatpush.msra.mxu0 0.0
  %3883 = vmatpush.msra.mxu0 0.0
  %3884 = vmatpush.msra.mxu0 0.0
  %3885 = vmatpush.msra.mxu0 0.0
  %3886 = vmatpush.msra.mxu0 0.0
  %3887 = vmatpush.msra.mxu0 %v3824
  %3888 = vmatpush.msra.mxu0 %v3808
  %3889 = vmatpush.msra.mxu0 %v3792
  %3890 = vmatpush.msra.mxu0 %v3776
  %3891 = vmatpush.msra.mxu0 %v3760
  %3892 = vmatpush.msra.mxu0 %v3744
  %3893 = vmatpush.msra.mxu0 %v3728
  %3894 = vmatpush.msra.mxu0 %v3712
  %3895 = vmatpush.msra.mxu0 %v3696
  %3896 = vmatmul.f32.gmra.mxu0 %v3878
  %v3897 = vpop.f32.mrf.mxu0
  %v3898 = vadd.f32 %v3844, %v3897
  %3899 = vdwg.mxu0
  %3900 = vmatpush.msra.mxu0 0.0
  %3901 = vmatpush.msra.mxu0 0.0
  %3902 = vmatpush.msra.mxu0 0.0
  %3903 = vmatpush.msra.mxu0 0.0
  %3904 = vmatpush.msra.mxu0 0.0
  %3905 = vmatpush.msra.mxu0 0.0
  %3906 = vmatpush.msra.mxu0 0.0
  %3907 = vmatpush.msra.mxu0 %v3825
  %3908 = vmatpush.msra.mxu0 %v3809
  %3909 = vmatpush.msra.mxu0 %v3793
  %3910 = vmatpush.msra.mxu0 %v3777
  %3911 = vmatpush.msra.mxu0 %v3761
  %3912 = vmatpush.msra.mxu0 %v3745
  %3913 = vmatpush.msra.mxu0 %v3729
  %3914 = vmatpush.msra.mxu0 %v3713
  %3915 = vmatpush.msra.mxu0 %v3697
  %3916 = vmatmul.f32.gmra.mxu0 %v3878
  %v3917 = vpop.f32.mrf.mxu0
  %v3918 = vadd.f32 %v3845, %v3917
  %3919 = vdwg.mxu0
  %3920 = vmatpush.msra.mxu0 0.0
  %3921 = vmatpush.msra.mxu0 0.0
  %3922 = vmatpush.msra.mxu0 0.0
  %3923 = vmatpush.msra.mxu0 0.0
  %3924 = vmatpush.msra.mxu0 0.0
  %3925 = vmatpush.msra.mxu0 0.0
  %3926 = vmatpush.msra.mxu0 0.0
  %3927 = vmatpush.msra.mxu0 %v3826
  %3928 = vmatpush.msra.mxu0 %v3810
  %3929 = vmatpush.msra.mxu0 %v3794
  %3930 = vmatpush.msra.mxu0 %v3778
  %3931 = vmatpush.msra.mxu0 %v3762
  %3932 = vmatpush.msra.mxu0 %v3746
  %3933 = vmatpush.msra.mxu0 %v3730
  %3934 = vmatpush.msra.mxu0 %v3714
  %3935 = vmatpush.msra.mxu0 %v3698
  %3936 = vmatmul.f32.gmra.mxu0 %v3878
  %v3937 = vpop.f32.mrf.mxu0
  %v3938 = vadd.f32 %v3846, %v3937
  %3939 = vdwg.mxu0
  %3940 = vmatpush.msra.mxu0 0.0
  %3941 = vmatpush.msra.mxu0 0.0
  %3942 = vmatpush.msra.mxu0 0.0
  %3943 = vmatpush.msra.mxu0 0.0
  %3944 = vmatpush.msra.mxu0 0.0
  %3945 = vmatpush.msra.mxu0 0.0
  %3946 = vmatpush.msra.mxu0 0.0
  %3947 = vmatpush.msra.mxu0 %v3827
  %3948 = vmatpush.msra.mxu0 %v3811
  %3949 = vmatpush.msra.mxu0 %v3795
  %3950 = vmatpush.msra.mxu0 %v3779
  %3951 = vmatpush.msra.mxu0 %v3763
  %3952 = vmatpush.msra.mxu0 %v3747
  %3953 = vmatpush.msra.mxu0 %v3731
  %3954 = vmatpush.msra.mxu0 %v3715
  %3955 = vmatpush.msra.mxu0 %v3699
  %3956 = vmatmul.f32.gmra.mxu0 %v3878
  %v3957 = vpop.f32.mrf.mxu0
  %v3958 = vadd.f32 %v3847, %v3957
  %3959 = vdwg.mxu0
  %3960 = vmatpush.msra.mxu0 0.0
  %3961 = vmatpush.msra.mxu0 0.0
  %3962 = vmatpush.msra.mxu0 0.0
  %3963 = vmatpush.msra.mxu0 0.0
  %3964 = vmatpush.msra.mxu0 0.0
  %3965 = vmatpush.msra.mxu0 0.0
  %3966 = vmatpush.msra.mxu0 0.0
  %3967 = vmatpush.msra.mxu0 %v3828
  %3968 = vmatpush.msra.mxu0 %v3812
  %3969 = vmatpush.msra.mxu0 %v3796
  %3970 = vmatpush.msra.mxu0 %v3780
  %3971 = vmatpush.msra.mxu0 %v3764
  %3972 = vmatpush.msra.mxu0 %v3748
  %3973 = vmatpush.msra.mxu0 %v3732
  %3974 = vmatpush.msra.mxu0 %v3716
  %3975 = vmatpush.msra.mxu0 %v3700
  %3976 = vmatmul.f32.gmra.mxu0 %v3878
  %v3977 = vpop.f32.mrf.mxu0
  %v3978 = vadd.f32 %v3848, %v3977
  %3979 = vdwg.mxu0
  %3980 = vmatpush.msra.mxu0 0.0
  %3981 = vmatpush.msra.mxu0 0.0
  %3982 = vmatpush.msra.mxu0 0.0
  %3983 = vmatpush.msra.mxu0 0.0
  %3984 = vmatpush.msra.mxu0 0.0
  %3985 = vmatpush.msra.mxu0 0.0
  %3986 = vmatpush.msra.mxu0 0.0
  %3987 = vmatpush.msra.mxu0 %v3829
  %3988 = vmatpush.msra.mxu0 %v3813
  %3989 = vmatpush.msra.mxu0 %v3797
  %3990 = vmatpush.msra.mxu0 %v3781
  %3991 = vmatpush.msra.mxu0 %v3765
  %3992 = vmatpush.msra.mxu0 %v3749
  %3993 = vmatpush.msra.mxu0 %v3733
  %3994 = vmatpush.msra.mxu0 %v3717
  %3995 = vmatpush.msra.mxu0 %v3701
  %3996 = vmatmul.f32.gmra.mxu0 %v3878
  %v3997 = vpop.f32.mrf.mxu0
  %v3998 = vadd.f32 %v3849, %v3997
  %3999 = vdwg.mxu0
  %4000 = vmatpush.msra.mxu0 0.0
  %4001 = vmatpush.msra.mxu0 0.0
  %4002 = vmatpush.msra.mxu0 0.0
  %4003 = vmatpush.msra.mxu0 0.0
  %4004 = vmatpush.msra.mxu0 0.0
  %4005 = vmatpush.msra.mxu0 0.0
  %4006 = vmatpush.msra.mxu0 0.0
  %4007 = vmatpush.msra.mxu0 %v3830
  %4008 = vmatpush.msra.mxu0 %v3814
  %4009 = vmatpush.msra.mxu0 %v3798
  %4010 = vmatpush.msra.mxu0 %v3782
  %4011 = vmatpush.msra.mxu0 %v3766
  %4012 = vmatpush.msra.mxu0 %v3750
  %4013 = vmatpush.msra.mxu0 %v3734
  %4014 = vmatpush.msra.mxu0 %v3718
  %4015 = vmatpush.msra.mxu0 %v3702
  %4016 = vmatmul.f32.gmra.mxu0 %v3878
  %v4017 = vpop.f32.mrf.mxu0
  %v4018 = vadd.f32 %v3850, %v4017
  %4019 = vdwg.mxu0
  %4020 = vmatpush.msra.mxu0 0.0
  %4021 = vmatpush.msra.mxu0 0.0
  %4022 = vmatpush.msra.mxu0 0.0
  %4023 = vmatpush.msra.mxu0 0.0
  %4024 = vmatpush.msra.mxu0 0.0
  %4025 = vmatpush.msra.mxu0 0.0
  %4026 = vmatpush.msra.mxu0 0.0
  %4027 = vmatpush.msra.mxu0 %v3831
  %4028 = vmatpush.msra.mxu0 %v3815
  %4029 = vmatpush.msra.mxu0 %v3799
  %4030 = vmatpush.msra.mxu0 %v3783
  %4031 = vmatpush.msra.mxu0 %v3767
  %4032 = vmatpush.msra.mxu0 %v3751
  %4033 = vmatpush.msra.mxu0 %v3735
  %4034 = vmatpush.msra.mxu0 %v3719
  %4035 = vmatpush.msra.mxu0 %v3703
  %4036 = vmatmul.f32.gmra.mxu0 %v3878
  %v4037 = vpop.f32.mrf.mxu0
  %v4038 = vadd.f32 %v3851, %v4037
  %4039 = vdwg.mxu0
  %4040 = vmatpush.msra.mxu0 0.0
  %4041 = vmatpush.msra.mxu0 0.0
  %4042 = vmatpush.msra.mxu0 0.0
  %4043 = vmatpush.msra.mxu0 0.0
  %4044 = vmatpush.msra.mxu0 0.0
  %4045 = vmatpush.msra.mxu0 0.0
  %4046 = vmatpush.msra.mxu0 0.0
  %4047 = vmatpush.msra.mxu0 %v3832
  %4048 = vmatpush.msra.mxu0 %v3816
  %4049 = vmatpush.msra.mxu0 %v3800
  %4050 = vmatpush.msra.mxu0 %v3784
  %4051 = vmatpush.msra.mxu0 %v3768
  %4052 = vmatpush.msra.mxu0 %v3752
  %4053 = vmatpush.msra.mxu0 %v3736
  %4054 = vmatpush.msra.mxu0 %v3720
  %4055 = vmatpush.msra.mxu0 %v3704
  %4056 = vmatmul.f32.gmra.mxu0 %v3878
  %v4057 = vpop.f32.mrf.mxu0
  %v4058 = vadd.f32 %v3852, %v4057
  %4059 = vdwg.mxu0
  %4060 = vmatpush.msra.mxu0 0.0
  %4061 = vmatpush.msra.mxu0 0.0
  %4062 = vmatpush.msra.mxu0 0.0
  %4063 = vmatpush.msra.mxu0 0.0
  %4064 = vmatpush.msra.mxu0 0.0
  %4065 = vmatpush.msra.mxu0 0.0
  %4066 = vmatpush.msra.mxu0 0.0
  %4067 = vmatpush.msra.mxu0 %v3833
  %4068 = vmatpush.msra.mxu0 %v3817
  %4069 = vmatpush.msra.mxu0 %v3801
  %4070 = vmatpush.msra.mxu0 %v3785
  %4071 = vmatpush.msra.mxu0 %v3769
  %4072 = vmatpush.msra.mxu0 %v3753
  %4073 = vmatpush.msra.mxu0 %v3737
  %4074 = vmatpush.msra.mxu0 %v3721
  %4075 = vmatpush.msra.mxu0 %v3705
  %4076 = vmatmul.f32.gmra.mxu0 %v3878
  %v4077 = vpop.f32.mrf.mxu0
  %v4078 = vadd.f32 %v3853, %v4077
  %4079 = vdwg.mxu0
  %4080 = vmatpush.msra.mxu0 0.0
  %4081 = vmatpush.msra.mxu0 0.0
  %4082 = vmatpush.msra.mxu0 0.0
  %4083 = vmatpush.msra.mxu0 0.0
  %4084 = vmatpush.msra.mxu0 0.0
  %4085 = vmatpush.msra.mxu0 0.0
  %4086 = vmatpush.msra.mxu0 0.0
  %4087 = vmatpush.msra.mxu0 %v3834
  %4088 = vmatpush.msra.mxu0 %v3818
  %4089 = vmatpush.msra.mxu0 %v3802
  %4090 = vmatpush.msra.mxu0 %v3786
  %4091 = vmatpush.msra.mxu0 %v3770
  %4092 = vmatpush.msra.mxu0 %v3754
  %4093 = vmatpush.msra.mxu0 %v3738
  %4094 = vmatpush.msra.mxu0 %v3722
  %4095 = vmatpush.msra.mxu0 %v3706
  %4096 = vmatmul.f32.gmra.mxu0 %v3878
  %v4097 = vpop.f32.mrf.mxu0
  %v4098 = vadd.f32 %v3854, %v4097
  %4099 = vdwg.mxu0
  %4100 = vmatpush.msra.mxu0 0.0
  %4101 = vmatpush.msra.mxu0 0.0
  %4102 = vmatpush.msra.mxu0 0.0
  %4103 = vmatpush.msra.mxu0 0.0
  %4104 = vmatpush.msra.mxu0 0.0
  %4105 = vmatpush.msra.mxu0 0.0
  %4106 = vmatpush.msra.mxu0 0.0
  %4107 = vmatpush.msra.mxu0 %v3835
  %4108 = vmatpush.msra.mxu0 %v3819
  %4109 = vmatpush.msra.mxu0 %v3803
  %4110 = vmatpush.msra.mxu0 %v3787
  %4111 = vmatpush.msra.mxu0 %v3771
  %4112 = vmatpush.msra.mxu0 %v3755
  %4113 = vmatpush.msra.mxu0 %v3739
  %4114 = vmatpush.msra.mxu0 %v3723
  %4115 = vmatpush.msra.mxu0 %v3707
  %4116 = vmatmul.f32.gmra.mxu0 %v3878
  %v4117 = vpop.f32.mrf.mxu0
  %v4118 = vadd.f32 %v3855, %v4117
  %4119 = vdwg.mxu0
  %4120 = vmatpush.msra.mxu0 0.0
  %4121 = vmatpush.msra.mxu0 0.0
  %4122 = vmatpush.msra.mxu0 0.0
  %4123 = vmatpush.msra.mxu0 0.0
  %4124 = vmatpush.msra.mxu0 0.0
  %4125 = vmatpush.msra.mxu0 0.0
  %4126 = vmatpush.msra.mxu0 0.0
  %4127 = vmatpush.msra.mxu0 %v3836
  %4128 = vmatpush.msra.mxu0 %v3820
  %4129 = vmatpush.msra.mxu0 %v3804
  %4130 = vmatpush.msra.mxu0 %v3788
  %4131 = vmatpush.msra.mxu0 %v3772
  %4132 = vmatpush.msra.mxu0 %v3756
  %4133 = vmatpush.msra.mxu0 %v3740
  %4134 = vmatpush.msra.mxu0 %v3724
  %4135 = vmatpush.msra.mxu0 %v3708
  %4136 = vmatmul.f32.gmra.mxu0 %v3878
  %v4137 = vpop.f32.mrf.mxu0
  %v4138 = vadd.f32 %v3856, %v4137
  %4139 = vdwg.mxu0
  %4140 = vmatpush.msra.mxu0 0.0
  %4141 = vmatpush.msra.mxu0 0.0
  %4142 = vmatpush.msra.mxu0 0.0
  %4143 = vmatpush.msra.mxu0 0.0
  %4144 = vmatpush.msra.mxu0 0.0
  %4145 = vmatpush.msra.mxu0 0.0
  %4146 = vmatpush.msra.mxu0 0.0
  %4147 = vmatpush.msra.mxu0 %v3837
  %4148 = vmatpush.msra.mxu0 %v3821
  %4149 = vmatpush.msra.mxu0 %v3805
  %4150 = vmatpush.msra.mxu0 %v3789
  %4151 = vmatpush.msra.mxu0 %v3773
  %4152 = vmatpush.msra.mxu0 %v3757
  %4153 = vmatpush.msra.mxu0 %v3741
  %4154 = vmatpush.msra.mxu0 %v3725
  %4155 = vmatpush.msra.mxu0 %v3709
  %4156 = vmatmul.f32.gmra.mxu0 %v3878
  %v4157 = vpop.f32.mrf.mxu0
  %v4158 = vadd.f32 %v3857, %v4157
  %4159 = vdwg.mxu0
  %4160 = vmatpush.msra.mxu0 0.0
  %4161 = vmatpush.msra.mxu0 0.0
  %4162 = vmatpush.msra.mxu0 0.0
  %4163 = vmatpush.msra.mxu0 0.0
  %4164 = vmatpush.msra.mxu0 0.0
  %4165 = vmatpush.msra.mxu0 0.0
  %4166 = vmatpush.msra.mxu0 0.0
  %4167 = vmatpush.msra.mxu0 %v3838
  %4168 = vmatpush.msra.mxu0 %v3822
  %4169 = vmatpush.msra.mxu0 %v3806
  %4170 = vmatpush.msra.mxu0 %v3790
  %4171 = vmatpush.msra.mxu0 %v3774
  %4172 = vmatpush.msra.mxu0 %v3758
  %4173 = vmatpush.msra.mxu0 %v3742
  %4174 = vmatpush.msra.mxu0 %v3726
  %4175 = vmatpush.msra.mxu0 %v3710
  %4176 = vmatmul.f32.gmra.mxu0 %v3878
  %v4177 = vpop.f32.mrf.mxu0
  %v4178 = vadd.f32 %v3858, %v4177
  %4179 = vdwg.mxu0
  %4180 = vmatpush.msra.mxu0 0.0
  %4181 = vmatpush.msra.mxu0 0.0
  %4182 = vmatpush.msra.mxu0 0.0
  %4183 = vmatpush.msra.mxu0 0.0
  %4184 = vmatpush.msra.mxu0 0.0
  %4185 = vmatpush.msra.mxu0 0.0
  %4186 = vmatpush.msra.mxu0 0.0
  %4187 = vmatpush.msra.mxu0 %v3839
  %4188 = vmatpush.msra.mxu0 %v3823
  %4189 = vmatpush.msra.mxu0 %v3807
  %4190 = vmatpush.msra.mxu0 %v3791
  %4191 = vmatpush.msra.mxu0 %v3775
  %4192 = vmatpush.msra.mxu0 %v3759
  %4193 = vmatpush.msra.mxu0 %v3743
  %4194 = vmatpush.msra.mxu0 %v3727
  %4195 = vmatpush.msra.mxu0 %v3711
  %4196 = vmatmul.f32.gmra.mxu0 %v3878
  %v4197 = vpop.f32.mrf.mxu0
  %v4198 = vadd.f32 %v3859, %v4197
  %4199 = vdwg.mxu0
  %v4200 = vmax.f32 %v3898, 0.0
  %v4201 = vmax.f32 %v3918, 0.0
  %v4202 = vmax.f32 %v3938, 0.0
  %v4203 = vmax.f32 %v3958, 0.0
  %v4204 = vmax.f32 %v3978, 0.0
  %v4205 = vmax.f32 %v3998, 0.0
  %v4206 = vmax.f32 %v4018, 0.0
  %v4207 = vmax.f32 %v4038, 0.0
  %v4208 = vmax.f32 %v4058, 0.0
  %v4209 = vmax.f32 %v4078, 0.0
  %v4210 = vmax.f32 %v4098, 0.0
  %v4211 = vmax.f32 %v4118, 0.0
  %v4212 = vmax.f32 %v4138, 0.0
  %v4213 = vmax.f32 %v4158, 0.0
  %v4214 = vmax.f32 %v4178, 0.0
  %v4215 = vmax.f32 %v4198, 0.0
  %v4216 = vld [vmem:[%s11] sm:$0xff]
  %v4217 = vld [vmem:[%s11 + $0x8] sm:$0xff]
  %v4218 = vld [vmem:[%s11 + $0x10] sm:$0xff]
  %v4219 = vld [vmem:[%s11 + $0x18] sm:$0xff]
  %v4220 = vld [vmem:[%s11 + $0x20] sm:$0xff]
  %v4221 = vld [vmem:[%s11 + $0x28] sm:$0xff]
  %v4222 = vld [vmem:[%s11 + $0x30] sm:$0xff]
  %v4223 = vld [vmem:[%s11 + $0x38] sm:$0xff]
  %v4224 = vld [vmem:[%s11 + $0x40] sm:$0xff]
  %v4225 = vld [vmem:[%s11 + $0x48] sm:$0xff]
  %v4226 = vld [vmem:[%s11 + $0x50] sm:$0xff]
  %v4227 = vld [vmem:[%s11 + $0x58] sm:$0xff]
  %v4228 = vld [vmem:[%s11 + $0x60] sm:$0xff]
  %v4229 = vld [vmem:[%s11 + $0x68] sm:$0xff]
  %v4230 = vld [vmem:[%s11 + $0x70] sm:$0xff]
  %v4231 = vld [vmem:[%s11 + $0x78] sm:$0xff]
  %v4232 = vld [vmem:[%s11 + $0x80] sm:$0xff]
  %v4233 = vld [vmem:[%s11 + $0x88] sm:$0xff]
  %v4234 = vld [vmem:[%s11 + $0x90] sm:$0xff]
  %v4235 = vld [vmem:[%s11 + $0x98] sm:$0xff]
  %v4236 = vld [vmem:[%s11 + $0xa0] sm:$0xff]
  %v4237 = vld [vmem:[%s11 + $0xa8] sm:$0xff]
  %v4238 = vld [vmem:[%s11 + $0xb0] sm:$0xff]
  %v4239 = vld [vmem:[%s11 + $0xb8] sm:$0xff]
  %v4240 = vld [vmem:[%s11 + $0xc0] sm:$0xff]
  %v4241 = vld [vmem:[%s11 + $0xc8] sm:$0xff]
  %v4242 = vld [vmem:[%s11 + $0xd0] sm:$0xff]
  %v4243 = vld [vmem:[%s11 + $0xd8] sm:$0xff]
  %v4244 = vld [vmem:[%s11 + $0xe0] sm:$0xff]
  %v4245 = vld [vmem:[%s11 + $0xe8] sm:$0xff]
  %v4246 = vld [vmem:[%s11 + $0xf0] sm:$0xff]
  %v4247 = vld [vmem:[%s11 + $0xf8] sm:$0xff]
  %v4248 = vld [vmem:[%s11 + $0x100] sm:$0xff]
  %v4249 = vld [vmem:[%s11 + $0x108] sm:$0xff]
  %v4250 = vld [vmem:[%s11 + $0x110] sm:$0xff]
  %v4251 = vld [vmem:[%s11 + $0x118] sm:$0xff]
  %v4252 = vld [vmem:[%s11 + $0x120] sm:$0xff]
  %v4253 = vld [vmem:[%s11 + $0x128] sm:$0xff]
  %v4254 = vld [vmem:[%s11 + $0x130] sm:$0xff]
  %v4255 = vld [vmem:[%s11 + $0x138] sm:$0xff]
  %v4256 = vld [vmem:[%s11 + $0x140] sm:$0xff]
  %v4257 = vld [vmem:[%s11 + $0x148] sm:$0xff]
  %v4258 = vld [vmem:[%s11 + $0x150] sm:$0xff]
  %v4259 = vld [vmem:[%s11 + $0x158] sm:$0xff]
  %v4260 = vld [vmem:[%s11 + $0x160] sm:$0xff]
  %v4261 = vld [vmem:[%s11 + $0x168] sm:$0xff]
  %v4262 = vld [vmem:[%s11 + $0x170] sm:$0xff]
  %v4263 = vld [vmem:[%s11 + $0x178] sm:$0xff]
  %v4264 = vld [vmem:[%s11 + $0x180] sm:$0xff]
  %v4265 = vld [vmem:[%s11 + $0x188] sm:$0xff]
  %v4266 = vld [vmem:[%s11 + $0x190] sm:$0xff]
  %v4267 = vld [vmem:[%s11 + $0x198] sm:$0xff]
  %v4268 = vld [vmem:[%s11 + $0x1a0] sm:$0xff]
  %v4269 = vld [vmem:[%s11 + $0x1a8] sm:$0xff]
  %v4270 = vld [vmem:[%s11 + $0x1b0] sm:$0xff]
  %v4271 = vld [vmem:[%s11 + $0x1b8] sm:$0xff]
  %v4272 = vld [vmem:[%s11 + $0x1c0] sm:$0xff]
  %v4273 = vld [vmem:[%s11 + $0x1c8] sm:$0xff]
  %v4274 = vld [vmem:[%s11 + $0x1d0] sm:$0xff]
  %v4275 = vld [vmem:[%s11 + $0x1d8] sm:$0xff]
  %v4276 = vld [vmem:[%s11 + $0x1e0] sm:$0xff]
  %v4277 = vld [vmem:[%s11 + $0x1e8] sm:$0xff]
  %v4278 = vld [vmem:[%s11 + $0x1f0] sm:$0xff]
  %v4279 = vld [vmem:[%s11 + $0x1f8] sm:$0xff]
  %v4280 = vld [vmem:[%s11 + $0x200] sm:$0xff]
  %v4281 = vld [vmem:[%s11 + $0x208] sm:$0xff]
  %v4282 = vld [vmem:[%s11 + $0x210] sm:$0xff]
  %v4283 = vld [vmem:[%s11 + $0x218] sm:$0xff]
  %v4284 = vld [vmem:[%s11 + $0x220] sm:$0xff]
  %v4285 = vld [vmem:[%s11 + $0x228] sm:$0xff]
  %v4286 = vld [vmem:[%s11 + $0x230] sm:$0xff]
  %v4287 = vld [vmem:[%s11 + $0x238] sm:$0xff]
  %v4288 = vld [vmem:[%s11 + $0x240] sm:$0xff]
  %v4289 = vld [vmem:[%s11 + $0x248] sm:$0xff]
  %v4290 = vld [vmem:[%s11 + $0x250] sm:$0xff]
  %v4291 = vld [vmem:[%s11 + $0x258] sm:$0xff]
  %v4292 = vld [vmem:[%s11 + $0x260] sm:$0xff]
  %v4293 = vld [vmem:[%s11 + $0x268] sm:$0xff]
  %v4294 = vld [vmem:[%s11 + $0x270] sm:$0xff]
  %v4295 = vld [vmem:[%s11 + $0x278] sm:$0xff]
  %v4296 = vld [vmem:[%s11 + $0x280] sm:$0xff]
  %v4297 = vld [vmem:[%s11 + $0x288] sm:$0xff]
  %v4298 = vld [vmem:[%s11 + $0x290] sm:$0xff]
  %v4299 = vld [vmem:[%s11 + $0x298] sm:$0xff]
  %v4300 = vld [vmem:[%s11 + $0x2a0] sm:$0xff]
  %v4301 = vld [vmem:[%s11 + $0x2a8] sm:$0xff]
  %v4302 = vld [vmem:[%s11 + $0x2b0] sm:$0xff]
  %v4303 = vld [vmem:[%s11 + $0x2b8] sm:$0xff]
  %v4304 = vld [vmem:[%s11 + $0x2c0] sm:$0xff]
  %v4305 = vld [vmem:[%s11 + $0x2c8] sm:$0xff]
  %v4306 = vld [vmem:[%s11 + $0x2d0] sm:$0xff]
  %v4307 = vld [vmem:[%s11 + $0x2d8] sm:$0xff]
  %v4308 = vld [vmem:[%s11 + $0x2e0] sm:$0xff]
  %v4309 = vld [vmem:[%s11 + $0x2e8] sm:$0xff]
  %v4310 = vld [vmem:[%s11 + $0x2f0] sm:$0xff]
  %v4311 = vld [vmem:[%s11 + $0x2f8] sm:$0xff]
  %v4312 = vld [vmem:[%s11 + $0x300] sm:$0xff]
  %v4313 = vld [vmem:[%s11 + $0x308] sm:$0xff]
  %v4314 = vld [vmem:[%s11 + $0x310] sm:$0xff]
  %v4315 = vld [vmem:[%s11 + $0x318] sm:$0xff]
  %v4316 = vld [vmem:[%s11 + $0x320] sm:$0xff]
  %v4317 = vld [vmem:[%s11 + $0x328] sm:$0xff]
  %v4318 = vld [vmem:[%s11 + $0x330] sm:$0xff]
  %v4319 = vld [vmem:[%s11 + $0x338] sm:$0xff]
  %v4320 = vld [vmem:[%s11 + $0x340] sm:$0xff]
  %v4321 = vld [vmem:[%s11 + $0x348] sm:$0xff]
  %v4322 = vld [vmem:[%s11 + $0x350] sm:$0xff]
  %v4323 = vld [vmem:[%s11 + $0x358] sm:$0xff]
  %v4324 = vld [vmem:[%s11 + $0x360] sm:$0xff]
  %v4325 = vld [vmem:[%s11 + $0x368] sm:$0xff]
  %v4326 = vld [vmem:[%s11 + $0x370] sm:$0xff]
  %v4327 = vld [vmem:[%s11 + $0x378] sm:$0xff]
  %v4328 = vld [vmem:[%s11 + $0x380] sm:$0xff]
  %v4329 = vld [vmem:[%s11 + $0x388] sm:$0xff]
  %v4330 = vld [vmem:[%s11 + $0x390] sm:$0xff]
  %v4331 = vld [vmem:[%s11 + $0x398] sm:$0xff]
  %v4332 = vld [vmem:[%s11 + $0x3a0] sm:$0xff]
  %v4333 = vld [vmem:[%s11 + $0x3a8] sm:$0xff]
  %v4334 = vld [vmem:[%s11 + $0x3b0] sm:$0xff]
  %v4335 = vld [vmem:[%s11 + $0x3b8] sm:$0xff]
  %v4336 = vld [vmem:[%s11 + $0x3c0] sm:$0xff]
  %v4337 = vld [vmem:[%s11 + $0x3c8] sm:$0xff]
  %v4338 = vld [vmem:[%s11 + $0x3d0] sm:$0xff]
  %v4339 = vld [vmem:[%s11 + $0x3d8] sm:$0xff]
  %v4340 = vld [vmem:[%s11 + $0x3e0] sm:$0xff]
  %v4341 = vld [vmem:[%s11 + $0x3e8] sm:$0xff]
  %v4342 = vld [vmem:[%s11 + $0x3f0] sm:$0xff]
  %v4343 = vld [vmem:[%s11 + $0x3f8] sm:$0xff]
  %v4344 = vld [vmem:[%s11 + $0x400] sm:$0xff]
  %v4345 = vld [vmem:[%s11 + $0x408] sm:$0xff]
  %v4346 = vld [vmem:[%s11 + $0x410] sm:$0xff]
  %v4347 = vld [vmem:[%s11 + $0x418] sm:$0xff]
  %v4348 = vld [vmem:[%s11 + $0x420] sm:$0xff]
  %v4349 = vld [vmem:[%s11 + $0x428] sm:$0xff]
  %v4350 = vld [vmem:[%s11 + $0x430] sm:$0xff]
  %v4351 = vld [vmem:[%s11 + $0x438] sm:$0xff]
  %v4352 = vld [vmem:[%s11 + $0x440] sm:$0xff]
  %v4353 = vld [vmem:[%s11 + $0x448] sm:$0xff]
  %v4354 = vld [vmem:[%s11 + $0x450] sm:$0xff]
  %v4355 = vld [vmem:[%s11 + $0x458] sm:$0xff]
  %v4356 = vld [vmem:[%s11 + $0x460] sm:$0xff]
  %v4357 = vld [vmem:[%s11 + $0x468] sm:$0xff]
  %v4358 = vld [vmem:[%s11 + $0x470] sm:$0xff]
  %v4359 = vld [vmem:[%s11 + $0x478] sm:$0xff]
  %v4360 = vld [vmem:[%s11 + $0x480] sm:$0xff]
  %v4361 = vld [vmem:[%s11 + $0x488] sm:$0xff]
  %v4362 = vld [vmem:[%s11 + $0x490] sm:$0xff]
  %v4363 = vld [vmem:[%s11 + $0x498] sm:$0xff]
  %v4364 = vld [vmem:[%s11 + $0x4a0] sm:$0xff]
  %v4365 = vld [vmem:[%s11 + $0x4a8] sm:$0xff]
  %v4366 = vld [vmem:[%s11 + $0x4b0] sm:$0xff]
  %v4367 = vld [vmem:[%s11 + $0x4b8] sm:$0xff]
  %v4368 = vld [vmem:[%s11 + $0x4c0] sm:$0xff]
  %v4369 = vld [vmem:[%s11 + $0x4c8] sm:$0xff]
  %v4370 = vld [vmem:[%s11 + $0x4d0] sm:$0xff]
  %v4371 = vld [vmem:[%s11 + $0x4d8] sm:$0xff]
  %v4372 = vld [vmem:[%s11 + $0x4e0] sm:$0xff]
  %v4373 = vld [vmem:[%s11 + $0x4e8] sm:$0xff]
  %v4374 = vld [vmem:[%s11 + $0x4f0] sm:$0xff]
  %v4375 = vld [vmem:[%s11 + $0x4f8] sm:$0xff]
  %v4376 = vld [vmem:[%s11 + $0x500] sm:$0xff]
  %v4377 = vld [vmem:[%s11 + $0x508] sm:$0xff]
  %v4378 = vld [vmem:[%s11 + $0x510] sm:$0xff]
  %v4379 = vld [vmem:[%s11 + $0x518] sm:$0xff]
  %v4380 = vld [vmem:[%s11 + $0x520] sm:$0xff]
  %v4381 = vld [vmem:[%s11 + $0x528] sm:$0xff]
  %v4382 = vld [vmem:[%s11 + $0x530] sm:$0xff]
  %v4383 = vld [vmem:[%s11 + $0x538] sm:$0xff]
  %v4384 = vld [vmem:[%s11 + $0x540] sm:$0xff]
  %v4385 = vld [vmem:[%s11 + $0x548] sm:$0xff]
  %v4386 = vld [vmem:[%s11 + $0x550] sm:$0xff]
  %v4387 = vld [vmem:[%s11 + $0x558] sm:$0xff]
  %v4388 = vld [vmem:[%s11 + $0x560] sm:$0xff]
  %v4389 = vld [vmem:[%s11 + $0x568] sm:$0xff]
  %v4390 = vld [vmem:[%s11 + $0x570] sm:$0xff]
  %v4391 = vld [vmem:[%s11 + $0x578] sm:$0xff]
  %v4392 = vld [vmem:[%s11 + $0x580] sm:$0xff]
  %v4393 = vld [vmem:[%s11 + $0x588] sm:$0xff]
  %v4394 = vld [vmem:[%s11 + $0x590] sm:$0xff]
  %v4395 = vld [vmem:[%s11 + $0x598] sm:$0xff]
  %v4396 = vld [vmem:[%s11 + $0x5a0] sm:$0xff]
  %v4397 = vld [vmem:[%s11 + $0x5a8] sm:$0xff]
  %v4398 = vld [vmem:[%s11 + $0x5b0] sm:$0xff]
  %v4399 = vld [vmem:[%s11 + $0x5b8] sm:$0xff]
  %v4400 = vld [vmem:[%s11 + $0x5c0] sm:$0xff]
  %v4401 = vld [vmem:[%s11 + $0x5c8] sm:$0xff]
  %v4402 = vld [vmem:[%s11 + $0x5d0] sm:$0xff]
  %v4403 = vld [vmem:[%s11 + $0x5d8] sm:$0xff]
  %v4404 = vld [vmem:[%s11 + $0x5e0] sm:$0xff]
  %v4405 = vld [vmem:[%s11 + $0x5e8] sm:$0xff]
  %v4406 = vld [vmem:[%s11 + $0x5f0] sm:$0xff]
  %v4407 = vld [vmem:[%s11 + $0x5f8] sm:$0xff]
  %v4408 = vld [vmem:[%s11 + $0x600] sm:$0xff]
  %v4409 = vld [vmem:[%s11 + $0x608] sm:$0xff]
  %v4410 = vld [vmem:[%s11 + $0x610] sm:$0xff]
  %v4411 = vld [vmem:[%s11 + $0x618] sm:$0xff]
  %v4412 = vld [vmem:[%s11 + $0x620] sm:$0xff]
  %v4413 = vld [vmem:[%s11 + $0x628] sm:$0xff]
  %v4414 = vld [vmem:[%s11 + $0x630] sm:$0xff]
  %v4415 = vld [vmem:[%s11 + $0x638] sm:$0xff]
  %v4416 = vld [vmem:[%s11 + $0x640] sm:$0xff]
  %v4417 = vld [vmem:[%s11 + $0x648] sm:$0xff]
  %v4418 = vld [vmem:[%s11 + $0x650] sm:$0xff]
  %v4419 = vld [vmem:[%s11 + $0x658] sm:$0xff]
  %v4420 = vld [vmem:[%s11 + $0x660] sm:$0xff]
  %v4421 = vld [vmem:[%s11 + $0x668] sm:$0xff]
  %v4422 = vld [vmem:[%s11 + $0x670] sm:$0xff]
  %v4423 = vld [vmem:[%s11 + $0x678] sm:$0xff]
  %v4424 = vld [vmem:[%s11 + $0x680] sm:$0xff]
  %v4425 = vld [vmem:[%s11 + $0x688] sm:$0xff]
  %v4426 = vld [vmem:[%s11 + $0x690] sm:$0xff]
  %v4427 = vld [vmem:[%s11 + $0x698] sm:$0xff]
  %v4428 = vld [vmem:[%s11 + $0x6a0] sm:$0xff]
  %v4429 = vld [vmem:[%s11 + $0x6a8] sm:$0xff]
  %v4430 = vld [vmem:[%s11 + $0x6b0] sm:$0xff]
  %v4431 = vld [vmem:[%s11 + $0x6b8] sm:$0xff]
  %v4432 = vld [vmem:[%s11 + $0x6c0] sm:$0xff]
  %v4433 = vld [vmem:[%s11 + $0x6c8] sm:$0xff]
  %v4434 = vld [vmem:[%s11 + $0x6d0] sm:$0xff]
  %v4435 = vld [vmem:[%s11 + $0x6d8] sm:$0xff]
  %v4436 = vld [vmem:[%s11 + $0x6e0] sm:$0xff]
  %v4437 = vld [vmem:[%s11 + $0x6e8] sm:$0xff]
  %v4438 = vld [vmem:[%s11 + $0x6f0] sm:$0xff]
  %v4439 = vld [vmem:[%s11 + $0x6f8] sm:$0xff]
  %v4440 = vld [vmem:[%s11 + $0x700] sm:$0xff]
  %v4441 = vld [vmem:[%s11 + $0x708] sm:$0xff]
  %v4442 = vld [vmem:[%s11 + $0x710] sm:$0xff]
  %v4443 = vld [vmem:[%s11 + $0x718] sm:$0xff]
  %v4444 = vld [vmem:[%s11 + $0x720] sm:$0xff]
  %v4445 = vld [vmem:[%s11 + $0x728] sm:$0xff]
  %v4446 = vld [vmem:[%s11 + $0x730] sm:$0xff]
  %v4447 = vld [vmem:[%s11 + $0x738] sm:$0xff]
  %v4448 = vld [vmem:[%s11 + $0x740] sm:$0xff]
  %v4449 = vld [vmem:[%s11 + $0x748] sm:$0xff]
  %v4450 = vld [vmem:[%s11 + $0x750] sm:$0xff]
  %v4451 = vld [vmem:[%s11 + $0x758] sm:$0xff]
  %v4452 = vld [vmem:[%s11 + $0x760] sm:$0xff]
  %v4453 = vld [vmem:[%s11 + $0x768] sm:$0xff]
  %v4454 = vld [vmem:[%s11 + $0x770] sm:$0xff]
  %v4455 = vld [vmem:[%s11 + $0x778] sm:$0xff]
  %v4456 = vld [vmem:[%s11 + $0x780] sm:$0xff]
  %v4457 = vld [vmem:[%s11 + $0x788] sm:$0xff]
  %v4458 = vld [vmem:[%s11 + $0x790] sm:$0xff]
  %v4459 = vld [vmem:[%s11 + $0x798] sm:$0xff]
  %v4460 = vld [vmem:[%s11 + $0x7a0] sm:$0xff]
  %v4461 = vld [vmem:[%s11 + $0x7a8] sm:$0xff]
  %v4462 = vld [vmem:[%s11 + $0x7b0] sm:$0xff]
  %v4463 = vld [vmem:[%s11 + $0x7b8] sm:$0xff]
  %v4464 = vld [vmem:[%s11 + $0x7c0] sm:$0xff]
  %v4465 = vld [vmem:[%s11 + $0x7c8] sm:$0xff]
  %v4466 = vld [vmem:[%s11 + $0x7d0] sm:$0xff]
  %v4467 = vld [vmem:[%s11 + $0x7d8] sm:$0xff]
  %v4468 = vld [vmem:[%s11 + $0x7e0] sm:$0xff]
  %v4469 = vld [vmem:[%s11 + $0x7e8] sm:$0xff]
  %v4470 = vld [vmem:[%s11 + $0x7f0] sm:$0xff]
  %v4471 = vld [vmem:[%s12] sm:$0x1]
  %v4473 = vperm.slane %v4471, 0
  %vm4475 = vcmask 982016
  %v4477 = vsel %vm4475, %v4215, 0
  %4479 = vmatpush.msra.mxu0 %v4231
  %4480 = vmatpush.msra.mxu0 %v4230
  %4481 = vmatpush.msra.mxu0 %v4229
  %4482 = vmatpush.msra.mxu0 %v4228
  %4483 = vmatpush.msra.mxu0 %v4227
  %4484 = vmatpush.msra.mxu0 %v4226
  %4485 = vmatpush.msra.mxu0 %v4225
  %4486 = vmatpush.msra.mxu0 %v4224
  %4487 = vmatpush.msra.mxu0 %v4223
  %4488 = vmatpush.msra.mxu0 %v4222
  %4489 = vmatpush.msra.mxu0 %v4221
  %4490 = vmatpush.msra.mxu0 %v4220
  %4491 = vmatpush.msra.mxu0 %v4219
  %4492 = vmatpush.msra.mxu0 %v4218
  %4493 = vmatpush.msra.mxu0 %v4217
  %4494 = vmatpush.msra.mxu0 %v4216
  %4495 = vmatmul.f32.gmra.mxu0 %v4200
  %v4496 = vpop.f32.mrf.mxu0
  %v4497 = vadd.f32 %v4473, %v4496
  %4498 = vdwg.mxu0
  %4499 = vmatpush.msra.mxu0 %v4247
  %4500 = vmatpush.msra.mxu0 %v4246
  %4501 = vmatpush.msra.mxu0 %v4245
  %4502 = vmatpush.msra.mxu0 %v4244
  %4503 = vmatpush.msra.mxu0 %v4243
  %4504 = vmatpush.msra.mxu0 %v4242
  %4505 = vmatpush.msra.mxu0 %v4241
  %4506 = vmatpush.msra.mxu0 %v4240
  %4507 = vmatpush.msra.mxu0 %v4239
  %4508 = vmatpush.msra.mxu0 %v4238
  %4509 = vmatpush.msra.mxu0 %v4237
  %4510 = vmatpush.msra.mxu0 %v4236
  %4511 = vmatpush.msra.mxu0 %v4235
  %4512 = vmatpush.msra.mxu0 %v4234
  %4513 = vmatpush.msra.mxu0 %v4233
  %4514 = vmatpush.msra.mxu0 %v4232
  %4515 = vmatmul.f32.gmra.mxu0 %v4201
  %v4516 = vpop.f32.mrf.mxu0
  %v4517 = vadd.f32 %v4497, %v4516
  %4518 = vdwg.mxu0
  %4519 = vmatpush.msra.mxu0 %v4263
  %4520 = vmatpush.msra.mxu0 %v4262
  %4521 = vmatpush.msra.mxu0 %v4261
  %4522 = vmatpush.msra.mxu0 %v4260
  %4523 = vmatpush.msra.mxu0 %v4259
  %4524 = vmatpush.msra.mxu0 %v4258
  %4525 = vmatpush.msra.mxu0 %v4257
  %4526 = vmatpush.msra.mxu0 %v4256
  %4527 = vmatpush.msra.mxu0 %v4255
  %4528 = vmatpush.msra.mxu0 %v4254
  %4529 = vmatpush.msra.mxu0 %v4253
  %4530 = vmatpush.msra.mxu0 %v4252
  %4531 = vmatpush.msra.mxu0 %v4251
  %4532 = vmatpush.msra.mxu0 %v4250
  %4533 = vmatpush.msra.mxu0 %v4249
  %4534 = vmatpush.msra.mxu0 %v4248
  %4535 = vmatmul.f32.gmra.mxu0 %v4202
  %v4536 = vpop.f32.mrf.mxu0
  %v4537 = vadd.f32 %v4517, %v4536
  %4538 = vdwg.mxu0
  %4539 = vmatpush.msra.mxu0 %v4279
  %4540 = vmatpush.msra.mxu0 %v4278
  %4541 = vmatpush.msra.mxu0 %v4277
  %4542 = vmatpush.msra.mxu0 %v4276
  %4543 = vmatpush.msra.mxu0 %v4275
  %4544 = vmatpush.msra.mxu0 %v4274
  %4545 = vmatpush.msra.mxu0 %v4273
  %4546 = vmatpush.msra.mxu0 %v4272
  %4547 = vmatpush.msra.mxu0 %v4271
  %4548 = vmatpush.msra.mxu0 %v4270
  %4549 = vmatpush.msra.mxu0 %v4269
  %4550 = vmatpush.msra.mxu0 %v4268
  %4551 = vmatpush.msra.mxu0 %v4267
  %4552 = vmatpush.msra.mxu0 %v4266
  %4553 = vmatpush.msra.mxu0 %v4265
  %4554 = vmatpush.msra.mxu0 %v4264
  %4555 = vmatmul.f32.gmra.mxu0 %v4203
  %v4556 = vpop.f32.mrf.mxu0
  %v4557 = vadd.f32 %v4537, %v4556
  %4558 = vdwg.mxu0
  %4559 = vmatpush.msra.mxu0 %v4295
  %4560 = vmatpush.msra.mxu0 %v4294
  %4561 = vmatpush.msra.mxu0 %v4293
  %4562 = vmatpush.msra.mxu0 %v4292
  %4563 = vmatpush.msra.mxu0 %v4291
  %4564 = vmatpush.msra.mxu0 %v4290
  %4565 = vmatpush.msra.mxu0 %v4289
  %4566 = vmatpush.msra.mxu0 %v4288
  %4567 = vmatpush.msra.mxu0 %v4287
  %4568 = vmatpush.msra.mxu0 %v4286
  %4569 = vmatpush.msra.mxu0 %v4285
  %4570 = vmatpush.msra.mxu0 %v4284
  %4571 = vmatpush.msra.mxu0 %v4283
  %4572 = vmatpush.msra.mxu0 %v4282
  %4573 = vmatpush.msra.mxu0 %v4281
  %4574 = vmatpush.msra.mxu0 %v4280
  %4575 = vmatmul.f32.gmra.mxu0 %v4204
  %v4576 = vpop.f32.mrf.mxu0
  %v4577 = vadd.f32 %v4557, %v4576
  %4578 = vdwg.mxu0
  %4579 = vmatpush.msra.mxu0 %v4311
  %4580 = vmatpush.msra.mxu0 %v4310
  %4581 = vmatpush.msra.mxu0 %v4309
  %4582 = vmatpush.msra.mxu0 %v4308
  %4583 = vmatpush.msra.mxu0 %v4307
  %4584 = vmatpush.msra.mxu0 %v4306
  %4585 = vmatpush.msra.mxu0 %v4305
  %4586 = vmatpush.msra.mxu0 %v4304
  %4587 = vmatpush.msra.mxu0 %v4303
  %4588 = vmatpush.msra.mxu0 %v4302
  %4589 = vmatpush.msra.mxu0 %v4301
  %4590 = vmatpush.msra.mxu0 %v4300
  %4591 = vmatpush.msra.mxu0 %v4299
  %4592 = vmatpush.msra.mxu0 %v4298
  %4593 = vmatpush.msra.mxu0 %v4297
  %4594 = vmatpush.msra.mxu0 %v4296
  %4595 = vmatmul.f32.gmra.mxu0 %v4205
  %v4596 = vpop.f32.mrf.mxu0
  %v4597 = vadd.f32 %v4577, %v4596
  %4598 = vdwg.mxu0
  %4599 = vmatpush.msra.mxu0 %v4327
  %4600 = vmatpush.msra.mxu0 %v4326
  %4601 = vmatpush.msra.mxu0 %v4325
  %4602 = vmatpush.msra.mxu0 %v4324
  %4603 = vmatpush.msra.mxu0 %v4323
  %4604 = vmatpush.msra.mxu0 %v4322
  %4605 = vmatpush.msra.mxu0 %v4321
  %4606 = vmatpush.msra.mxu0 %v4320
  %4607 = vmatpush.msra.mxu0 %v4319
  %4608 = vmatpush.msra.mxu0 %v4318
  %4609 = vmatpush.msra.mxu0 %v4317
  %4610 = vmatpush.msra.mxu0 %v4316
  %4611 = vmatpush.msra.mxu0 %v4315
  %4612 = vmatpush.msra.mxu0 %v4314
  %4613 = vmatpush.msra.mxu0 %v4313
  %4614 = vmatpush.msra.mxu0 %v4312
  %4615 = vmatmul.f32.gmra.mxu0 %v4206
  %v4616 = vpop.f32.mrf.mxu0
  %v4617 = vadd.f32 %v4597, %v4616
  %4618 = vdwg.mxu0
  %4619 = vmatpush.msra.mxu0 %v4343
  %4620 = vmatpush.msra.mxu0 %v4342
  %4621 = vmatpush.msra.mxu0 %v4341
  %4622 = vmatpush.msra.mxu0 %v4340
  %4623 = vmatpush.msra.mxu0 %v4339
  %4624 = vmatpush.msra.mxu0 %v4338
  %4625 = vmatpush.msra.mxu0 %v4337
  %4626 = vmatpush.msra.mxu0 %v4336
  %4627 = vmatpush.msra.mxu0 %v4335
  %4628 = vmatpush.msra.mxu0 %v4334
  %4629 = vmatpush.msra.mxu0 %v4333
  %4630 = vmatpush.msra.mxu0 %v4332
  %4631 = vmatpush.msra.mxu0 %v4331
  %4632 = vmatpush.msra.mxu0 %v4330
  %4633 = vmatpush.msra.mxu0 %v4329
  %4634 = vmatpush.msra.mxu0 %v4328
  %4635 = vmatmul.f32.gmra.mxu0 %v4207
  %v4636 = vpop.f32.mrf.mxu0
  %v4637 = vadd.f32 %v4617, %v4636
  %4638 = vdwg.mxu0
  %4639 = vmatpush.msra.mxu0 %v4359
  %4640 = vmatpush.msra.mxu0 %v4358
  %4641 = vmatpush.msra.mxu0 %v4357
  %4642 = vmatpush.msra.mxu0 %v4356
  %4643 = vmatpush.msra.mxu0 %v4355
  %4644 = vmatpush.msra.mxu0 %v4354
  %4645 = vmatpush.msra.mxu0 %v4353
  %4646 = vmatpush.msra.mxu0 %v4352
  %4647 = vmatpush.msra.mxu0 %v4351
  %4648 = vmatpush.msra.mxu0 %v4350
  %4649 = vmatpush.msra.mxu0 %v4349
  %4650 = vmatpush.msra.mxu0 %v4348
  %4651 = vmatpush.msra.mxu0 %v4347
  %4652 = vmatpush.msra.mxu0 %v4346
  %4653 = vmatpush.msra.mxu0 %v4345
  %4654 = vmatpush.msra.mxu0 %v4344
  %4655 = vmatmul.f32.gmra.mxu0 %v4208
  %v4656 = vpop.f32.mrf.mxu0
  %v4657 = vadd.f32 %v4637, %v4656
  %4658 = vdwg.mxu0
  %4659 = vmatpush.msra.mxu0 %v4375
  %4660 = vmatpush.msra.mxu0 %v4374
  %4661 = vmatpush.msra.mxu0 %v4373
  %4662 = vmatpush.msra.mxu0 %v4372
  %4663 = vmatpush.msra.mxu0 %v4371
  %4664 = vmatpush.msra.mxu0 %v4370
  %4665 = vmatpush.msra.mxu0 %v4369
  %4666 = vmatpush.msra.mxu0 %v4368
  %4667 = vmatpush.msra.mxu0 %v4367
  %4668 = vmatpush.msra.mxu0 %v4366
  %4669 = vmatpush.msra.mxu0 %v4365
  %4670 = vmatpush.msra.mxu0 %v4364
  %4671 = vmatpush.msra.mxu0 %v4363
  %4672 = vmatpush.msra.mxu0 %v4362
  %4673 = vmatpush.msra.mxu0 %v4361
  %4674 = vmatpush.msra.mxu0 %v4360
  %4675 = vmatmul.f32.gmra.mxu0 %v4209
  %v4676 = vpop.f32.mrf.mxu0
  %v4677 = vadd.f32 %v4657, %v4676
  %4678 = vdwg.mxu0
  %4679 = vmatpush.msra.mxu0 %v4391
  %4680 = vmatpush.msra.mxu0 %v4390
  %4681 = vmatpush.msra.mxu0 %v4389
  %4682 = vmatpush.msra.mxu0 %v4388
  %4683 = vmatpush.msra.mxu0 %v4387
  %4684 = vmatpush.msra.mxu0 %v4386
  %4685 = vmatpush.msra.mxu0 %v4385
  %4686 = vmatpush.msra.mxu0 %v4384
  %4687 = vmatpush.msra.mxu0 %v4383
  %4688 = vmatpush.msra.mxu0 %v4382
  %4689 = vmatpush.msra.mxu0 %v4381
  %4690 = vmatpush.msra.mxu0 %v4380
  %4691 = vmatpush.msra.mxu0 %v4379
  %4692 = vmatpush.msra.mxu0 %v4378
  %4693 = vmatpush.msra.mxu0 %v4377
  %4694 = vmatpush.msra.mxu0 %v4376
  %4695 = vmatmul.f32.gmra.mxu0 %v4210
  %v4696 = vpop.f32.mrf.mxu0
  %v4697 = vadd.f32 %v4677, %v4696
  %4698 = vdwg.mxu0
  %4699 = vmatpush.msra.mxu0 %v4407
  %4700 = vmatpush.msra.mxu0 %v4406
  %4701 = vmatpush.msra.mxu0 %v4405
  %4702 = vmatpush.msra.mxu0 %v4404
  %4703 = vmatpush.msra.mxu0 %v4403
  %4704 = vmatpush.msra.mxu0 %v4402
  %4705 = vmatpush.msra.mxu0 %v4401
  %4706 = vmatpush.msra.mxu0 %v4400
  %4707 = vmatpush.msra.mxu0 %v4399
  %4708 = vmatpush.msra.mxu0 %v4398
  %4709 = vmatpush.msra.mxu0 %v4397
  %4710 = vmatpush.msra.mxu0 %v4396
  %4711 = vmatpush.msra.mxu0 %v4395
  %4712 = vmatpush.msra.mxu0 %v4394
  %4713 = vmatpush.msra.mxu0 %v4393
  %4714 = vmatpush.msra.mxu0 %v4392
  %4715 = vmatmul.f32.gmra.mxu0 %v4211
  %v4716 = vpop.f32.mrf.mxu0
  %v4717 = vadd.f32 %v4697, %v4716
  %4718 = vdwg.mxu0
  %4719 = vmatpush.msra.mxu0 %v4423
  %4720 = vmatpush.msra.mxu0 %v4422
  %4721 = vmatpush.msra.mxu0 %v4421
  %4722 = vmatpush.msra.mxu0 %v4420
  %4723 = vmatpush.msra.mxu0 %v4419
  %4724 = vmatpush.msra.mxu0 %v4418
  %4725 = vmatpush.msra.mxu0 %v4417
  %4726 = vmatpush.msra.mxu0 %v4416
  %4727 = vmatpush.msra.mxu0 %v4415
  %4728 = vmatpush.msra.mxu0 %v4414
  %4729 = vmatpush.msra.mxu0 %v4413
  %4730 = vmatpush.msra.mxu0 %v4412
  %4731 = vmatpush.msra.mxu0 %v4411
  %4732 = vmatpush.msra.mxu0 %v4410
  %4733 = vmatpush.msra.mxu0 %v4409
  %4734 = vmatpush.msra.mxu0 %v4408
  %4735 = vmatmul.f32.gmra.mxu0 %v4212
  %v4736 = vpop.f32.mrf.mxu0
  %v4737 = vadd.f32 %v4717, %v4736
  %4738 = vdwg.mxu0
  %4739 = vmatpush.msra.mxu0 %v4439
  %4740 = vmatpush.msra.mxu0 %v4438
  %4741 = vmatpush.msra.mxu0 %v4437
  %4742 = vmatpush.msra.mxu0 %v4436
  %4743 = vmatpush.msra.mxu0 %v4435
  %4744 = vmatpush.msra.mxu0 %v4434
  %4745 = vmatpush.msra.mxu0 %v4433
  %4746 = vmatpush.msra.mxu0 %v4432
  %4747 = vmatpush.msra.mxu0 %v4431
  %4748 = vmatpush.msra.mxu0 %v4430
  %4749 = vmatpush.msra.mxu0 %v4429
  %4750 = vmatpush.msra.mxu0 %v4428
  %4751 = vmatpush.msra.mxu0 %v4427
  %4752 = vmatpush.msra.mxu0 %v4426
  %4753 = vmatpush.msra.mxu0 %v4425
  %4754 = vmatpush.msra.mxu0 %v4424
  %4755 = vmatmul.f32.gmra.mxu0 %v4213
  %v4756 = vpop.f32.mrf.mxu0
  %v4757 = vadd.f32 %v4737, %v4756
  %4758 = vdwg.mxu0
  %4759 = vmatpush.msra.mxu0 %v4455
  %4760 = vmatpush.msra.mxu0 %v4454
  %4761 = vmatpush.msra.mxu0 %v4453
  %4762 = vmatpush.msra.mxu0 %v4452
  %4763 = vmatpush.msra.mxu0 %v4451
  %4764 = vmatpush.msra.mxu0 %v4450
  %4765 = vmatpush.msra.mxu0 %v4449
  %4766 = vmatpush.msra.mxu0 %v4448
  %4767 = vmatpush.msra.mxu0 %v4447
  %4768 = vmatpush.msra.mxu0 %v4446
  %4769 = vmatpush.msra.mxu0 %v4445
  %4770 = vmatpush.msra.mxu0 %v4444
  %4771 = vmatpush.msra.mxu0 %v4443
  %4772 = vmatpush.msra.mxu0 %v4442
  %4773 = vmatpush.msra.mxu0 %v4441
  %4774 = vmatpush.msra.mxu0 %v4440
  %4775 = vmatmul.f32.gmra.mxu0 %v4214
  %v4776 = vpop.f32.mrf.mxu0
  %v4777 = vadd.f32 %v4757, %v4776
  %4778 = vdwg.mxu0
  %4779 = vmatpush.msra.mxu0 0.0
  %4780 = vmatpush.msra.mxu0 %v4470
  %4781 = vmatpush.msra.mxu0 %v4469
  %4782 = vmatpush.msra.mxu0 %v4468
  %4783 = vmatpush.msra.mxu0 %v4467
  %4784 = vmatpush.msra.mxu0 %v4466
  %4785 = vmatpush.msra.mxu0 %v4465
  %4786 = vmatpush.msra.mxu0 %v4464
  %4787 = vmatpush.msra.mxu0 %v4463
  %4788 = vmatpush.msra.mxu0 %v4462
  %4789 = vmatpush.msra.mxu0 %v4461
  %4790 = vmatpush.msra.mxu0 %v4460
  %4791 = vmatpush.msra.mxu0 %v4459
  %4792 = vmatpush.msra.mxu0 %v4458
  %4793 = vmatpush.msra.mxu0 %v4457
  %4794 = vmatpush.msra.mxu0 %v4456
  %4795 = vmatmul.f32.gmra.mxu0 %v4477
  %v4796 = vpop.f32.mrf.mxu0
  %v4797 = vadd.f32 %v4777, %v4796
  %4798 = vdwg.mxu0
  %vm4799 = vcmask 72704
  %4800 = vst.msk [vmem:[%s13] sm:$0xff] %vm4799, %v4797
  // Predicated region
  $region54: #{net_forward.1} parent=0 // pred_check
    _
  $region55: #{net_forward.1} parent=0 // pred_check_branch
    %4802 = sbr.rel (0) target = $region57
  $region56: #{net_forward.1} parent=0 // pred_region
    _
  $region57: #{net_forward.1} parent=0 // pred_fallthru
    _
  // Predicated region
  $region58: #{net_forward.1} parent=0 // pred_check
    _
  $region59: #{net_forward.1} parent=0 // pred_check_branch
    %4804 = sbr.rel (0) target = $region61
  $region60: #{net_forward.1} parent=0 // pred_region
    _
  $region61: #{net_forward.1} parent=0 // pred_fallthru
    _

</llo_original>
